<compile_context>
chip_gen: v7x
topology: tpu7x:2x2x1
jax: 0.10.0
libtpu: 0.0.40
codegen_flags: <defaults>
</compile_context>

<pallas_src>
import functools
import math

import numpy as np
import jax
import jax.numpy as jnp
from jax import lax
from jax.experimental import pallas as pl
from jax.experimental.pallas import tpu as pltpu


def _round_up(x, m):
    return (x + m - 1) // m * m


def _vmem_capacity_bytes():
    try:
        return int(pltpu.get_tpu_info().vmem_capacity_bytes)
    except Exception:
        return 128 * 2 ** 20          # conservative fallback (v5e/v6e physical)


def _choose_cblk(C):
    """Lane-block width for the serial recurrence (keeps live vregs < ~32)."""
    for cand in (256, 128, 512):
        if C % cand == 0:
            return cand
    return C


def _choose_chunk(tile_t):
    for c in (8, 4, 2, 1):
        if tile_t % c == 0:
            return c
    return 1


def _pick_tile_t(T, Bp, C, wbytes, io_bytes, vmem_capacity):
    """Largest time tile whose footprint fits comfortably in this chip's VMEM."""
    budget = int(0.70 * vmem_capacity)
    row_f32 = Bp * C * 4
    row_io = Bp * C * io_bytes
    # weights (2 bufs, pessimistic) + packed params + carries
    fixed = 2 * 4 * C * C * wbytes + 2 * 8 * C * 4 + 4 * row_f32
    # x in + out (double-buffered) + 4 scratch slabs + live-temp headroom
    per_t = 4 * row_io + 4 * row_f32 + 3 * row_f32
    avail = max(budget - fixed, 8 * per_t)
    tile_t = int(min(T, max(avail // per_t, 1), 512))
    if tile_t >= 8:
        tile_t = tile_t // 8 * 8
    return max(tile_t, 1)


# ----------------------------------------------------------------------------
# Kernel: one grid step processes one time tile of shape (tile_t*Bp, C), batch
# packed contiguously on the sublane axis for every time step (time-major).
# ----------------------------------------------------------------------------
def _rwkv_timemix_kernel(
    bp, chunk, cblk, approx_recip,          # static, bound via functools.partial
    x_ref,                                  # (ttb, C) io_dtype, time-major
    p_ref,                                  # (8, C) f32: rows 0..4 = w,u,mk,mv,mr
    wk_ref, wv_ref, wr_ref, wo_ref,         # (C, C) pre-transposed weights
    o_ref,                                  # (ttb, C) f32
    k_sc, v_sc, y_sc, r_sc,                 # VMEM (ttb, C) f32
    aa_sc, bb_sc, pp_sc, xprev_sc,          # VMEM (bp, C) f32 persistent carries
):
    ttb, C = x_ref.shape
    rows = chunk * bp
    n_chunks = ttb // rows
    n_cb = C // cblk

    # ---- init carried state on the first time tile --------------------------
    @pl.when(pl.program_id(0) == 0)
    def _():
        aa_sc[...] = jnp.zeros_like(aa_sc)
        bb_sc[...] = jnp.zeros_like(bb_sc)
        pp_sc[...] = jnp.full_like(pp_sc, -1e38)
        xprev_sc[...] = jnp.zeros_like(xprev_sc)

    x = x_ref[...].astype(jnp.float32)                      # (ttb, C)

    # ---- time shift: xx[t] = x[t-1]; stage xx in y_sc (reused by recurrence) -
    y_sc[0:bp, :] = xprev_sc[...]
    y_sc[bp:ttb, :] = x[0:ttb - bp, :]
    xprev_sc[...] = x[ttb - bp:ttb, :]                      # carry for next tile
    xx = y_sc[...]

    wdt = wk_ref.dtype
    # ---- token-mix fused with each projection (bounds live (ttb,C) temps) ---
    mk = p_ref[2:3, :]
    k_sc[...] = jnp.dot((x * mk + xx * (1.0 - mk)).astype(wdt), wk_ref[...],
                        preferred_element_type=jnp.float32)
    mv = p_ref[3:4, :]
    v_sc[...] = jnp.dot((x * mv + xx * (1.0 - mv)).astype(wdt), wv_ref[...],
                        preferred_element_type=jnp.float32)
    mr = p_ref[4:5, :]
    r_sc[...] = jnp.dot((x * mr + xx * (1.0 - mr)).astype(wdt), wr_ref[...],
                        preferred_element_type=jnp.float32)

    # ---- WKV recurrence (log-sum-exp form), channel-blocked ------------------
    # State is per-channel independent, so each lane block runs its own serial
    # chain with aa/bb/pp carried in vregs; per-step kk/vv loads come straight
    # from VMEM scratch (no slab loads -> no spills on the critical path).
    for cb in range(n_cb):
        c0 = cb * cblk
        w = p_ref[0:1, pl.ds(c0, cblk)]
        u = p_ref[1:2, pl.ds(c0, cblk)]

        def chunk_body(c, carry, c0=c0, w=w, u=u):
            aa, bb, pp = carry
            base = pl.multiple_of(c * rows, rows)
            for j in range(chunk):                           # unrolled
                off = pl.multiple_of(base + j * bp, bp)
                kk = k_sc[pl.ds(off, bp), pl.ds(c0, cblk)]   # (bp, cblk)
                vv = v_sc[pl.ds(off, bp), pl.ds(c0, cblk)]
                ww = u + kk
                p = jnp.maximum(pp, ww)
                e1 = jnp.exp(pp - p)
                e2 = jnp.exp(ww - p)
                num = e1 * aa + e2 * vv
                den = e1 * bb + e2
                if approx_recip:
                    y = num * pl.reciprocal(den, approx=True)
                else:
                    y = num / den
                y_sc[pl.ds(off, bp), pl.ds(c0, cblk)] = y
                ww2 = w + pp
                p2 = jnp.maximum(ww2, kk)
                e1b = jnp.exp(ww2 - p2)
                e2b = jnp.exp(kk - p2)
                aa = e1b * aa + e2b * vv
                bb = e1b * bb + e2b
                pp = p2
            return aa, bb, pp

        carry0 = (aa_sc[:, pl.ds(c0, cblk)],
                  bb_sc[:, pl.ds(c0, cblk)],
                  pp_sc[:, pl.ds(c0, cblk)])
        aa, bb, pp = lax.fori_loop(0, n_chunks, chunk_body, carry0)
        aa_sc[:, pl.ds(c0, cblk)] = aa
        bb_sc[:, pl.ds(c0, cblk)] = bb
        pp_sc[:, pl.ds(c0, cblk)] = pp

    # ---- sigmoid(r) gating + output projection -------------------------------
    rwkv = (jax.nn.sigmoid(r_sc[...]) * y_sc[...]).astype(wdt)
    o_ref[...] = jnp.dot(rwkv, wo_ref[...],
                         preferred_element_type=jnp.float32).astype(o_ref.dtype)


# ----------------------------------------------------------------------------
# Wrapper
# ----------------------------------------------------------------------------
def rwkv_timemix(x, params, *, weight_dtype=jnp.bfloat16, io_dtype=jnp.float32,
                 approx_recip=True, tile_t=None):
    """RWKV_TimeMix forward. x: (B, T, C) float32 -> (B, T, C) float32."""
    B, T, C = x.shape
    Bp = _round_up(B, 8)                       # full sublane tiles per time step
    Cp = _round_up(C, 128)                     # lane-dense, unmasked stores
    wbytes = jnp.dtype(weight_dtype).itemsize
    io_bytes = jnp.dtype(io_dtype).itemsize
    vmem_cap = _vmem_capacity_bytes()

    if tile_t is None:
        tile_t = _pick_tile_t(T, Bp, Cp, wbytes, io_bytes, vmem_cap)
    tile_t = max(1, min(tile_t, T))
    T_pad = _round_up(T, tile_t)               # pad T instead of giant fallback tile
    nt = T_pad // tile_t
    chunk = _choose_chunk(tile_t)
    cblk = _choose_cblk(Cp)
    ttb = tile_t * Bp

    # ---- parameters: pack w,u,mk,mv,mr into one (8, Cp) operand -------------
    def vec(p):
        v = jnp.asarray(p, jnp.float32).reshape(1, C)
        return jnp.pad(v, ((0, 0), (0, Cp - C)))

    wd = vec(-jnp.exp(jnp.asarray(params["time_decay"], jnp.float32)))  # as in WKV.forward
    tf = vec(params["time_first"])
    mk = vec(params["time_mix_k"])
    mv = vec(params["time_mix_v"])
    mr = vec(params["time_mix_r"])
    packed = jnp.concatenate([wd, tf, mk, mv, mr,
                              jnp.zeros((3, Cp), jnp.float32)], axis=0)   # (8, Cp)

    # nn.Linear stores (out, in); pre-transpose so the kernel does x @ W.
    def mat(w):
        wt = jnp.asarray(w, jnp.float32).T
        wt = jnp.pad(wt, ((0, Cp - C), (0, Cp - C)))
        return wt.astype(weight_dtype)

    wk = mat(params["key_w"])
    wv = mat(params["value_w"])
    wr = mat(params["receptance_w"])
    wo = mat(params["output_w"])

    # ---- activations: (B,T,C) -> time-major, batch packed on sublanes -------
    xp = jnp.asarray(x, jnp.float32)
    xp = jnp.pad(xp, ((0, Bp - B), (0, T_pad - T), (0, Cp - C)))
    x2d = jnp.transpose(xp, (1, 0, 2)).reshape(T_pad * Bp, Cp).astype(io_dtype)

    # ---- VMEM budget / cost hint ---------------------------------------------
    slab = ttb * Cp * 4
    io_slab = ttb * Cp * io_bytes
    est = (4 * io_slab                               # x + out, double-buffered
           + 2 * (4 * Cp * Cp * wbytes + 8 * Cp * 4)  # weights + params (pessimistic 2x)
           + 4 * slab                                # k/v/y/r scratch
           + 4 * Bp * Cp * 4                         # carries
           + 3 * slab)                               # live-temp headroom
    vmem_limit = int(min(int(0.92 * vmem_cap),
                         max(int(1.25 * est), 32 * 2 ** 20)))

    cost = pl.CostEstimate(
        flops=int(8 * Bp * T_pad * Cp * Cp + 30 * Bp * T_pad * Cp),
        transcendentals=int(6 * Bp * T_pad * Cp),
        bytes_accessed=int(2 * T_pad * Bp * Cp * io_bytes
                           + 4 * Cp * Cp * wbytes + 8 * Cp * 4),
    )

    kernel = functools.partial(_rwkv_timemix_kernel, Bp, chunk, cblk,
                               bool(approx_recip))

    act_in_spec = pl.BlockSpec((ttb, Cp), lambda t: (t, 0))
    act_out_spec = pl.BlockSpec((ttb, Cp), lambda t: (t, 0))

    def call(single_buffer_consts):
        ckw = {}
        if single_buffer_consts:
            # grid-invariant operands: no point double-buffering them
            ckw = dict(pipeline_mode=pl.Buffered(1))
        vec_spec = pl.BlockSpec((8, Cp), lambda t: (0, 0), **ckw)
        mat_spec = pl.BlockSpec((Cp, Cp), lambda t: (0, 0), **ckw)
        return pl.pallas_call(
            kernel,
            out_shape=jax.ShapeDtypeStruct((T_pad * Bp, Cp), jnp.float32),
            grid_spec=pltpu.PrefetchScalarGridSpec(
                num_scalar_prefetch=0,
                grid=(nt,),
                in_specs=[
                    act_in_spec,                        # x (time-major)
                    vec_spec,                           # packed w,u,mk,mv,mr
                    mat_spec, mat_spec, mat_spec, mat_spec,   # Wk, Wv, Wr, Wo
                ],
                out_specs=act_out_spec,
                scratch_shapes=[
                    pltpu.VMEM((ttb, Cp), jnp.float32),   # k
                    pltpu.VMEM((ttb, Cp), jnp.float32),   # v
                    pltpu.VMEM((ttb, Cp), jnp.float32),   # y (also stages xx)
                    pltpu.VMEM((ttb, Cp), jnp.float32),   # r
                    pltpu.VMEM((Bp, Cp), jnp.float32),    # aa
                    pltpu.VMEM((Bp, Cp), jnp.float32),    # bb
                    pltpu.VMEM((Bp, Cp), jnp.float32),    # pp
                    pltpu.VMEM((Bp, Cp), jnp.float32),    # x[t-1] carry
                ],
            ),
            compiler_params=pltpu.CompilerParams(
                # the time-tile axis carries WKV state -> must run in order
                dimension_semantics=("arbitrary",),
                vmem_limit_bytes=vmem_limit,
            ),
            cost_estimate=cost,
        )(x2d, packed, wk, wv, wr, wo)

    try:
        out2d = call(True)
    except Exception:
        # pipeline_mode / Buffered(1) unsupported on this JAX build -> default bufs
        out2d = call(False)

    out = out2d.reshape(T_pad, Bp, Cp).transpose(1, 0, 2)
    return out[:B, :T, :C]


# ----------------------------------------------------------------------------
# Pure-JAX reference (mirrors the PyTorch forward + wkv_cuda.forward)
# ----------------------------------------------------------------------------
def rwkv_timemix_ref(x, params):
    B, T, C = x.shape
    mk = params["time_mix_k"].reshape(1, 1, C)
    mv = params["time_mix_v"].reshape(1, 1, C)
    mr = params["time_mix_r"].reshape(1, 1, C)
    xx = jnp.pad(x, ((0, 0), (1, 0), (0, 0)))[:, :T]
    xk = x * mk + xx * (1 - mk)
    xv = x * mv + xx * (1 - mv)
    xr = x * mr + xx * (1 - mr)
    k = xk @ params["key_w"].T
    v = xv @ params["value_w"].T
    r = xr @ params["receptance_w"].T
    w = -jnp.exp(params["time_decay"])[None, :]
    u = params["time_first"][None, :]

    aa = jnp.zeros((B, C), jnp.float32)
    bb = jnp.zeros((B, C), jnp.float32)
    pp = jnp.full((B, C), -1e38, jnp.float32)
    ys = []
    for t in range(T):
        kk = k[:, t]
        vv = v[:, t]
        ww = u + kk
        p = jnp.maximum(pp, ww)
        e1 = jnp.exp(pp - p)
        e2 = jnp.exp(ww - p)
        ys.append((e1 * aa + e2 * vv) / (e1 * bb + e2))
        ww = w + pp
        p = jnp.maximum(ww, kk)
        e1 = jnp.exp(ww - p)
        e2 = jnp.exp(kk - p)
        aa = e1 * aa + e2 * vv
        bb = e1 * bb + e2
        pp = p
    y = jnp.stack(ys, axis=1)
    rwkv = jax.nn.sigmoid(r) * y
    return rwkv @ params["output_w"].T


# ----------------------------------------------------------------------------
if __name__ == "__main__":
    B, T, C = 2, 8, 32   # batch, seq, n_embd

    key = jax.random.PRNGKey(0)
    keys = jax.random.split(key, 10)

    params = {
        "time_decay": jax.random.normal(keys[0], (C,), jnp.float32) * 0.5,
        "time_first": jnp.full((C,), math.log(0.3), jnp.float32)
                      + 0.1 * jax.random.normal(keys[1], (C,), jnp.float32),
        "time_mix_k": jax.random.uniform(keys[2], (1, 1, C), jnp.float32),
        "time_mix_v": jax.random.uniform(keys[3], (1, 1, C), jnp.float32),
        "time_mix_r": jax.random.uniform(keys[4], (1, 1, C), jnp.float32),
        "key_w":        jax.random.normal(keys[5], (C, C), jnp.float32) / math.sqrt(C),
        "value_w":      jax.random.normal(keys[6], (C, C), jnp.float32) / math.sqrt(C),
        "receptance_w": jax.random.normal(keys[7], (C, C), jnp.float32) / math.sqrt(C),
        "output_w":     jax.random.normal(keys[8], (C, C), jnp.float32) / math.sqrt(C),
    }
    x = jax.random.normal(keys[9], (B, T, C), jnp.float32)

    ref = rwkv_timemix_ref(x, params)

    # exact path (f32 weights, exact divide): tight parity with the reference math
    out_f32 = jax.block_until_ready(
        rwkv_timemix(x, params, weight_dtype=jnp.float32, approx_recip=False))
    np.testing.assert_allclose(np.asarray(out_f32), np.asarray(ref),
                               rtol=2e-4, atol=2e-4)

    # default fast path (bf16 weights on the MXU, approx reciprocal on the EUP)
    out = jax.block_until_ready(rwkv_timemix(x, params))
    np.testing.assert_allclose(np.asarray(out), np.asarray(ref),
                               rtol=5e-2, atol=5e-2)

    print("KERNEL_OK")
</pallas_src>

<mosaic_0001>
module attributes {stable_mosaic.version = 11 : i64} {
  func.func @_rwkv_timemix_kernel(%arg0: i32, %arg1: memref<64x128xf32, #tpu.memory_space<vmem>>, %arg2: memref<8x128xf32, #tpu.memory_space<vmem>>, %arg3: memref<128x128xf32, #tpu.memory_space<vmem>>, %arg4: memref<128x128xf32, #tpu.memory_space<vmem>>, %arg5: memref<128x128xf32, #tpu.memory_space<vmem>>, %arg6: memref<128x128xf32, #tpu.memory_space<vmem>>, %arg7: memref<64x128xf32, #tpu.memory_space<vmem>>, %arg8: memref<64x128xf32, #tpu.memory_space<vmem>>, %arg9: memref<64x128xf32, #tpu.memory_space<vmem>>, %arg10: memref<64x128xf32, #tpu.memory_space<vmem>>, %arg11: memref<64x128xf32, #tpu.memory_space<vmem>>, %arg12: memref<8x128xf32, #tpu.memory_space<vmem>>, %arg13: memref<8x128xf32, #tpu.memory_space<vmem>>, %arg14: memref<8x128xf32, #tpu.memory_space<vmem>>, %arg15: memref<8x128xf32, #tpu.memory_space<vmem>>) attributes {dimension_semantics = [#tpu.dimension_semantics<arbitrary>], iteration_bounds = array<i64: 1>, scalar_prefetch = 0 : i64, scratch_operands = 8 : i64, tpu.core_type = #tpu.core_type<tc>, window_params = [{transform_indices = @transform_0, window_bounds = array<i64: 64, 128>}, {pipeline_mode = #tpu.pipeline_mode<synchronous>, transform_indices = @transform_1, window_bounds = array<i64: 8, 128>}, {pipeline_mode = #tpu.pipeline_mode<synchronous>, transform_indices = @transform_2, window_bounds = array<i64: 128, 128>}, {pipeline_mode = #tpu.pipeline_mode<synchronous>, transform_indices = @transform_3, window_bounds = array<i64: 128, 128>}, {pipeline_mode = #tpu.pipeline_mode<synchronous>, transform_indices = @transform_4, window_bounds = array<i64: 128, 128>}, {pipeline_mode = #tpu.pipeline_mode<synchronous>, transform_indices = @transform_5, window_bounds = array<i64: 128, 128>}, {transform_indices = @transform_6, window_bounds = array<i64: 64, 128>}]} {
    %c0_i32 = arith.constant 0 : i32
    %0 = arith.cmpi eq, %arg0, %c0_i32 : i32
    %1 = arith.extui %0 : i1 to i32
    %c0_i32_0 = arith.constant 0 : i32
    %2 = arith.cmpi ne, %1, %c0_i32_0 : i32
    scf.if %2 {
      %cst_82 = arith.constant 0.000000e+00 : f32
      %329 = vector.broadcast %cst_82 : f32 to vector<8x128xf32>
      %c0_83 = arith.constant 0 : index
      %c0_84 = arith.constant 0 : index
      %330 = vector.load %arg12[%c0_83, %c0_84] : memref<8x128xf32, #tpu.memory_space<vmem>>, vector<8x128xf32>
      tpu.vector_store %arg12[%c0_83, %c0_84], %329 {strides = array<i32>} : memref<8x128xf32, #tpu.memory_space<vmem>>, vector<8x128xf32>,
      %cst_85 = arith.constant 0.000000e+00 : f32
      %331 = vector.broadcast %cst_85 : f32 to vector<8x128xf32>
      %c0_86 = arith.constant 0 : index
      %c0_87 = arith.constant 0 : index
      %332 = vector.load %arg13[%c0_86, %c0_87] : memref<8x128xf32, #tpu.memory_space<vmem>>, vector<8x128xf32>
      tpu.vector_store %arg13[%c0_86, %c0_87], %331 {strides = array<i32>} : memref<8x128xf32, #tpu.memory_space<vmem>>, vector<8x128xf32>,
      %cst_88 = arith.constant -9.99999968E+37 : f32
      %333 = vector.broadcast %cst_88 : f32 to vector<8x128xf32>
      %c0_89 = arith.constant 0 : index
      %c0_90 = arith.constant 0 : index
      %334 = vector.load %arg14[%c0_89, %c0_90] : memref<8x128xf32, #tpu.memory_space<vmem>>, vector<8x128xf32>
      tpu.vector_store %arg14[%c0_89, %c0_90], %333 {strides = array<i32>} : memref<8x128xf32, #tpu.memory_space<vmem>>, vector<8x128xf32>,
      %cst_91 = arith.constant 0.000000e+00 : f32
      %335 = vector.broadcast %cst_91 : f32 to vector<8x128xf32>
      %c0_92 = arith.constant 0 : index
      %c0_93 = arith.constant 0 : index
      %336 = vector.load %arg15[%c0_92, %c0_93] : memref<8x128xf32, #tpu.memory_space<vmem>>, vector<8x128xf32>
      tpu.vector_store %arg15[%c0_92, %c0_93], %335 {strides = array<i32>} : memref<8x128xf32, #tpu.memory_space<vmem>>, vector<8x128xf32>,
    } else {
    }
    %c0 = arith.constant 0 : index
    %c0_1 = arith.constant 0 : index
    %3 = vector.load %arg1[%c0, %c0_1] : memref<64x128xf32, #tpu.memory_space<vmem>>, vector<64x128xf32>
    %c0_2 = arith.constant 0 : index
    %c0_3 = arith.constant 0 : index
    %4 = vector.load %arg15[%c0_2, %c0_3] : memref<8x128xf32, #tpu.memory_space<vmem>>, vector<8x128xf32>
    %c0_4 = arith.constant 0 : index
    %c0_5 = arith.constant 0 : index
    %5 = vector.load %arg10[%c0_4, %c0_5] : memref<64x128xf32, #tpu.memory_space<vmem>>, vector<8x128xf32>
    tpu.vector_store %arg10[%c0_4, %c0_5], %4 {strides = array<i32>} : memref<64x128xf32, #tpu.memory_space<vmem>>, vector<8x128xf32>,
    %6 = vector.extract_strided_slice %3 {offsets = [0, 0], sizes = [56, 128], strides = [1, 1]} : vector<64x128xf32> to vector<56x128xf32>
    %c8 = arith.constant 8 : index
    %c0_6 = arith.constant 0 : index
    %7 = vector.load %arg10[%c8, %c0_6] : memref<64x128xf32, #tpu.memory_space<vmem>>, vector<56x128xf32>
    tpu.vector_store %arg10[%c8, %c0_6], %6 {strides = array<i32>} : memref<64x128xf32, #tpu.memory_space<vmem>>, vector<56x128xf32>,
    %8 = vector.extract_strided_slice %3 {offsets = [56, 0], sizes = [8, 128], strides = [1, 1]} : vector<64x128xf32> to vector<8x128xf32>
    %c0_7 = arith.constant 0 : index
    %c0_8 = arith.constant 0 : index
    %9 = vector.load %arg15[%c0_7, %c0_8] : memref<8x128xf32, #tpu.memory_space<vmem>>, vector<8x128xf32>
    tpu.vector_store %arg15[%c0_7, %c0_8], %8 {strides = array<i32>} : memref<8x128xf32, #tpu.memory_space<vmem>>, vector<8x128xf32>,
    %c0_9 = arith.constant 0 : index
    %c0_10 = arith.constant 0 : index
    %10 = vector.load %arg10[%c0_9, %c0_10] : memref<64x128xf32, #tpu.memory_space<vmem>>, vector<64x128xf32>
    %c2 = arith.constant 2 : index
    %c0_11 = arith.constant 0 : index
    %11 = vector.load %arg2[%c2, %c0_11] : memref<8x128xf32, #tpu.memory_space<vmem>>, vector<1x128xf32>
    %12 = vector.broadcast %11 : vector<1x128xf32> to vector<64x128xf32>
    %13 = arith.mulf %3, %12 : vector<64x128xf32>
    %cst = arith.constant 1.000000e+00 : f32
    %14 = vector.broadcast %cst : f32 to vector<1x128xf32>
    %15 = arith.subf %14, %11 : vector<1x128xf32>
    %16 = vector.broadcast %15 : vector<1x128xf32> to vector<64x128xf32>
    %17 = arith.mulf %10, %16 : vector<64x128xf32>
    %18 = arith.addf %13, %17 : vector<64x128xf32>
    %c0_12 = arith.constant 0 : index
    %c0_13 = arith.constant 0 : index
    %19 = vector.load %arg3[%c0_12, %c0_13] : memref<128x128xf32, #tpu.memory_space<vmem>>, vector<128x128xf32>
    %cst_14 = arith.constant dense<0.000000e+00> : vector<64x128xf32>
    %20 = tpu.matmul %18, %19, %cst_14 {dimension_numbers = #tpu.dot_dimension_numbers<[1], [0], [0], [1], [0, 0, 1, 1], [], []>} : vector<64x128xf32>, vector<128x128xf32>, vector<64x128xf32> -> vector<64x128xf32>
    %c0_15 = arith.constant 0 : index
    %c0_16 = arith.constant 0 : index
    %21 = vector.load %arg8[%c0_15, %c0_16] : memref<64x128xf32, #tpu.memory_space<vmem>>, vector<64x128xf32>
    tpu.vector_store %arg8[%c0_15, %c0_16], %20 {strides = array<i32>} : memref<64x128xf32, #tpu.memory_space<vmem>>, vector<64x128xf32>,
    %c3 = arith.constant 3 : index
    %c0_17 = arith.constant 0 : index
    %22 = vector.load %arg2[%c3, %c0_17] : memref<8x128xf32, #tpu.memory_space<vmem>>, vector<1x128xf32>
    %23 = vector.broadcast %22 : vector<1x128xf32> to vector<64x128xf32>
    %24 = arith.mulf %3, %23 : vector<64x128xf32>
    %cst_18 = arith.constant 1.000000e+00 : f32
    %25 = vector.broadcast %cst_18 : f32 to vector<1x128xf32>
    %26 = arith.subf %25, %22 : vector<1x128xf32>
    %27 = vector.broadcast %26 : vector<1x128xf32> to vector<64x128xf32>
    %28 = arith.mulf %10, %27 : vector<64x128xf32>
    %29 = arith.addf %24, %28 : vector<64x128xf32>
    %c0_19 = arith.constant 0 : index
    %c0_20 = arith.constant 0 : index
    %30 = vector.load %arg4[%c0_19, %c0_20] : memref<128x128xf32, #tpu.memory_space<vmem>>, vector<128x128xf32>
    %cst_21 = arith.constant dense<0.000000e+00> : vector<64x128xf32>
    %31 = tpu.matmul %29, %30, %cst_21 {dimension_numbers = #tpu.dot_dimension_numbers<[1], [0], [0], [1], [0, 0, 1, 1], [], []>} : vector<64x128xf32>, vector<128x128xf32>, vector<64x128xf32> -> vector<64x128xf32>
    %c0_22 = arith.constant 0 : index
    %c0_23 = arith.constant 0 : index
    %32 = vector.load %arg9[%c0_22, %c0_23] : memref<64x128xf32, #tpu.memory_space<vmem>>, vector<64x128xf32>
    tpu.vector_store %arg9[%c0_22, %c0_23], %31 {strides = array<i32>} : memref<64x128xf32, #tpu.memory_space<vmem>>, vector<64x128xf32>,
    %c4 = arith.constant 4 : index
    %c0_24 = arith.constant 0 : index
    %33 = vector.load %arg2[%c4, %c0_24] : memref<8x128xf32, #tpu.memory_space<vmem>>, vector<1x128xf32>
    %34 = vector.broadcast %33 : vector<1x128xf32> to vector<64x128xf32>
    %35 = arith.mulf %3, %34 : vector<64x128xf32>
    %cst_25 = arith.constant 1.000000e+00 : f32
    %36 = vector.broadcast %cst_25 : f32 to vector<1x128xf32>
    %37 = arith.subf %36, %33 : vector<1x128xf32>
    %38 = vector.broadcast %37 : vector<1x128xf32> to vector<64x128xf32>
    %39 = arith.mulf %10, %38 : vector<64x128xf32>
    %40 = arith.addf %35, %39 : vector<64x128xf32>
    %c0_26 = arith.constant 0 : index
    %c0_27 = arith.constant 0 : index
    %41 = vector.load %arg5[%c0_26, %c0_27] : memref<128x128xf32, #tpu.memory_space<vmem>>, vector<128x128xf32>
    %cst_28 = arith.constant dense<0.000000e+00> : vector<64x128xf32>
    %42 = tpu.matmul %40, %41, %cst_28 {dimension_numbers = #tpu.dot_dimension_numbers<[1], [0], [0], [1], [0, 0, 1, 1], [], []>} : vector<64x128xf32>, vector<128x128xf32>, vector<64x128xf32> -> vector<64x128xf32>
    %c0_29 = arith.constant 0 : index
    %c0_30 = arith.constant 0 : index
    %43 = vector.load %arg11[%c0_29, %c0_30] : memref<64x128xf32, #tpu.memory_space<vmem>>, vector<64x128xf32>
    tpu.vector_store %arg11[%c0_29, %c0_30], %42 {strides = array<i32>} : memref<64x128xf32, #tpu.memory_space<vmem>>, vector<64x128xf32>,
    %c0_31 = arith.constant 0 : index
    %c0_32 = arith.constant 0 : index
    %44 = vector.load %arg2[%c0_31, %c0_32] : memref<8x128xf32, #tpu.memory_space<vmem>>, vector<1x128xf32>
    %c1 = arith.constant 1 : index
    %c0_33 = arith.constant 0 : index
    %45 = vector.load %arg2[%c1, %c0_33] : memref<8x128xf32, #tpu.memory_space<vmem>>, vector<1x128xf32>
    %c0_34 = arith.constant 0 : index
    %c0_35 = arith.constant 0 : index
    %46 = vector.load %arg12[%c0_34, %c0_35] : memref<8x128xf32, #tpu.memory_space<vmem>>, vector<8x128xf32>
    %c0_36 = arith.constant 0 : index
    %c0_37 = arith.constant 0 : index
    %47 = vector.load %arg13[%c0_36, %c0_37] : memref<8x128xf32, #tpu.memory_space<vmem>>, vector<8x128xf32>
    %c0_38 = arith.constant 0 : index
    %c0_39 = arith.constant 0 : index
    %48 = vector.load %arg14[%c0_38, %c0_39] : memref<8x128xf32, #tpu.memory_space<vmem>>, vector<8x128xf32>
    %c0_i32_40 = arith.constant 0 : i32
    %c64_i32 = arith.constant 64 : i32
    %49 = arith.muli %c0_i32_40, %c64_i32 : i32
    %50 = tpu.assume_multiple %49, 64 : i32
    %c0_i32_41 = arith.constant 0 : i32
    %51 = arith.addi %50, %c0_i32_41 : i32
    %52 = tpu.assume_multiple %51, 8 : i32
    %53 = arith.index_cast %52 : i32 to index
    %c0_42 = arith.constant 0 : index
    %54 = vector.load %arg8[%53, %c0_42] : memref<64x128xf32, #tpu.memory_space<vmem>>, vector<8x128xf32>
    %55 = arith.index_cast %52 : i32 to index
    %c0_43 = arith.constant 0 : index
    %56 = vector.load %arg9[%55, %c0_43] : memref<64x128xf32, #tpu.memory_space<vmem>>, vector<8x128xf32>
    %57 = vector.broadcast %45 : vector<1x128xf32> to vector<8x128xf32>
    %58 = arith.addf %57, %54 : vector<8x128xf32>
    %59 = arith.maximumf %48, %58 : vector<8x128xf32>
    %60 = arith.subf %48, %59 : vector<8x128xf32>
    %61 = math.exp %60 : vector<8x128xf32>
    %62 = arith.subf %58, %59 : vector<8x128xf32>
    %63 = math.exp %62 : vector<8x128xf32>
    %64 = arith.mulf %61, %46 : vector<8x128xf32>
    %65 = arith.mulf %63, %56 : vector<8x128xf32>
    %66 = arith.addf %64, %65 : vector<8x128xf32>
    %67 = arith.mulf %61, %47 : vector<8x128xf32>
    %68 = arith.addf %67, %63 : vector<8x128xf32>
    %69 = arith.divf %66, %68 : vector<8x128xf32>
    %70 = arith.index_cast %52 : i32 to index
    %c0_44 = arith.constant 0 : index
    %71 = vector.load %arg10[%70, %c0_44] : memref<64x128xf32, #tpu.memory_space<vmem>>, vector<8x128xf32>
    tpu.vector_store %arg10[%70, %c0_44], %69 {strides = array<i32>} : memref<64x128xf32, #tpu.memory_space<vmem>>, vector<8x128xf32>,
    %72 = vector.broadcast %44 : vector<1x128xf32> to vector<8x128xf32>
    %73 = arith.addf %72, %48 : vector<8x128xf32>
    %74 = arith.maximumf %73, %54 : vector<8x128xf32>
    %75 = arith.subf %73, %74 : vector<8x128xf32>
    %76 = math.exp %75 : vector<8x128xf32>
    %77 = arith.subf %54, %74 : vector<8x128xf32>
    %78 = math.exp %77 : vector<8x128xf32>
    %79 = arith.mulf %76, %46 : vector<8x128xf32>
    %80 = arith.mulf %78, %56 : vector<8x128xf32>
    %81 = arith.addf %79, %80 : vector<8x128xf32>
    %82 = arith.mulf %76, %47 : vector<8x128xf32>
    %83 = arith.addf %82, %78 : vector<8x128xf32>
    %c8_i32 = arith.constant 8 : i32
    %84 = arith.addi %50, %c8_i32 : i32
    %85 = tpu.assume_multiple %84, 8 : i32
    %86 = arith.index_cast %85 : i32 to index
    %c0_45 = arith.constant 0 : index
    %87 = vector.load %arg8[%86, %c0_45] : memref<64x128xf32, #tpu.memory_space<vmem>>, vector<8x128xf32>
    %88 = arith.index_cast %85 : i32 to index
    %c0_46 = arith.constant 0 : index
    %89 = vector.load %arg9[%88, %c0_46] : memref<64x128xf32, #tpu.memory_space<vmem>>, vector<8x128xf32>
    %90 = vector.broadcast %45 : vector<1x128xf32> to vector<8x128xf32>
    %91 = arith.addf %90, %87 : vector<8x128xf32>
    %92 = arith.maximumf %74, %91 : vector<8x128xf32>
    %93 = arith.subf %74, %92 : vector<8x128xf32>
    %94 = math.exp %93 : vector<8x128xf32>
    %95 = arith.subf %91, %92 : vector<8x128xf32>
    %96 = math.exp %95 : vector<8x128xf32>
    %97 = arith.mulf %94, %81 : vector<8x128xf32>
    %98 = arith.mulf %96, %89 : vector<8x128xf32>
    %99 = arith.addf %97, %98 : vector<8x128xf32>
    %100 = arith.mulf %94, %83 : vector<8x128xf32>
    %101 = arith.addf %100, %96 : vector<8x128xf32>
    %102 = arith.divf %99, %101 : vector<8x128xf32>
    %103 = arith.index_cast %85 : i32 to index
    %c0_47 = arith.constant 0 : index
    %104 = vector.load %arg10[%103, %c0_47] : memref<64x128xf32, #tpu.memory_space<vmem>>, vector<8x128xf32>
    tpu.vector_store %arg10[%103, %c0_47], %102 {strides = array<i32>} : memref<64x128xf32, #tpu.memory_space<vmem>>, vector<8x128xf32>,
    %105 = vector.broadcast %44 : vector<1x128xf32> to vector<8x128xf32>
    %106 = arith.addf %105, %74 : vector<8x128xf32>
    %107 = arith.maximumf %106, %87 : vector<8x128xf32>
    %108 = arith.subf %106, %107 : vector<8x128xf32>
    %109 = math.exp %108 : vector<8x128xf32>
    %110 = arith.subf %87, %107 : vector<8x128xf32>
    %111 = math.exp %110 : vector<8x128xf32>
    %112 = arith.mulf %109, %81 : vector<8x128xf32>
    %113 = arith.mulf %111, %89 : vector<8x128xf32>
    %114 = arith.addf %112, %113 : vector<8x128xf32>
    %115 = arith.mulf %109, %83 : vector<8x128xf32>
    %116 = arith.addf %115, %111 : vector<8x128xf32>
    %c16_i32 = arith.constant 16 : i32
    %117 = arith.addi %50, %c16_i32 : i32
    %118 = tpu.assume_multiple %117, 8 : i32
    %119 = arith.index_cast %118 : i32 to index
    %c0_48 = arith.constant 0 : index
    %120 = vector.load %arg8[%119, %c0_48] : memref<64x128xf32, #tpu.memory_space<vmem>>, vector<8x128xf32>
    %121 = arith.index_cast %118 : i32 to index
    %c0_49 = arith.constant 0 : index
    %122 = vector.load %arg9[%121, %c0_49] : memref<64x128xf32, #tpu.memory_space<vmem>>, vector<8x128xf32>
    %123 = vector.broadcast %45 : vector<1x128xf32> to vector<8x128xf32>
    %124 = arith.addf %123, %120 : vector<8x128xf32>
    %125 = arith.maximumf %107, %124 : vector<8x128xf32>
    %126 = arith.subf %107, %125 : vector<8x128xf32>
    %127 = math.exp %126 : vector<8x128xf32>
    %128 = arith.subf %124, %125 : vector<8x128xf32>
    %129 = math.exp %128 : vector<8x128xf32>
    %130 = arith.mulf %127, %114 : vector<8x128xf32>
    %131 = arith.mulf %129, %122 : vector<8x128xf32>
    %132 = arith.addf %130, %131 : vector<8x128xf32>
    %133 = arith.mulf %127, %116 : vector<8x128xf32>
    %134 = arith.addf %133, %129 : vector<8x128xf32>
    %135 = arith.divf %132, %134 : vector<8x128xf32>
    %136 = arith.index_cast %118 : i32 to index
    %c0_50 = arith.constant 0 : index
    %137 = vector.load %arg10[%136, %c0_50] : memref<64x128xf32, #tpu.memory_space<vmem>>, vector<8x128xf32>
    tpu.vector_store %arg10[%136, %c0_50], %135 {strides = array<i32>} : memref<64x128xf32, #tpu.memory_space<vmem>>, vector<8x128xf32>,
    %138 = vector.broadcast %44 : vector<1x128xf32> to vector<8x128xf32>
    %139 = arith.addf %138, %107 : vector<8x128xf32>
    %140 = arith.maximumf %139, %120 : vector<8x128xf32>
    %141 = arith.subf %139, %140 : vector<8x128xf32>
    %142 = math.exp %141 : vector<8x128xf32>
    %143 = arith.subf %120, %140 : vector<8x128xf32>
    %144 = math.exp %143 : vector<8x128xf32>
    %145 = arith.mulf %142, %114 : vector<8x128xf32>
    %146 = arith.mulf %144, %122 : vector<8x128xf32>
    %147 = arith.addf %145, %146 : vector<8x128xf32>
    %148 = arith.mulf %142, %116 : vector<8x128xf32>
    %149 = arith.addf %148, %144 : vector<8x128xf32>
    %c24_i32 = arith.constant 24 : i32
    %150 = arith.addi %50, %c24_i32 : i32
    %151 = tpu.assume_multiple %150, 8 : i32
    %152 = arith.index_cast %151 : i32 to index
    %c0_51 = arith.constant 0 : index
    %153 = vector.load %arg8[%152, %c0_51] : memref<64x128xf32, #tpu.memory_space<vmem>>, vector<8x128xf32>
    %154 = arith.index_cast %151 : i32 to index
    %c0_52 = arith.constant 0 : index
    %155 = vector.load %arg9[%154, %c0_52] : memref<64x128xf32, #tpu.memory_space<vmem>>, vector<8x128xf32>
    %156 = vector.broadcast %45 : vector<1x128xf32> to vector<8x128xf32>
    %157 = arith.addf %156, %153 : vector<8x128xf32>
    %158 = arith.maximumf %140, %157 : vector<8x128xf32>
    %159 = arith.subf %140, %158 : vector<8x128xf32>
    %160 = math.exp %159 : vector<8x128xf32>
    %161 = arith.subf %157, %158 : vector<8x128xf32>
    %162 = math.exp %161 : vector<8x128xf32>
    %163 = arith.mulf %160, %147 : vector<8x128xf32>
    %164 = arith.mulf %162, %155 : vector<8x128xf32>
    %165 = arith.addf %163, %164 : vector<8x128xf32>
    %166 = arith.mulf %160, %149 : vector<8x128xf32>
    %167 = arith.addf %166, %162 : vector<8x128xf32>
    %168 = arith.divf %165, %167 : vector<8x128xf32>
    %169 = arith.index_cast %151 : i32 to index
    %c0_53 = arith.constant 0 : index
    %170 = vector.load %arg10[%169, %c0_53] : memref<64x128xf32, #tpu.memory_space<vmem>>, vector<8x128xf32>
    tpu.vector_store %arg10[%169, %c0_53], %168 {strides = array<i32>} : memref<64x128xf32, #tpu.memory_space<vmem>>, vector<8x128xf32>,
    %171 = vector.broadcast %44 : vector<1x128xf32> to vector<8x128xf32>
    %172 = arith.addf %171, %140 : vector<8x128xf32>
    %173 = arith.maximumf %172, %153 : vector<8x128xf32>
    %174 = arith.subf %172, %173 : vector<8x128xf32>
    %175 = math.exp %174 : vector<8x128xf32>
    %176 = arith.subf %153, %173 : vector<8x128xf32>
    %177 = math.exp %176 : vector<8x128xf32>
    %178 = arith.mulf %175, %147 : vector<8x128xf32>
    %179 = arith.mulf %177, %155 : vector<8x128xf32>
    %180 = arith.addf %178, %179 : vector<8x128xf32>
    %181 = arith.mulf %175, %149 : vector<8x128xf32>
    %182 = arith.addf %181, %177 : vector<8x128xf32>
    %c32_i32 = arith.constant 32 : i32
    %183 = arith.addi %50, %c32_i32 : i32
    %184 = tpu.assume_multiple %183, 8 : i32
    %185 = arith.index_cast %184 : i32 to index
    %c0_54 = arith.constant 0 : index
    %186 = vector.load %arg8[%185, %c0_54] : memref<64x128xf32, #tpu.memory_space<vmem>>, vector<8x128xf32>
    %187 = arith.index_cast %184 : i32 to index
    %c0_55 = arith.constant 0 : index
    %188 = vector.load %arg9[%187, %c0_55] : memref<64x128xf32, #tpu.memory_space<vmem>>, vector<8x128xf32>
    %189 = vector.broadcast %45 : vector<1x128xf32> to vector<8x128xf32>
    %190 = arith.addf %189, %186 : vector<8x128xf32>
    %191 = arith.maximumf %173, %190 : vector<8x128xf32>
    %192 = arith.subf %173, %191 : vector<8x128xf32>
    %193 = math.exp %192 : vector<8x128xf32>
    %194 = arith.subf %190, %191 : vector<8x128xf32>
    %195 = math.exp %194 : vector<8x128xf32>
    %196 = arith.mulf %193, %180 : vector<8x128xf32>
    %197 = arith.mulf %195, %188 : vector<8x128xf32>
    %198 = arith.addf %196, %197 : vector<8x128xf32>
    %199 = arith.mulf %193, %182 : vector<8x128xf32>
    %200 = arith.addf %199, %195 : vector<8x128xf32>
    %201 = arith.divf %198, %200 : vector<8x128xf32>
    %202 = arith.index_cast %184 : i32 to index
    %c0_56 = arith.constant 0 : index
    %203 = vector.load %arg10[%202, %c0_56] : memref<64x128xf32, #tpu.memory_space<vmem>>, vector<8x128xf32>
    tpu.vector_store %arg10[%202, %c0_56], %201 {strides = array<i32>} : memref<64x128xf32, #tpu.memory_space<vmem>>, vector<8x128xf32>,
    %204 = vector.broadcast %44 : vector<1x128xf32> to vector<8x128xf32>
    %205 = arith.addf %204, %173 : vector<8x128xf32>
    %206 = arith.maximumf %205, %186 : vector<8x128xf32>
    %207 = arith.subf %205, %206 : vector<8x128xf32>
    %208 = math.exp %207 : vector<8x128xf32>
    %209 = arith.subf %186, %206 : vector<8x128xf32>
    %210 = math.exp %209 : vector<8x128xf32>
    %211 = arith.mulf %208, %180 : vector<8x128xf32>
    %212 = arith.mulf %210, %188 : vector<8x128xf32>
    %213 = arith.addf %211, %212 : vector<8x128xf32>
    %214 = arith.mulf %208, %182 : vector<8x128xf32>
    %215 = arith.addf %214, %210 : vector<8x128xf32>
    %c40_i32 = arith.constant 40 : i32
    %216 = arith.addi %50, %c40_i32 : i32
    %217 = tpu.assume_multiple %216, 8 : i32
    %218 = arith.index_cast %217 : i32 to index
    %c0_57 = arith.constant 0 : index
    %219 = vector.load %arg8[%218, %c0_57] : memref<64x128xf32, #tpu.memory_space<vmem>>, vector<8x128xf32>
    %220 = arith.index_cast %217 : i32 to index
    %c0_58 = arith.constant 0 : index
    %221 = vector.load %arg9[%220, %c0_58] : memref<64x128xf32, #tpu.memory_space<vmem>>, vector<8x128xf32>
    %222 = vector.broadcast %45 : vector<1x128xf32> to vector<8x128xf32>
    %223 = arith.addf %222, %219 : vector<8x128xf32>
    %224 = arith.maximumf %206, %223 : vector<8x128xf32>
    %225 = arith.subf %206, %224 : vector<8x128xf32>
    %226 = math.exp %225 : vector<8x128xf32>
    %227 = arith.subf %223, %224 : vector<8x128xf32>
    %228 = math.exp %227 : vector<8x128xf32>
    %229 = arith.mulf %226, %213 : vector<8x128xf32>
    %230 = arith.mulf %228, %221 : vector<8x128xf32>
    %231 = arith.addf %229, %230 : vector<8x128xf32>
    %232 = arith.mulf %226, %215 : vector<8x128xf32>
    %233 = arith.addf %232, %228 : vector<8x128xf32>
    %234 = arith.divf %231, %233 : vector<8x128xf32>
    %235 = arith.index_cast %217 : i32 to index
    %c0_59 = arith.constant 0 : index
    %236 = vector.load %arg10[%235, %c0_59] : memref<64x128xf32, #tpu.memory_space<vmem>>, vector<8x128xf32>
    tpu.vector_store %arg10[%235, %c0_59], %234 {strides = array<i32>} : memref<64x128xf32, #tpu.memory_space<vmem>>, vector<8x128xf32>,
    %237 = vector.broadcast %44 : vector<1x128xf32> to vector<8x128xf32>
    %238 = arith.addf %237, %206 : vector<8x128xf32>
    %239 = arith.maximumf %238, %219 : vector<8x128xf32>
    %240 = arith.subf %238, %239 : vector<8x128xf32>
    %241 = math.exp %240 : vector<8x128xf32>
    %242 = arith.subf %219, %239 : vector<8x128xf32>
    %243 = math.exp %242 : vector<8x128xf32>
    %244 = arith.mulf %241, %213 : vector<8x128xf32>
    %245 = arith.mulf %243, %221 : vector<8x128xf32>
    %246 = arith.addf %244, %245 : vector<8x128xf32>
    %247 = arith.mulf %241, %215 : vector<8x128xf32>
    %248 = arith.addf %247, %243 : vector<8x128xf32>
    %c48_i32 = arith.constant 48 : i32
    %249 = arith.addi %50, %c48_i32 : i32
    %250 = tpu.assume_multiple %249, 8 : i32
    %251 = arith.index_cast %250 : i32 to index
    %c0_60 = arith.constant 0 : index
    %252 = vector.load %arg8[%251, %c0_60] : memref<64x128xf32, #tpu.memory_space<vmem>>, vector<8x128xf32>
    %253 = arith.index_cast %250 : i32 to index
    %c0_61 = arith.constant 0 : index
    %254 = vector.load %arg9[%253, %c0_61] : memref<64x128xf32, #tpu.memory_space<vmem>>, vector<8x128xf32>
    %255 = vector.broadcast %45 : vector<1x128xf32> to vector<8x128xf32>
    %256 = arith.addf %255, %252 : vector<8x128xf32>
    %257 = arith.maximumf %239, %256 : vector<8x128xf32>
    %258 = arith.subf %239, %257 : vector<8x128xf32>
    %259 = math.exp %258 : vector<8x128xf32>
    %260 = arith.subf %256, %257 : vector<8x128xf32>
    %261 = math.exp %260 : vector<8x128xf32>
    %262 = arith.mulf %259, %246 : vector<8x128xf32>
    %263 = arith.mulf %261, %254 : vector<8x128xf32>
    %264 = arith.addf %262, %263 : vector<8x128xf32>
    %265 = arith.mulf %259, %248 : vector<8x128xf32>
    %266 = arith.addf %265, %261 : vector<8x128xf32>
    %267 = arith.divf %264, %266 : vector<8x128xf32>
    %268 = arith.index_cast %250 : i32 to index
    %c0_62 = arith.constant 0 : index
    %269 = vector.load %arg10[%268, %c0_62] : memref<64x128xf32, #tpu.memory_space<vmem>>, vector<8x128xf32>
    tpu.vector_store %arg10[%268, %c0_62], %267 {strides = array<i32>} : memref<64x128xf32, #tpu.memory_space<vmem>>, vector<8x128xf32>,
    %270 = vector.broadcast %44 : vector<1x128xf32> to vector<8x128xf32>
    %271 = arith.addf %270, %239 : vector<8x128xf32>
    %272 = arith.maximumf %271, %252 : vector<8x128xf32>
    %273 = arith.subf %271, %272 : vector<8x128xf32>
    %274 = math.exp %273 : vector<8x128xf32>
    %275 = arith.subf %252, %272 : vector<8x128xf32>
    %276 = math.exp %275 : vector<8x128xf32>
    %277 = arith.mulf %274, %246 : vector<8x128xf32>
    %278 = arith.mulf %276, %254 : vector<8x128xf32>
    %279 = arith.addf %277, %278 : vector<8x128xf32>
    %280 = arith.mulf %274, %248 : vector<8x128xf32>
    %281 = arith.addf %280, %276 : vector<8x128xf32>
    %c56_i32 = arith.constant 56 : i32
    %282 = arith.addi %50, %c56_i32 : i32
    %283 = tpu.assume_multiple %282, 8 : i32
    %284 = arith.index_cast %283 : i32 to index
    %c0_63 = arith.constant 0 : index
    %285 = vector.load %arg8[%284, %c0_63] : memref<64x128xf32, #tpu.memory_space<vmem>>, vector<8x128xf32>
    %286 = arith.index_cast %283 : i32 to index
    %c0_64 = arith.constant 0 : index
    %287 = vector.load %arg9[%286, %c0_64] : memref<64x128xf32, #tpu.memory_space<vmem>>, vector<8x128xf32>
    %288 = vector.broadcast %45 : vector<1x128xf32> to vector<8x128xf32>
    %289 = arith.addf %288, %285 : vector<8x128xf32>
    %290 = arith.maximumf %272, %289 : vector<8x128xf32>
    %291 = arith.subf %272, %290 : vector<8x128xf32>
    %292 = math.exp %291 : vector<8x128xf32>
    %293 = arith.subf %289, %290 : vector<8x128xf32>
    %294 = math.exp %293 : vector<8x128xf32>
    %295 = arith.mulf %292, %279 : vector<8x128xf32>
    %296 = arith.mulf %294, %287 : vector<8x128xf32>
    %297 = arith.addf %295, %296 : vector<8x128xf32>
    %298 = arith.mulf %292, %281 : vector<8x128xf32>
    %299 = arith.addf %298, %294 : vector<8x128xf32>
    %300 = arith.divf %297, %299 : vector<8x128xf32>
    %301 = arith.index_cast %283 : i32 to index
    %c0_65 = arith.constant 0 : index
    %302 = vector.load %arg10[%301, %c0_65] : memref<64x128xf32, #tpu.memory_space<vmem>>, vector<8x128xf32>
    tpu.vector_store %arg10[%301, %c0_65], %300 {strides = array<i32>} : memref<64x128xf32, #tpu.memory_space<vmem>>, vector<8x128xf32>,
    %303 = vector.broadcast %44 : vector<1x128xf32> to vector<8x128xf32>
    %304 = arith.addf %303, %272 : vector<8x128xf32>
    %305 = arith.maximumf %304, %285 : vector<8x128xf32>
    %306 = arith.subf %304, %305 : vector<8x128xf32>
    %307 = math.exp %306 : vector<8x128xf32>
    %308 = arith.subf %285, %305 : vector<8x128xf32>
    %309 = math.exp %308 : vector<8x128xf32>
    %310 = arith.mulf %307, %279 : vector<8x128xf32>
    %311 = arith.mulf %309, %287 : vector<8x128xf32>
    %312 = arith.addf %310, %311 : vector<8x128xf32>
    %313 = arith.mulf %307, %281 : vector<8x128xf32>
    %314 = arith.addf %313, %309 : vector<8x128xf32>
    %c1_i32 = arith.constant 1 : i32
    %c0_66 = arith.constant 0 : index
    %c0_67 = arith.constant 0 : index
    %315 = vector.load %arg12[%c0_66, %c0_67] : memref<8x128xf32, #tpu.memory_space<vmem>>, vector<8x128xf32>
    tpu.vector_store %arg12[%c0_66, %c0_67], %312 {strides = array<i32>} : memref<8x128xf32, #tpu.memory_space<vmem>>, vector<8x128xf32>,
    %c0_68 = arith.constant 0 : index
    %c0_69 = arith.constant 0 : index
    %316 = vector.load %arg13[%c0_68, %c0_69] : memref<8x128xf32, #tpu.memory_space<vmem>>, vector<8x128xf32>
    tpu.vector_store %arg13[%c0_68, %c0_69], %314 {strides = array<i32>} : memref<8x128xf32, #tpu.memory_space<vmem>>, vector<8x128xf32>,
    %c0_70 = arith.constant 0 : index
    %c0_71 = arith.constant 0 : index
    %317 = vector.load %arg14[%c0_70, %c0_71] : memref<8x128xf32, #tpu.memory_space<vmem>>, vector<8x128xf32>
    tpu.vector_store %arg14[%c0_70, %c0_71], %305 {strides = array<i32>} : memref<8x128xf32, #tpu.memory_space<vmem>>, vector<8x128xf32>,
    %c0_72 = arith.constant 0 : index
    %c0_73 = arith.constant 0 : index
    %318 = vector.load %arg11[%c0_72, %c0_73] : memref<64x128xf32, #tpu.memory_space<vmem>>, vector<64x128xf32>
    %319 = arith.negf %318 : vector<64x128xf32>
    %320 = math.exp %319 : vector<64x128xf32>
    %cst_74 = arith.constant 1.000000e+00 : f32
    %321 = vector.broadcast %cst_74 : f32 to vector<64x128xf32>
    %322 = arith.addf %321, %320 : vector<64x128xf32>
    %323 = arith.divf %321, %322 : vector<64x128xf32>
    %c0_75 = arith.constant 0 : index
    %c0_76 = arith.constant 0 : index
    %324 = vector.load %arg10[%c0_75, %c0_76] : memref<64x128xf32, #tpu.memory_space<vmem>>, vector<64x128xf32>
    %325 = arith.mulf %323, %324 : vector<64x128xf32>
    %c0_77 = arith.constant 0 : index
    %c0_78 = arith.constant 0 : index
    %326 = vector.load %arg6[%c0_77, %c0_78] : memref<128x128xf32, #tpu.memory_space<vmem>>, vector<128x128xf32>
    %cst_79 = arith.constant dense<0.000000e+00> : vector<64x128xf32>
    %327 = tpu.matmul %325, %326, %cst_79 {dimension_numbers = #tpu.dot_dimension_numbers<[1], [0], [0], [1], [0, 0, 1, 1], [], []>} : vector<64x128xf32>, vector<128x128xf32>, vector<64x128xf32> -> vector<64x128xf32>
    %c0_80 = arith.constant 0 : index
    %c0_81 = arith.constant 0 : index
    %328 = vector.load %arg7[%c0_80, %c0_81] : memref<64x128xf32, #tpu.memory_space<vmem>>, vector<64x128xf32>
    tpu.vector_store %arg7[%c0_80, %c0_81], %327 {strides = array<i32>} : memref<64x128xf32, #tpu.memory_space<vmem>>, vector<64x128xf32>,
    return
  }
  func.func @transform_0(%arg0: i32) -> (i32, i32) {
    %c0_i32 = arith.constant 0 : i32
    %c0_i32_0 = arith.constant 0 : i32
    return %arg0, %c0_i32 : i32, i32
  }
  func.func @transform_1(%arg0: i32) -> (i32, i32) {
    %c0_i32 = arith.constant 0 : i32
    %c0_i32_0 = arith.constant 0 : i32
    %c0_i32_1 = arith.constant 0 : i32
    return %c0_i32, %c0_i32_0 : i32, i32
  }
  func.func @transform_2(%arg0: i32) -> (i32, i32) {
    %c0_i32 = arith.constant 0 : i32
    %c0_i32_0 = arith.constant 0 : i32
    %c0_i32_1 = arith.constant 0 : i32
    return %c0_i32, %c0_i32_0 : i32, i32
  }
  func.func @transform_3(%arg0: i32) -> (i32, i32) {
    %c0_i32 = arith.constant 0 : i32
    %c0_i32_0 = arith.constant 0 : i32
    %c0_i32_1 = arith.constant 0 : i32
    return %c0_i32, %c0_i32_0 : i32, i32
  }
  func.func @transform_4(%arg0: i32) -> (i32, i32) {
    %c0_i32 = arith.constant 0 : i32
    %c0_i32_0 = arith.constant 0 : i32
    %c0_i32_1 = arith.constant 0 : i32
    return %c0_i32, %c0_i32_0 : i32, i32
  }
  func.func @transform_5(%arg0: i32) -> (i32, i32) {
    %c0_i32 = arith.constant 0 : i32
    %c0_i32_0 = arith.constant 0 : i32
    %c0_i32_1 = arith.constant 0 : i32
    return %c0_i32, %c0_i32_0 : i32, i32
  }
  func.func @transform_6(%arg0: i32) -> (i32, i32) {
    %c0_i32 = arith.constant 0 : i32
    %c0_i32_0 = arith.constant 0 : i32
    return %arg0, %c0_i32 : i32, i32
  }
}

module attributes {stable_mosaic.version = 11 : i64} {
  func.func @_rwkv_timemix_kernel(%arg0: i32, %arg1: memref<64x128xf32, #tpu.memory_space<vmem>>, %arg2: memref<8x128xf32, #tpu.memory_space<vmem>>, %arg3: memref<128x128xf32, #tpu.memory_space<vmem>>, %arg4: memref<128x128xf32, #tpu.memory_space<vmem>>, %arg5: memref<128x128xf32, #tpu.memory_space<vmem>>, %arg6: memref<128x128xf32, #tpu.memory_space<vmem>>, %arg7: memref<64x128xf32, #tpu.memory_space<vmem>>, %arg8: memref<64x128xf32, #tpu.memory_space<vmem>>, %arg9: memref<64x128xf32, #tpu.memory_space<vmem>>, %arg10: memref<64x128xf32, #tpu.memory_space<vmem>>, %arg11: memref<64x128xf32, #tpu.memory_space<vmem>>, %arg12: memref<8x128xf32, #tpu.memory_space<vmem>>, %arg13: memref<8x128xf32, #tpu.memory_space<vmem>>, %arg14: memref<8x128xf32, #tpu.memory_space<vmem>>, %arg15: memref<8x128xf32, #tpu.memory_space<vmem>>) attributes {dimension_semantics = [#tpu.dimension_semantics<arbitrary>], iteration_bounds = array<i64: 1>, scalar_prefetch = 0 : i64, scratch_operands = 8 : i64, tpu.core_type = #tpu.core_type<tc>, window_params = [{transform_indices = @transform_0, window_bounds = array<i64: 64, 128>}, {pipeline_mode = #tpu.pipeline_mode<synchronous>, transform_indices = @transform_1, window_bounds = array<i64: 8, 128>}, {pipeline_mode = #tpu.pipeline_mode<synchronous>, transform_indices = @transform_2, window_bounds = array<i64: 128, 128>}, {pipeline_mode = #tpu.pipeline_mode<synchronous>, transform_indices = @transform_3, window_bounds = array<i64: 128, 128>}, {pipeline_mode = #tpu.pipeline_mode<synchronous>, transform_indices = @transform_4, window_bounds = array<i64: 128, 128>}, {pipeline_mode = #tpu.pipeline_mode<synchronous>, transform_indices = @transform_5, window_bounds = array<i64: 128, 128>}, {transform_indices = @transform_6, window_bounds = array<i64: 64, 128>}]} {
    %c0_i32 = arith.constant 0 : i32
    %0 = arith.cmpi eq, %arg0, %c0_i32 : i32
    %1 = arith.extui %0 : i1 to i32
    %c0_i32_0 = arith.constant 0 : i32
    %2 = arith.cmpi ne, %1, %c0_i32_0 : i32
    scf.if %2 {
      %cst_82 = arith.constant 0.000000e+00 : f32
      %329 = vector.broadcast %cst_82 : f32 to vector<8x128xf32>
      %c0_83 = arith.constant 0 : index
      %c0_84 = arith.constant 0 : index
      %330 = vector.load %arg12[%c0_83, %c0_84] : memref<8x128xf32, #tpu.memory_space<vmem>>, vector<8x128xf32>
      tpu.vector_store %arg12[%c0_83, %c0_84], %329 {strides = array<i32>} : memref<8x128xf32, #tpu.memory_space<vmem>>, vector<8x128xf32>,
      %cst_85 = arith.constant 0.000000e+00 : f32
      %331 = vector.broadcast %cst_85 : f32 to vector<8x128xf32>
      %c0_86 = arith.constant 0 : index
      %c0_87 = arith.constant 0 : index
      %332 = vector.load %arg13[%c0_86, %c0_87] : memref<8x128xf32, #tpu.memory_space<vmem>>, vector<8x128xf32>
      tpu.vector_store %arg13[%c0_86, %c0_87], %331 {strides = array<i32>} : memref<8x128xf32, #tpu.memory_space<vmem>>, vector<8x128xf32>,
      %cst_88 = arith.constant -9.99999968E+37 : f32
      %333 = vector.broadcast %cst_88 : f32 to vector<8x128xf32>
      %c0_89 = arith.constant 0 : index
      %c0_90 = arith.constant 0 : index
      %334 = vector.load %arg14[%c0_89, %c0_90] : memref<8x128xf32, #tpu.memory_space<vmem>>, vector<8x128xf32>
      tpu.vector_store %arg14[%c0_89, %c0_90], %333 {strides = array<i32>} : memref<8x128xf32, #tpu.memory_space<vmem>>, vector<8x128xf32>,
      %cst_91 = arith.constant 0.000000e+00 : f32
      %335 = vector.broadcast %cst_91 : f32 to vector<8x128xf32>
      %c0_92 = arith.constant 0 : index
      %c0_93 = arith.constant 0 : index
      %336 = vector.load %arg15[%c0_92, %c0_93] : memref<8x128xf32, #tpu.memory_space<vmem>>, vector<8x128xf32>
      tpu.vector_store %arg15[%c0_92, %c0_93], %335 {strides = array<i32>} : memref<8x128xf32, #tpu.memory_space<vmem>>, vector<8x128xf32>,
    } else {
    }
    %c0 = arith.constant 0 : index
    %c0_1 = arith.constant 0 : index
    %3 = vector.load %arg1[%c0, %c0_1] : memref<64x128xf32, #tpu.memory_space<vmem>>, vector<64x128xf32>
    %c0_2 = arith.constant 0 : index
    %c0_3 = arith.constant 0 : index
    %4 = vector.load %arg15[%c0_2, %c0_3] : memref<8x128xf32, #tpu.memory_space<vmem>>, vector<8x128xf32>
    %c0_4 = arith.constant 0 : index
    %c0_5 = arith.constant 0 : index
    %5 = vector.load %arg10[%c0_4, %c0_5] : memref<64x128xf32, #tpu.memory_space<vmem>>, vector<8x128xf32>
    tpu.vector_store %arg10[%c0_4, %c0_5], %4 {strides = array<i32>} : memref<64x128xf32, #tpu.memory_space<vmem>>, vector<8x128xf32>,
    %6 = vector.extract_strided_slice %3 {offsets = [0, 0], sizes = [56, 128], strides = [1, 1]} : vector<64x128xf32> to vector<56x128xf32>
    %c8 = arith.constant 8 : index
    %c0_6 = arith.constant 0 : index
    %7 = vector.load %arg10[%c8, %c0_6] : memref<64x128xf32, #tpu.memory_space<vmem>>, vector<56x128xf32>
    tpu.vector_store %arg10[%c8, %c0_6], %6 {strides = array<i32>} : memref<64x128xf32, #tpu.memory_space<vmem>>, vector<56x128xf32>,
    %8 = vector.extract_strided_slice %3 {offsets = [56, 0], sizes = [8, 128], strides = [1, 1]} : vector<64x128xf32> to vector<8x128xf32>
    %c0_7 = arith.constant 0 : index
    %c0_8 = arith.constant 0 : index
    %9 = vector.load %arg15[%c0_7, %c0_8] : memref<8x128xf32, #tpu.memory_space<vmem>>, vector<8x128xf32>
    tpu.vector_store %arg15[%c0_7, %c0_8], %8 {strides = array<i32>} : memref<8x128xf32, #tpu.memory_space<vmem>>, vector<8x128xf32>,
    %c0_9 = arith.constant 0 : index
    %c0_10 = arith.constant 0 : index
    %10 = vector.load %arg10[%c0_9, %c0_10] : memref<64x128xf32, #tpu.memory_space<vmem>>, vector<64x128xf32>
    %c2 = arith.constant 2 : index
    %c0_11 = arith.constant 0 : index
    %11 = vector.load %arg2[%c2, %c0_11] : memref<8x128xf32, #tpu.memory_space<vmem>>, vector<1x128xf32>
    %12 = vector.broadcast %11 : vector<1x128xf32> to vector<64x128xf32>
    %13 = arith.mulf %3, %12 : vector<64x128xf32>
    %cst = arith.constant 1.000000e+00 : f32
    %14 = vector.broadcast %cst : f32 to vector<1x128xf32>
    %15 = arith.subf %14, %11 : vector<1x128xf32>
    %16 = vector.broadcast %15 : vector<1x128xf32> to vector<64x128xf32>
    %17 = arith.mulf %10, %16 : vector<64x128xf32>
    %18 = arith.addf %13, %17 : vector<64x128xf32>
    %c0_12 = arith.constant 0 : index
    %c0_13 = arith.constant 0 : index
    %19 = vector.load %arg3[%c0_12, %c0_13] : memref<128x128xf32, #tpu.memory_space<vmem>>, vector<128x128xf32>
    %cst_14 = arith.constant dense<0.000000e+00> : vector<64x128xf32>
    %20 = tpu.matmul %18, %19, %cst_14 {dimension_numbers = #tpu.dot_dimension_numbers<[1], [0], [0], [1], [0, 0, 1, 1], [], []>} : vector<64x128xf32>, vector<128x128xf32>, vector<64x128xf32> -> vector<64x128xf32>
    %c0_15 = arith.constant 0 : index
    %c0_16 = arith.constant 0 : index
    %21 = vector.load %arg8[%c0_15, %c0_16] : memref<64x128xf32, #tpu.memory_space<vmem>>, vector<64x128xf32>
    tpu.vector_store %arg8[%c0_15, %c0_16], %20 {strides = array<i32>} : memref<64x128xf32, #tpu.memory_space<vmem>>, vector<64x128xf32>,
    %c3 = arith.constant 3 : index
    %c0_17 = arith.constant 0 : index
    %22 = vector.load %arg2[%c3, %c0_17] : memref<8x128xf32, #tpu.memory_space<vmem>>, vector<1x128xf32>
    %23 = vector.broadcast %22 : vector<1x128xf32> to vector<64x128xf32>
    %24 = arith.mulf %3, %23 : vector<64x128xf32>
    %cst_18 = arith.constant 1.000000e+00 : f32
    %25 = vector.broadcast %cst_18 : f32 to vector<1x128xf32>
    %26 = arith.subf %25, %22 : vector<1x128xf32>
    %27 = vector.broadcast %26 : vector<1x128xf32> to vector<64x128xf32>
    %28 = arith.mulf %10, %27 : vector<64x128xf32>
    %29 = arith.addf %24, %28 : vector<64x128xf32>
    %c0_19 = arith.constant 0 : index
    %c0_20 = arith.constant 0 : index
    %30 = vector.load %arg4[%c0_19, %c0_20] : memref<128x128xf32, #tpu.memory_space<vmem>>, vector<128x128xf32>
    %cst_21 = arith.constant dense<0.000000e+00> : vector<64x128xf32>
    %31 = tpu.matmul %29, %30, %cst_21 {dimension_numbers = #tpu.dot_dimension_numbers<[1], [0], [0], [1], [0, 0, 1, 1], [], []>} : vector<64x128xf32>, vector<128x128xf32>, vector<64x128xf32> -> vector<64x128xf32>
    %c0_22 = arith.constant 0 : index
    %c0_23 = arith.constant 0 : index
    %32 = vector.load %arg9[%c0_22, %c0_23] : memref<64x128xf32, #tpu.memory_space<vmem>>, vector<64x128xf32>
    tpu.vector_store %arg9[%c0_22, %c0_23], %31 {strides = array<i32>} : memref<64x128xf32, #tpu.memory_space<vmem>>, vector<64x128xf32>,
    %c4 = arith.constant 4 : index
    %c0_24 = arith.constant 0 : index
    %33 = vector.load %arg2[%c4, %c0_24] : memref<8x128xf32, #tpu.memory_space<vmem>>, vector<1x128xf32>
    %34 = vector.broadcast %33 : vector<1x128xf32> to vector<64x128xf32>
    %35 = arith.mulf %3, %34 : vector<64x128xf32>
    %cst_25 = arith.constant 1.000000e+00 : f32
    %36 = vector.broadcast %cst_25 : f32 to vector<1x128xf32>
    %37 = arith.subf %36, %33 : vector<1x128xf32>
    %38 = vector.broadcast %37 : vector<1x128xf32> to vector<64x128xf32>
    %39 = arith.mulf %10, %38 : vector<64x128xf32>
    %40 = arith.addf %35, %39 : vector<64x128xf32>
    %c0_26 = arith.constant 0 : index
    %c0_27 = arith.constant 0 : index
    %41 = vector.load %arg5[%c0_26, %c0_27] : memref<128x128xf32, #tpu.memory_space<vmem>>, vector<128x128xf32>
    %cst_28 = arith.constant dense<0.000000e+00> : vector<64x128xf32>
    %42 = tpu.matmul %40, %41, %cst_28 {dimension_numbers = #tpu.dot_dimension_numbers<[1], [0], [0], [1], [0, 0, 1, 1], [], []>} : vector<64x128xf32>, vector<128x128xf32>, vector<64x128xf32> -> vector<64x128xf32>
    %c0_29 = arith.constant 0 : index
    %c0_30 = arith.constant 0 : index
    %43 = vector.load %arg11[%c0_29, %c0_30] : memref<64x128xf32, #tpu.memory_space<vmem>>, vector<64x128xf32>
    tpu.vector_store %arg11[%c0_29, %c0_30], %42 {strides = array<i32>} : memref<64x128xf32, #tpu.memory_space<vmem>>, vector<64x128xf32>,
    %c0_31 = arith.constant 0 : index
    %c0_32 = arith.constant 0 : index
    %44 = vector.load %arg2[%c0_31, %c0_32] : memref<8x128xf32, #tpu.memory_space<vmem>>, vector<1x128xf32>
    %c1 = arith.constant 1 : index
    %c0_33 = arith.constant 0 : index
    %45 = vector.load %arg2[%c1, %c0_33] : memref<8x128xf32, #tpu.memory_space<vmem>>, vector<1x128xf32>
    %c0_34 = arith.constant 0 : index
    %c0_35 = arith.constant 0 : index
    %46 = vector.load %arg12[%c0_34, %c0_35] : memref<8x128xf32, #tpu.memory_space<vmem>>, vector<8x128xf32>
    %c0_36 = arith.constant 0 : index
    %c0_37 = arith.constant 0 : index
    %47 = vector.load %arg13[%c0_36, %c0_37] : memref<8x128xf32, #tpu.memory_space<vmem>>, vector<8x128xf32>
    %c0_38 = arith.constant 0 : index
    %c0_39 = arith.constant 0 : index
    %48 = vector.load %arg14[%c0_38, %c0_39] : memref<8x128xf32, #tpu.memory_space<vmem>>, vector<8x128xf32>
    %c0_i32_40 = arith.constant 0 : i32
    %c64_i32 = arith.constant 64 : i32
    %49 = arith.muli %c0_i32_40, %c64_i32 : i32
    %50 = tpu.assume_multiple %49, 64 : i32
    %c0_i32_41 = arith.constant 0 : i32
    %51 = arith.addi %50, %c0_i32_41 : i32
    %52 = tpu.assume_multiple %51, 8 : i32
    %53 = arith.index_cast %52 : i32 to index
    %c0_42 = arith.constant 0 : index
    %54 = vector.load %arg8[%53, %c0_42] : memref<64x128xf32, #tpu.memory_space<vmem>>, vector<8x128xf32>
    %55 = arith.index_cast %52 : i32 to index
    %c0_43 = arith.constant 0 : index
    %56 = vector.load %arg9[%55, %c0_43] : memref<64x128xf32, #tpu.memory_space<vmem>>, vector<8x128xf32>
    %57 = vector.broadcast %45 : vector<1x128xf32> to vector<8x128xf32>
    %58 = arith.addf %57, %54 : vector<8x128xf32>
    %59 = arith.maximumf %48, %58 : vector<8x128xf32>
    %60 = arith.subf %48, %59 : vector<8x128xf32>
    %61 = math.exp %60 : vector<8x128xf32>
    %62 = arith.subf %58, %59 : vector<8x128xf32>
    %63 = math.exp %62 : vector<8x128xf32>
    %64 = arith.mulf %61, %46 : vector<8x128xf32>
    %65 = arith.mulf %63, %56 : vector<8x128xf32>
    %66 = arith.addf %64, %65 : vector<8x128xf32>
    %67 = arith.mulf %61, %47 : vector<8x128xf32>
    %68 = arith.addf %67, %63 : vector<8x128xf32>
    %69 = arith.divf %66, %68 : vector<8x128xf32>
    %70 = arith.index_cast %52 : i32 to index
    %c0_44 = arith.constant 0 : index
    %71 = vector.load %arg10[%70, %c0_44] : memref<64x128xf32, #tpu.memory_space<vmem>>, vector<8x128xf32>
    tpu.vector_store %arg10[%70, %c0_44], %69 {strides = array<i32>} : memref<64x128xf32, #tpu.memory_space<vmem>>, vector<8x128xf32>,
    %72 = vector.broadcast %44 : vector<1x128xf32> to vector<8x128xf32>
    %73 = arith.addf %72, %48 : vector<8x128xf32>
    %74 = arith.maximumf %73, %54 : vector<8x128xf32>
    %75 = arith.subf %73, %74 : vector<8x128xf32>
    %76 = math.exp %75 : vector<8x128xf32>
    %77 = arith.subf %54, %74 : vector<8x128xf32>
    %78 = math.exp %77 : vector<8x128xf32>
    %79 = arith.mulf %76, %46 : vector<8x128xf32>
    %80 = arith.mulf %78, %56 : vector<8x128xf32>
    %81 = arith.addf %79, %80 : vector<8x128xf32>
    %82 = arith.mulf %76, %47 : vector<8x128xf32>
    %83 = arith.addf %82, %78 : vector<8x128xf32>
    %c8_i32 = arith.constant 8 : i32
    %84 = arith.addi %50, %c8_i32 : i32
    %85 = tpu.assume_multiple %84, 8 : i32
    %86 = arith.index_cast %85 : i32 to index
    %c0_45 = arith.constant 0 : index
    %87 = vector.load %arg8[%86, %c0_45] : memref<64x128xf32, #tpu.memory_space<vmem>>, vector<8x128xf32>
    %88 = arith.index_cast %85 : i32 to index
    %c0_46 = arith.constant 0 : index
    %89 = vector.load %arg9[%88, %c0_46] : memref<64x128xf32, #tpu.memory_space<vmem>>, vector<8x128xf32>
    %90 = vector.broadcast %45 : vector<1x128xf32> to vector<8x128xf32>
    %91 = arith.addf %90, %87 : vector<8x128xf32>
    %92 = arith.maximumf %74, %91 : vector<8x128xf32>
    %93 = arith.subf %74, %92 : vector<8x128xf32>
    %94 = math.exp %93 : vector<8x128xf32>
    %95 = arith.subf %91, %92 : vector<8x128xf32>
    %96 = math.exp %95 : vector<8x128xf32>
    %97 = arith.mulf %94, %81 : vector<8x128xf32>
    %98 = arith.mulf %96, %89 : vector<8x128xf32>
    %99 = arith.addf %97, %98 : vector<8x128xf32>
    %100 = arith.mulf %94, %83 : vector<8x128xf32>
    %101 = arith.addf %100, %96 : vector<8x128xf32>
    %102 = arith.divf %99, %101 : vector<8x128xf32>
    %103 = arith.index_cast %85 : i32 to index
    %c0_47 = arith.constant 0 : index
    %104 = vector.load %arg10[%103, %c0_47] : memref<64x128xf32, #tpu.memory_space<vmem>>, vector<8x128xf32>
    tpu.vector_store %arg10[%103, %c0_47], %102 {strides = array<i32>} : memref<64x128xf32, #tpu.memory_space<vmem>>, vector<8x128xf32>,
    %105 = vector.broadcast %44 : vector<1x128xf32> to vector<8x128xf32>
    %106 = arith.addf %105, %74 : vector<8x128xf32>
    %107 = arith.maximumf %106, %87 : vector<8x128xf32>
    %108 = arith.subf %106, %107 : vector<8x128xf32>
    %109 = math.exp %108 : vector<8x128xf32>
    %110 = arith.subf %87, %107 : vector<8x128xf32>
    %111 = math.exp %110 : vector<8x128xf32>
    %112 = arith.mulf %109, %81 : vector<8x128xf32>
    %113 = arith.mulf %111, %89 : vector<8x128xf32>
    %114 = arith.addf %112, %113 : vector<8x128xf32>
    %115 = arith.mulf %109, %83 : vector<8x128xf32>
    %116 = arith.addf %115, %111 : vector<8x128xf32>
    %c16_i32 = arith.constant 16 : i32
    %117 = arith.addi %50, %c16_i32 : i32
    %118 = tpu.assume_multiple %117, 8 : i32
    %119 = arith.index_cast %118 : i32 to index
    %c0_48 = arith.constant 0 : index
    %120 = vector.load %arg8[%119, %c0_48] : memref<64x128xf32, #tpu.memory_space<vmem>>, vector<8x128xf32>
    %121 = arith.index_cast %118 : i32 to index
    %c0_49 = arith.constant 0 : index
    %122 = vector.load %arg9[%121, %c0_49] : memref<64x128xf32, #tpu.memory_space<vmem>>, vector<8x128xf32>
    %123 = vector.broadcast %45 : vector<1x128xf32> to vector<8x128xf32>
    %124 = arith.addf %123, %120 : vector<8x128xf32>
    %125 = arith.maximumf %107, %124 : vector<8x128xf32>
    %126 = arith.subf %107, %125 : vector<8x128xf32>
    %127 = math.exp %126 : vector<8x128xf32>
    %128 = arith.subf %124, %125 : vector<8x128xf32>
    %129 = math.exp %128 : vector<8x128xf32>
    %130 = arith.mulf %127, %114 : vector<8x128xf32>
    %131 = arith.mulf %129, %122 : vector<8x128xf32>
    %132 = arith.addf %130, %131 : vector<8x128xf32>
    %133 = arith.mulf %127, %116 : vector<8x128xf32>
    %134 = arith.addf %133, %129 : vector<8x128xf32>
    %135 = arith.divf %132, %134 : vector<8x128xf32>
    %136 = arith.index_cast %118 : i32 to index
    %c0_50 = arith.constant 0 : index
    %137 = vector.load %arg10[%136, %c0_50] : memref<64x128xf32, #tpu.memory_space<vmem>>, vector<8x128xf32>
    tpu.vector_store %arg10[%136, %c0_50], %135 {strides = array<i32>} : memref<64x128xf32, #tpu.memory_space<vmem>>, vector<8x128xf32>,
    %138 = vector.broadcast %44 : vector<1x128xf32> to vector<8x128xf32>
    %139 = arith.addf %138, %107 : vector<8x128xf32>
    %140 = arith.maximumf %139, %120 : vector<8x128xf32>
    %141 = arith.subf %139, %140 : vector<8x128xf32>
    %142 = math.exp %141 : vector<8x128xf32>
    %143 = arith.subf %120, %140 : vector<8x128xf32>
    %144 = math.exp %143 : vector<8x128xf32>
    %145 = arith.mulf %142, %114 : vector<8x128xf32>
    %146 = arith.mulf %144, %122 : vector<8x128xf32>
    %147 = arith.addf %145, %146 : vector<8x128xf32>
    %148 = arith.mulf %142, %116 : vector<8x128xf32>
    %149 = arith.addf %148, %144 : vector<8x128xf32>
    %c24_i32 = arith.constant 24 : i32
    %150 = arith.addi %50, %c24_i32 : i32
    %151 = tpu.assume_multiple %150, 8 : i32
    %152 = arith.index_cast %151 : i32 to index
    %c0_51 = arith.constant 0 : index
    %153 = vector.load %arg8[%152, %c0_51] : memref<64x128xf32, #tpu.memory_space<vmem>>, vector<8x128xf32>
    %154 = arith.index_cast %151 : i32 to index
    %c0_52 = arith.constant 0 : index
    %155 = vector.load %arg9[%154, %c0_52] : memref<64x128xf32, #tpu.memory_space<vmem>>, vector<8x128xf32>
    %156 = vector.broadcast %45 : vector<1x128xf32> to vector<8x128xf32>
    %157 = arith.addf %156, %153 : vector<8x128xf32>
    %158 = arith.maximumf %140, %157 : vector<8x128xf32>
    %159 = arith.subf %140, %158 : vector<8x128xf32>
    %160 = math.exp %159 : vector<8x128xf32>
    %161 = arith.subf %157, %158 : vector<8x128xf32>
    %162 = math.exp %161 : vector<8x128xf32>
    %163 = arith.mulf %160, %147 : vector<8x128xf32>
    %164 = arith.mulf %162, %155 : vector<8x128xf32>
    %165 = arith.addf %163, %164 : vector<8x128xf32>
    %166 = arith.mulf %160, %149 : vector<8x128xf32>
    %167 = arith.addf %166, %162 : vector<8x128xf32>
    %168 = arith.divf %165, %167 : vector<8x128xf32>
    %169 = arith.index_cast %151 : i32 to index
    %c0_53 = arith.constant 0 : index
    %170 = vector.load %arg10[%169, %c0_53] : memref<64x128xf32, #tpu.memory_space<vmem>>, vector<8x128xf32>
    tpu.vector_store %arg10[%169, %c0_53], %168 {strides = array<i32>} : memref<64x128xf32, #tpu.memory_space<vmem>>, vector<8x128xf32>,
    %171 = vector.broadcast %44 : vector<1x128xf32> to vector<8x128xf32>
    %172 = arith.addf %171, %140 : vector<8x128xf32>
    %173 = arith.maximumf %172, %153 : vector<8x128xf32>
    %174 = arith.subf %172, %173 : vector<8x128xf32>
    %175 = math.exp %174 : vector<8x128xf32>
    %176 = arith.subf %153, %173 : vector<8x128xf32>
    %177 = math.exp %176 : vector<8x128xf32>
    %178 = arith.mulf %175, %147 : vector<8x128xf32>
    %179 = arith.mulf %177, %155 : vector<8x128xf32>
    %180 = arith.addf %178, %179 : vector<8x128xf32>
    %181 = arith.mulf %175, %149 : vector<8x128xf32>
    %182 = arith.addf %181, %177 : vector<8x128xf32>
    %c32_i32 = arith.constant 32 : i32
    %183 = arith.addi %50, %c32_i32 : i32
    %184 = tpu.assume_multiple %183, 8 : i32
    %185 = arith.index_cast %184 : i32 to index
    %c0_54 = arith.constant 0 : index
    %186 = vector.load %arg8[%185, %c0_54] : memref<64x128xf32, #tpu.memory_space<vmem>>, vector<8x128xf32>
    %187 = arith.index_cast %184 : i32 to index
    %c0_55 = arith.constant 0 : index
    %188 = vector.load %arg9[%187, %c0_55] : memref<64x128xf32, #tpu.memory_space<vmem>>, vector<8x128xf32>
    %189 = vector.broadcast %45 : vector<1x128xf32> to vector<8x128xf32>
    %190 = arith.addf %189, %186 : vector<8x128xf32>
    %191 = arith.maximumf %173, %190 : vector<8x128xf32>
    %192 = arith.subf %173, %191 : vector<8x128xf32>
    %193 = math.exp %192 : vector<8x128xf32>
    %194 = arith.subf %190, %191 : vector<8x128xf32>
    %195 = math.exp %194 : vector<8x128xf32>
    %196 = arith.mulf %193, %180 : vector<8x128xf32>
    %197 = arith.mulf %195, %188 : vector<8x128xf32>
    %198 = arith.addf %196, %197 : vector<8x128xf32>
    %199 = arith.mulf %193, %182 : vector<8x128xf32>
    %200 = arith.addf %199, %195 : vector<8x128xf32>
    %201 = arith.divf %198, %200 : vector<8x128xf32>
    %202 = arith.index_cast %184 : i32 to index
    %c0_56 = arith.constant 0 : index
    %203 = vector.load %arg10[%202, %c0_56] : memref<64x128xf32, #tpu.memory_space<vmem>>, vector<8x128xf32>
    tpu.vector_store %arg10[%202, %c0_56], %201 {strides = array<i32>} : memref<64x128xf32, #tpu.memory_space<vmem>>, vector<8x128xf32>,
    %204 = vector.broadcast %44 : vector<1x128xf32> to vector<8x128xf32>
    %205 = arith.addf %204, %173 : vector<8x128xf32>
    %206 = arith.maximumf %205, %186 : vector<8x128xf32>
    %207 = arith.subf %205, %206 : vector<8x128xf32>
    %208 = math.exp %207 : vector<8x128xf32>
    %209 = arith.subf %186, %206 : vector<8x128xf32>
    %210 = math.exp %209 : vector<8x128xf32>
    %211 = arith.mulf %208, %180 : vector<8x128xf32>
    %212 = arith.mulf %210, %188 : vector<8x128xf32>
    %213 = arith.addf %211, %212 : vector<8x128xf32>
    %214 = arith.mulf %208, %182 : vector<8x128xf32>
    %215 = arith.addf %214, %210 : vector<8x128xf32>
    %c40_i32 = arith.constant 40 : i32
    %216 = arith.addi %50, %c40_i32 : i32
    %217 = tpu.assume_multiple %216, 8 : i32
    %218 = arith.index_cast %217 : i32 to index
    %c0_57 = arith.constant 0 : index
    %219 = vector.load %arg8[%218, %c0_57] : memref<64x128xf32, #tpu.memory_space<vmem>>, vector<8x128xf32>
    %220 = arith.index_cast %217 : i32 to index
    %c0_58 = arith.constant 0 : index
    %221 = vector.load %arg9[%220, %c0_58] : memref<64x128xf32, #tpu.memory_space<vmem>>, vector<8x128xf32>
    %222 = vector.broadcast %45 : vector<1x128xf32> to vector<8x128xf32>
    %223 = arith.addf %222, %219 : vector<8x128xf32>
    %224 = arith.maximumf %206, %223 : vector<8x128xf32>
    %225 = arith.subf %206, %224 : vector<8x128xf32>
    %226 = math.exp %225 : vector<8x128xf32>
    %227 = arith.subf %223, %224 : vector<8x128xf32>
    %228 = math.exp %227 : vector<8x128xf32>
    %229 = arith.mulf %226, %213 : vector<8x128xf32>
    %230 = arith.mulf %228, %221 : vector<8x128xf32>
    %231 = arith.addf %229, %230 : vector<8x128xf32>
    %232 = arith.mulf %226, %215 : vector<8x128xf32>
    %233 = arith.addf %232, %228 : vector<8x128xf32>
    %234 = arith.divf %231, %233 : vector<8x128xf32>
    %235 = arith.index_cast %217 : i32 to index
    %c0_59 = arith.constant 0 : index
    %236 = vector.load %arg10[%235, %c0_59] : memref<64x128xf32, #tpu.memory_space<vmem>>, vector<8x128xf32>
    tpu.vector_store %arg10[%235, %c0_59], %234 {strides = array<i32>} : memref<64x128xf32, #tpu.memory_space<vmem>>, vector<8x128xf32>,
    %237 = vector.broadcast %44 : vector<1x128xf32> to vector<8x128xf32>
    %238 = arith.addf %237, %206 : vector<8x128xf32>
    %239 = arith.maximumf %238, %219 : vector<8x128xf32>
    %240 = arith.subf %238, %239 : vector<8x128xf32>
    %241 = math.exp %240 : vector<8x128xf32>
    %242 = arith.subf %219, %239 : vector<8x128xf32>
    %243 = math.exp %242 : vector<8x128xf32>
    %244 = arith.mulf %241, %213 : vector<8x128xf32>
    %245 = arith.mulf %243, %221 : vector<8x128xf32>
    %246 = arith.addf %244, %245 : vector<8x128xf32>
    %247 = arith.mulf %241, %215 : vector<8x128xf32>
    %248 = arith.addf %247, %243 : vector<8x128xf32>
    %c48_i32 = arith.constant 48 : i32
    %249 = arith.addi %50, %c48_i32 : i32
    %250 = tpu.assume_multiple %249, 8 : i32
    %251 = arith.index_cast %250 : i32 to index
    %c0_60 = arith.constant 0 : index
    %252 = vector.load %arg8[%251, %c0_60] : memref<64x128xf32, #tpu.memory_space<vmem>>, vector<8x128xf32>
    %253 = arith.index_cast %250 : i32 to index
    %c0_61 = arith.constant 0 : index
    %254 = vector.load %arg9[%253, %c0_61] : memref<64x128xf32, #tpu.memory_space<vmem>>, vector<8x128xf32>
    %255 = vector.broadcast %45 : vector<1x128xf32> to vector<8x128xf32>
    %256 = arith.addf %255, %252 : vector<8x128xf32>
    %257 = arith.maximumf %239, %256 : vector<8x128xf32>
    %258 = arith.subf %239, %257 : vector<8x128xf32>
    %259 = math.exp %258 : vector<8x128xf32>
    %260 = arith.subf %256, %257 : vector<8x128xf32>
    %261 = math.exp %260 : vector<8x128xf32>
    %262 = arith.mulf %259, %246 : vector<8x128xf32>
    %263 = arith.mulf %261, %254 : vector<8x128xf32>
    %264 = arith.addf %262, %263 : vector<8x128xf32>
    %265 = arith.mulf %259, %248 : vector<8x128xf32>
    %266 = arith.addf %265, %261 : vector<8x128xf32>
    %267 = arith.divf %264, %266 : vector<8x128xf32>
    %268 = arith.index_cast %250 : i32 to index
    %c0_62 = arith.constant 0 : index
    %269 = vector.load %arg10[%268, %c0_62] : memref<64x128xf32, #tpu.memory_space<vmem>>, vector<8x128xf32>
    tpu.vector_store %arg10[%268, %c0_62], %267 {strides = array<i32>} : memref<64x128xf32, #tpu.memory_space<vmem>>, vector<8x128xf32>,
    %270 = vector.broadcast %44 : vector<1x128xf32> to vector<8x128xf32>
    %271 = arith.addf %270, %239 : vector<8x128xf32>
    %272 = arith.maximumf %271, %252 : vector<8x128xf32>
    %273 = arith.subf %271, %272 : vector<8x128xf32>
    %274 = math.exp %273 : vector<8x128xf32>
    %275 = arith.subf %252, %272 : vector<8x128xf32>
    %276 = math.exp %275 : vector<8x128xf32>
    %277 = arith.mulf %274, %246 : vector<8x128xf32>
    %278 = arith.mulf %276, %254 : vector<8x128xf32>
    %279 = arith.addf %277, %278 : vector<8x128xf32>
    %280 = arith.mulf %274, %248 : vector<8x128xf32>
    %281 = arith.addf %280, %276 : vector<8x128xf32>
    %c56_i32 = arith.constant 56 : i32
    %282 = arith.addi %50, %c56_i32 : i32
    %283 = tpu.assume_multiple %282, 8 : i32
    %284 = arith.index_cast %283 : i32 to index
    %c0_63 = arith.constant 0 : index
    %285 = vector.load %arg8[%284, %c0_63] : memref<64x128xf32, #tpu.memory_space<vmem>>, vector<8x128xf32>
    %286 = arith.index_cast %283 : i32 to index
    %c0_64 = arith.constant 0 : index
    %287 = vector.load %arg9[%286, %c0_64] : memref<64x128xf32, #tpu.memory_space<vmem>>, vector<8x128xf32>
    %288 = vector.broadcast %45 : vector<1x128xf32> to vector<8x128xf32>
    %289 = arith.addf %288, %285 : vector<8x128xf32>
    %290 = arith.maximumf %272, %289 : vector<8x128xf32>
    %291 = arith.subf %272, %290 : vector<8x128xf32>
    %292 = math.exp %291 : vector<8x128xf32>
    %293 = arith.subf %289, %290 : vector<8x128xf32>
    %294 = math.exp %293 : vector<8x128xf32>
    %295 = arith.mulf %292, %279 : vector<8x128xf32>
    %296 = arith.mulf %294, %287 : vector<8x128xf32>
    %297 = arith.addf %295, %296 : vector<8x128xf32>
    %298 = arith.mulf %292, %281 : vector<8x128xf32>
    %299 = arith.addf %298, %294 : vector<8x128xf32>
    %300 = arith.divf %297, %299 : vector<8x128xf32>
    %301 = arith.index_cast %283 : i32 to index
    %c0_65 = arith.constant 0 : index
    %302 = vector.load %arg10[%301, %c0_65] : memref<64x128xf32, #tpu.memory_space<vmem>>, vector<8x128xf32>
    tpu.vector_store %arg10[%301, %c0_65], %300 {strides = array<i32>} : memref<64x128xf32, #tpu.memory_space<vmem>>, vector<8x128xf32>,
    %303 = vector.broadcast %44 : vector<1x128xf32> to vector<8x128xf32>
    %304 = arith.addf %303, %272 : vector<8x128xf32>
    %305 = arith.maximumf %304, %285 : vector<8x128xf32>
    %306 = arith.subf %304, %305 : vector<8x128xf32>
    %307 = math.exp %306 : vector<8x128xf32>
    %308 = arith.subf %285, %305 : vector<8x128xf32>
    %309 = math.exp %308 : vector<8x128xf32>
    %310 = arith.mulf %307, %279 : vector<8x128xf32>
    %311 = arith.mulf %309, %287 : vector<8x128xf32>
    %312 = arith.addf %310, %311 : vector<8x128xf32>
    %313 = arith.mulf %307, %281 : vector<8x128xf32>
    %314 = arith.addf %313, %309 : vector<8x128xf32>
    %c1_i32 = arith.constant 1 : i32
    %c0_66 = arith.constant 0 : index
    %c0_67 = arith.constant 0 : index
    %315 = vector.load %arg12[%c0_66, %c0_67] : memref<8x128xf32, #tpu.memory_space<vmem>>, vector<8x128xf32>
    tpu.vector_store %arg12[%c0_66, %c0_67], %312 {strides = array<i32>} : memref<8x128xf32, #tpu.memory_space<vmem>>, vector<8x128xf32>,
    %c0_68 = arith.constant 0 : index
    %c0_69 = arith.constant 0 : index
    %316 = vector.load %arg13[%c0_68, %c0_69] : memref<8x128xf32, #tpu.memory_space<vmem>>, vector<8x128xf32>
    tpu.vector_store %arg13[%c0_68, %c0_69], %314 {strides = array<i32>} : memref<8x128xf32, #tpu.memory_space<vmem>>, vector<8x128xf32>,
    %c0_70 = arith.constant 0 : index
    %c0_71 = arith.constant 0 : index
    %317 = vector.load %arg14[%c0_70, %c0_71] : memref<8x128xf32, #tpu.memory_space<vmem>>, vector<8x128xf32>
    tpu.vector_store %arg14[%c0_70, %c0_71], %305 {strides = array<i32>} : memref<8x128xf32, #tpu.memory_space<vmem>>, vector<8x128xf32>,
    %c0_72 = arith.constant 0 : index
    %c0_73 = arith.constant 0 : index
    %318 = vector.load %arg11[%c0_72, %c0_73] : memref<64x128xf32, #tpu.memory_space<vmem>>, vector<64x128xf32>
    %319 = arith.negf %318 : vector<64x128xf32>
    %320 = math.exp %319 : vector<64x128xf32>
    %cst_74 = arith.constant 1.000000e+00 : f32
    %321 = vector.broadcast %cst_74 : f32 to vector<64x128xf32>
    %322 = arith.addf %321, %320 : vector<64x128xf32>
    %323 = arith.divf %321, %322 : vector<64x128xf32>
    %c0_75 = arith.constant 0 : index
    %c0_76 = arith.constant 0 : index
    %324 = vector.load %arg10[%c0_75, %c0_76] : memref<64x128xf32, #tpu.memory_space<vmem>>, vector<64x128xf32>
    %325 = arith.mulf %323, %324 : vector<64x128xf32>
    %c0_77 = arith.constant 0 : index
    %c0_78 = arith.constant 0 : index
    %326 = vector.load %arg6[%c0_77, %c0_78] : memref<128x128xf32, #tpu.memory_space<vmem>>, vector<128x128xf32>
    %cst_79 = arith.constant dense<0.000000e+00> : vector<64x128xf32>
    %327 = tpu.matmul %325, %326, %cst_79 {dimension_numbers = #tpu.dot_dimension_numbers<[1], [0], [0], [1], [0, 0, 1, 1], [], []>} : vector<64x128xf32>, vector<128x128xf32>, vector<64x128xf32> -> vector<64x128xf32>
    %c0_80 = arith.constant 0 : index
    %c0_81 = arith.constant 0 : index
    %328 = vector.load %arg7[%c0_80, %c0_81] : memref<64x128xf32, #tpu.memory_space<vmem>>, vector<64x128xf32>
    tpu.vector_store %arg7[%c0_80, %c0_81], %327 {strides = array<i32>} : memref<64x128xf32, #tpu.memory_space<vmem>>, vector<64x128xf32>,
    return
  }
  func.func @transform_0(%arg0: i32) -> (i32, i32) {
    %c0_i32 = arith.constant 0 : i32
    %c0_i32_0 = arith.constant 0 : i32
    return %arg0, %c0_i32 : i32, i32
  }
  func.func @transform_1(%arg0: i32) -> (i32, i32) {
    %c0_i32 = arith.constant 0 : i32
    %c0_i32_0 = arith.constant 0 : i32
    %c0_i32_1 = arith.constant 0 : i32
    return %c0_i32, %c0_i32_0 : i32, i32
  }
  func.func @transform_2(%arg0: i32) -> (i32, i32) {
    %c0_i32 = arith.constant 0 : i32
    %c0_i32_0 = arith.constant 0 : i32
    %c0_i32_1 = arith.constant 0 : i32
    return %c0_i32, %c0_i32_0 : i32, i32
  }
  func.func @transform_3(%arg0: i32) -> (i32, i32) {
    %c0_i32 = arith.constant 0 : i32
    %c0_i32_0 = arith.constant 0 : i32
    %c0_i32_1 = arith.constant 0 : i32
    return %c0_i32, %c0_i32_0 : i32, i32
  }
  func.func @transform_4(%arg0: i32) -> (i32, i32) {
    %c0_i32 = arith.constant 0 : i32
    %c0_i32_0 = arith.constant 0 : i32
    %c0_i32_1 = arith.constant 0 : i32
    return %c0_i32, %c0_i32_0 : i32, i32
  }
  func.func @transform_5(%arg0: i32) -> (i32, i32) {
    %c0_i32 = arith.constant 0 : i32
    %c0_i32_0 = arith.constant 0 : i32
    %c0_i32_1 = arith.constant 0 : i32
    return %c0_i32, %c0_i32_0 : i32, i32
  }
  func.func @transform_6(%arg0: i32) -> (i32, i32) {
    %c0_i32 = arith.constant 0 : i32
    %c0_i32_0 = arith.constant 0 : i32
    return %arg0, %c0_i32 : i32, i32
  }
}

</mosaic_0001>

<llo_original>
// kernel: tpu_custom_call.1
$region0: #{tpu_custom_call.1}
  #allocation0 [shape = 'u32[]', space=smem, size = 0x4, offset = 0x4, fixed_abs, tag = 'smem constant byte address 0x4 - core index']
  #allocation1 [shape = 'u32[144,128]{1,0:T(1,128)}', space=vmem, size = 0x12000, scoped, tag = 'internal scratch']
  #allocation2 [shape = 'f32[64,128]{1,0:T(8,128)}', space=vmem, size = 0x8000, scoped, tag = 'scratch operand']
  #allocation3 [shape = 'f32[64,128]{1,0:T(8,128)}', space=vmem, size = 0x8000, scoped, tag = 'scratch operand']
  #allocation4 [shape = 'f32[64,128]{1,0:T(8,128)}', space=vmem, size = 0x8000, scoped, tag = 'scratch operand']
  #allocation5 [shape = 'f32[64,128]{1,0:T(8,128)}', space=vmem, size = 0x8000, scoped, tag = 'scratch operand']
  #allocation6 [shape = 'f32[8,128]{1,0:T(8,128)}', space=vmem, size = 0x1000, scoped, tag = 'scratch operand']
  #allocation7 [shape = 'f32[8,128]{1,0:T(8,128)}', space=vmem, size = 0x1000, scoped, tag = 'scratch operand']
  #allocation8 [shape = 'f32[8,128]{1,0:T(8,128)}', space=vmem, size = 0x1000, scoped, tag = 'scratch operand']
  #allocation9 [shape = 'f32[8,128]{1,0:T(8,128)}', space=vmem, size = 0x1000, scoped, tag = 'scratch operand']
  %s0 = inlined_call_operand.hbm [shape: f32[64,128], index: 0, kind: input, shape index: {}]
  %s1 = inlined_call_operand.hbm [shape: f32[8,128], index: 1, kind: input, shape index: {}]
  %s2 = inlined_call_operand.hbm [shape: f32[128,128], index: 2, kind: input, shape index: {}]
  %s3 = inlined_call_operand.hbm [shape: f32[128,128], index: 3, kind: input, shape index: {}]
  %s4 = inlined_call_operand.hbm [shape: f32[128,128], index: 4, kind: input, shape index: {}]
  %s5 = inlined_call_operand.hbm [shape: f32[128,128], index: 5, kind: input, shape index: {}]
  %s6 = inlined_call_operand.hbm [shape: f32[64,128], index: 6, kind: output, shape index: {}]
  %s7 = sld [smem:[#allocation0]]
  $region62: #{tpu_custom_call.1} parent=0
    _
  %s9 = ssub.s32 1, %s7
  %s10 = scalar_select 0, %s9, %s7
  $region1: #{tpu_custom_call.1} parent=0
    #allocation10 [shape = 'u8[32768]{0}', space=vmem, size = 0x8000, scoped, tag = 'input window, operand 0, single buffered']
    #allocation11 [shape = 's32[1]{0}', space=sflag, size = 0x4, scoped, tag = 'scoped memory for tpu_custom_call.1']
    #allocation12 [shape = 's32[1]{0}', space=sflag, size = 0x4, scoped, tag = 'scoped memory for tpu_custom_call.1']
    #allocation13 [shape = 'u8[4096]{0}', space=vmem, size = 0x1000, scoped, tag = 'input window, operand 1, single buffered']
    #allocation14 [shape = 's32[1]{0}', space=sflag, size = 0x4, scoped, tag = 'scoped memory for tpu_custom_call.1']
    #allocation15 [shape = 'u8[65536]{0}', space=vmem, size = 0x10000, scoped, tag = 'input window, operand 2, single buffered']
    #allocation16 [shape = 'u8[65536]{0}', space=vmem, size = 0x10000, scoped, tag = 'input window, operand 3, single buffered']
    #allocation17 [shape = 's32[1]{0}', space=sflag, size = 0x4, scoped, tag = 'scoped memory for tpu_custom_call.1']
    #allocation18 [shape = 'u8[65536]{0}', space=vmem, size = 0x10000, scoped, tag = 'input window, operand 4, single buffered']
    #allocation19 [shape = 'u8[65536]{0}', space=vmem, size = 0x10000, scoped, tag = 'input window, operand 5, single buffered']
    #allocation20 [shape = 's32[1]{0}', space=sflag, size = 0x4, scoped, tag = 'scoped memory for tpu_custom_call.1']
    #allocation21 [shape = 'u8[32768]{0}', space=vmem, size = 0x8000, scoped, tag = 'output window, operand 0, single buffered']
    %11 = vsyncpa [#allocation11], 0
    %12 = vsyncpa [#allocation14], 0
    %13 = vsyncpa [#allocation17], 0
    %14 = vsyncpa [#allocation20], 0
    %15 = vsyncpa [#allocation12], 0
    // Predicated region
    $region2: #{tpu_custom_call.1} parent=1 // pred_check
      _
    $region3: #{tpu_custom_call.1} parent=1 // pred_check_branch
      %17 = sbr.rel (0) target = $region5
    $region4: #{tpu_custom_call.1} parent=1 // pred_region
      %s19 = ssub.s32 1024, 1024
      %20 = vsyncadd [#allocation11], %s19
      %s21 = sshll.u32 [#allocation10], 4
      %s22 = int_to_ptr.vmem [resolvable:$true] %s21
      %27 = dma.hbm_to_vmem [thread:$0]  %s0, 1024, %s22, [#allocation11], 128, 128, 8
    $region5: #{tpu_custom_call.1} parent=1 // pred_fallthru
      _
    // Predicated region
    $region6: #{tpu_custom_call.1} parent=1 // pred_check
      _
    $region7: #{tpu_custom_call.1} parent=1 // pred_check_branch
      %29 = sbr.rel (0) target = $region9
    $region8: #{tpu_custom_call.1} parent=1 // pred_region
      %s31 = ssub.s32 128, 128
      %32 = vsyncadd [#allocation14], %s31
      %s34 = sshll.u32 [#allocation13], 4
      %s35 = int_to_ptr.vmem [resolvable:$true] %s34
      %37 = dma.hbm_to_vmem [thread:$0]  %s1, 128, %s35, [#allocation14]
    $region9: #{tpu_custom_call.1} parent=1 // pred_fallthru
      _
    // Predicated region
    $region10: #{tpu_custom_call.1} parent=1 // pred_check
      _
    $region11: #{tpu_custom_call.1} parent=1 // pred_check_branch
      %39 = sbr.rel (0) target = $region13
    $region12: #{tpu_custom_call.1} parent=1 // pred_region
      %s41 = ssub.s32 2048, 2048
      %42 = vsyncadd [#allocation14], %s41
      %s43 = sshll.u32 [#allocation15], 4
      %s44 = int_to_ptr.vmem [resolvable:$true] %s43
      %49 = dma.hbm_to_vmem [thread:$0]  %s2, 2048, %s44, [#allocation14], 128, 128, 8
    $region13: #{tpu_custom_call.1} parent=1 // pred_fallthru
      _
    // Predicated region
    $region14: #{tpu_custom_call.1} parent=1 // pred_check
      _
    $region15: #{tpu_custom_call.1} parent=1 // pred_check_branch
      %51 = sbr.rel (0) target = $region17
    $region16: #{tpu_custom_call.1} parent=1 // pred_region
      %s53 = ssub.s32 2048, 2048
      %54 = vsyncadd [#allocation17], %s53
      %s55 = sshll.u32 [#allocation16], 4
      %s56 = int_to_ptr.vmem [resolvable:$true] %s55
      %61 = dma.hbm_to_vmem [thread:$0]  %s3, 2048, %s56, [#allocation17], 128, 128, 8
    $region17: #{tpu_custom_call.1} parent=1 // pred_fallthru
      _
    // Predicated region
    $region18: #{tpu_custom_call.1} parent=1 // pred_check
      _
    $region19: #{tpu_custom_call.1} parent=1 // pred_check_branch
      %63 = sbr.rel (0) target = $region21
    $region20: #{tpu_custom_call.1} parent=1 // pred_region
      %s65 = ssub.s32 2048, 2048
      %66 = vsyncadd [#allocation17], %s65
      %s67 = sshll.u32 [#allocation18], 4
      %s68 = int_to_ptr.vmem [resolvable:$true] %s67
      %73 = dma.hbm_to_vmem [thread:$0]  %s4, 2048, %s68, [#allocation17], 128, 128, 8
    $region21: #{tpu_custom_call.1} parent=1 // pred_fallthru
      _
    // Predicated region
    $region22: #{tpu_custom_call.1} parent=1 // pred_check
      _
    $region23: #{tpu_custom_call.1} parent=1 // pred_check_branch
      %75 = sbr.rel (0) target = $region25
    $region24: #{tpu_custom_call.1} parent=1 // pred_region
      %s77 = ssub.s32 2048, 2048
      %78 = vsyncadd [#allocation20], %s77
      %s79 = sshll.u32 [#allocation19], 4
      %s80 = int_to_ptr.vmem [resolvable:$true] %s79
      %85 = dma.hbm_to_vmem [thread:$0]  %s5, 2048, %s80, [#allocation20], 128, 128, 8
    $region25: #{tpu_custom_call.1} parent=1 // pred_fallthru
      _
    // Predicated region
    $region26: #{tpu_custom_call.1} parent=1 // pred_check
      _
    $region27: #{tpu_custom_call.1} parent=1 // pred_check_branch
      %87 = sbr.rel (0) target = $region29
    $region28: #{tpu_custom_call.1} parent=1 // pred_region
      %88 = dma.done [#allocation11], 1024
    $region29: #{tpu_custom_call.1} parent=1 // pred_fallthru
      _
    // Predicated region
    $region30: #{tpu_custom_call.1} parent=1 // pred_check
      _
    $region31: #{tpu_custom_call.1} parent=1 // pred_check_branch
      %90 = sbr.rel (0) target = $region33
    $region32: #{tpu_custom_call.1} parent=1 // pred_region
      %91 = dma.done [#allocation14], 128
    $region33: #{tpu_custom_call.1} parent=1 // pred_fallthru
      _
    // Predicated region
    $region34: #{tpu_custom_call.1} parent=1 // pred_check
      _
    $region35: #{tpu_custom_call.1} parent=1 // pred_check_branch
      %93 = sbr.rel (0) target = $region37
    $region36: #{tpu_custom_call.1} parent=1 // pred_region
      %94 = dma.done [#allocation14], 2048
    $region37: #{tpu_custom_call.1} parent=1 // pred_fallthru
      _
    // Predicated region
    $region38: #{tpu_custom_call.1} parent=1 // pred_check
      _
    $region39: #{tpu_custom_call.1} parent=1 // pred_check_branch
      %96 = sbr.rel (0) target = $region41
    $region40: #{tpu_custom_call.1} parent=1 // pred_region
      %97 = dma.done [#allocation17], 2048
    $region41: #{tpu_custom_call.1} parent=1 // pred_fallthru
      _
    // Predicated region
    $region42: #{tpu_custom_call.1} parent=1 // pred_check
      _
    $region43: #{tpu_custom_call.1} parent=1 // pred_check_branch
      %99 = sbr.rel (0) target = $region45
    $region44: #{tpu_custom_call.1} parent=1 // pred_region
      %100 = dma.done [#allocation17], 2048
    $region45: #{tpu_custom_call.1} parent=1 // pred_fallthru
      _
    // Predicated region
    $region46: #{tpu_custom_call.1} parent=1 // pred_check
      _
    $region47: #{tpu_custom_call.1} parent=1 // pred_check_branch
      %102 = sbr.rel (0) target = $region49
    $region48: #{tpu_custom_call.1} parent=1 // pred_region
      %103 = dma.done [#allocation20], 2048
    $region49: #{tpu_custom_call.1} parent=1 // pred_fallthru
      _
    %p104 = scmp.eq.s32.totalorder 0, 0
    // Predicated region
    $region50: #{tpu_custom_call.1} parent=1 // pred_check
      %p105 = pneg %p104
    $region51: #{tpu_custom_call.1} parent=1 // pred_check_branch
      %107 = sbr.rel (%p105) target = $region53
    $region52: #{tpu_custom_call.1} parent=1 // pred_region
      %108 = vst [vmem:[#allocation6] sm:$0xff] 0.0
      %109 = vst [vmem:[#allocation7] sm:$0xff] 0.0
      %110 = vst [vmem:[#allocation8] sm:$0xff] -1e+38
      %111 = vst [vmem:[#allocation9] sm:$0xff] 0.0
    $region53: #{tpu_custom_call.1} parent=1 // pred_fallthru
      _
    %v112 = vld [vmem:[#allocation10] sm:$0xff]
    %v113 = vld [vmem:[#allocation10 + $0x8] sm:$0xff]
    %v114 = vld [vmem:[#allocation10 + $0x10] sm:$0xff]
    %v115 = vld [vmem:[#allocation10 + $0x18] sm:$0xff]
    %v116 = vld [vmem:[#allocation10 + $0x20] sm:$0xff]
    %v117 = vld [vmem:[#allocation10 + $0x28] sm:$0xff]
    %v118 = vld [vmem:[#allocation10 + $0x30] sm:$0xff]
    %v119 = vld [vmem:[#allocation10 + $0x38] sm:$0xff]
    %v120 = vld [vmem:[#allocation9] sm:$0xff]
    %121 = vst [vmem:[#allocation4] sm:$0xff] %v120
    %122 = vst [vmem:[#allocation4 + $0x8] sm:$0xff] %v112
    %123 = vst [vmem:[#allocation4 + $0x10] sm:$0xff] %v113
    %124 = vst [vmem:[#allocation4 + $0x18] sm:$0xff] %v114
    %125 = vst [vmem:[#allocation4 + $0x20] sm:$0xff] %v115
    %126 = vst [vmem:[#allocation4 + $0x28] sm:$0xff] %v116
    %127 = vst [vmem:[#allocation4 + $0x30] sm:$0xff] %v117
    %128 = vst [vmem:[#allocation4 + $0x38] sm:$0xff] %v118
    %129 = vst [vmem:[#allocation9] sm:$0xff] %v119
    %v130 = vld [vmem:[#allocation4] sm:$0xff]
    %v131 = vld [vmem:[#allocation4 + $0x8] sm:$0xff]
    %v132 = vld [vmem:[#allocation4 + $0x10] sm:$0xff]
    %v133 = vld [vmem:[#allocation4 + $0x18] sm:$0xff]
    %v134 = vld [vmem:[#allocation4 + $0x20] sm:$0xff]
    %v135 = vld [vmem:[#allocation4 + $0x28] sm:$0xff]
    %v136 = vld [vmem:[#allocation4 + $0x30] sm:$0xff]
    %v137 = vld [vmem:[#allocation4 + $0x38] sm:$0xff]
    %v138 = vld [vmem:[#allocation13 + $0x2] sm:$0x1]
    %v139 = vlaneseq
    %v140 = vshrl.u32 %v139, 7
    %v141 = vsub.s32 0, %v140
    %v142 = vrot.slane %v138, %v141
    %v143 = vmul.f32 %v112, %v142
    %v144 = vmul.f32 %v113, %v142
    %v145 = vmul.f32 %v114, %v142
    %v146 = vmul.f32 %v115, %v142
    %v147 = vmul.f32 %v116, %v142
    %v148 = vmul.f32 %v117, %v142
    %v149 = vmul.f32 %v118, %v142
    %v150 = vmul.f32 %v119, %v142
    %v151 = vsub.f32 1.0, %v138
    %v152 = vlaneseq
    %v153 = vshrl.u32 %v152, 7
    %v154 = vsub.s32 0, %v153
    %v155 = vrot.slane %v151, %v154
    %v156 = vmul.f32 %v130, %v155
    %v157 = vmul.f32 %v131, %v155
    %v158 = vmul.f32 %v132, %v155
    %v159 = vmul.f32 %v133, %v155
    %v160 = vmul.f32 %v134, %v155
    %v161 = vmul.f32 %v135, %v155
    %v162 = vmul.f32 %v136, %v155
    %v163 = vmul.f32 %v137, %v155
    %v164 = vadd.f32 %v143, %v156
    %v165 = vadd.f32 %v144, %v157
    %v166 = vadd.f32 %v145, %v158
    %v167 = vadd.f32 %v146, %v159
    %v168 = vadd.f32 %v147, %v160
    %v169 = vadd.f32 %v148, %v161
    %v170 = vadd.f32 %v149, %v162
    %v171 = vadd.f32 %v150, %v163
    %v172 = vld [vmem:[#allocation15] sm:$0xff]
    %v173 = vld [vmem:[#allocation15 + $0x8] sm:$0xff]
    %v174 = vld [vmem:[#allocation15 + $0x10] sm:$0xff]
    %v175 = vld [vmem:[#allocation15 + $0x18] sm:$0xff]
    %v176 = vld [vmem:[#allocation15 + $0x20] sm:$0xff]
    %v177 = vld [vmem:[#allocation15 + $0x28] sm:$0xff]
    %v178 = vld [vmem:[#allocation15 + $0x30] sm:$0xff]
    %v179 = vld [vmem:[#allocation15 + $0x38] sm:$0xff]
    %v180 = vld [vmem:[#allocation15 + $0x40] sm:$0xff]
    %v181 = vld [vmem:[#allocation15 + $0x48] sm:$0xff]
    %v182 = vld [vmem:[#allocation15 + $0x50] sm:$0xff]
    %v183 = vld [vmem:[#allocation15 + $0x58] sm:$0xff]
    %v184 = vld [vmem:[#allocation15 + $0x60] sm:$0xff]
    %v185 = vld [vmem:[#allocation15 + $0x68] sm:$0xff]
    %v186 = vld [vmem:[#allocation15 + $0x70] sm:$0xff]
    %v187 = vld [vmem:[#allocation15 + $0x78] sm:$0xff]
    %188 = vmatprep.subr.mxu0 0.0
    %189 = vmatpush1.msra.mxu0 %v172
    %190 = vmatprep.subr.mxu0 0.0
    %191 = vmatpush1.msra.mxu0 %v173
    %192 = vmatprep.subr.mxu0 0.0
    %193 = vmatpush1.msra.mxu0 %v174
    %194 = vmatprep.subr.mxu0 0.0
    %195 = vmatpush1.msra.mxu0 %v175
    %196 = vmatprep.subr.mxu0 0.0
    %197 = vmatpush1.msra.mxu0 %v176
    %198 = vmatprep.subr.mxu0 0.0
    %199 = vmatpush1.msra.mxu0 %v177
    %200 = vmatprep.subr.mxu0 0.0
    %201 = vmatpush1.msra.mxu0 %v178
    %202 = vmatprep.subr.mxu0 0.0
    %203 = vmatpush1.msra.mxu0 %v179
    %204 = vmatprep.subr.mxu0 0.0
    %205 = vmatpush1.msra.mxu0 %v180
    %206 = vmatprep.subr.mxu0 0.0
    %207 = vmatpush1.msra.mxu0 %v181
    %208 = vmatprep.subr.mxu0 0.0
    %209 = vmatpush1.msra.mxu0 %v182
    %210 = vmatprep.subr.mxu0 0.0
    %211 = vmatpush1.msra.mxu0 %v183
    %212 = vmatprep.subr.mxu0 0.0
    %213 = vmatpush1.msra.mxu0 %v184
    %214 = vmatprep.subr.mxu0 0.0
    %215 = vmatpush1.msra.mxu0 %v185
    %216 = vmatprep.subr.mxu0 0.0
    %217 = vmatpush1.msra.mxu0 %v186
    %218 = vmatprep.subr.mxu0 0.0
    %219 = vmatpush1.msra.mxu0 %v187
    %220 = vmatprep.subr.mxu0 0.0
    %221 = vmatpush1.msra.mxu0 0.0
    %222 = vmatprep.subr.mxu0 0.0
    %223 = vmatpush1.msra.mxu0 0.0
    %224 = vmatprep.subr.mxu0 0.0
    %225 = vmatpush1.msra.mxu0 0.0
    %226 = vmatprep.subr.mxu0 0.0
    %227 = vmatpush1.msra.mxu0 0.0
    %228 = vmatprep.subr.mxu0 0.0
    %229 = vmatpush1.msra.mxu0 0.0
    %230 = vmatprep.subr.mxu0 0.0
    %231 = vmatpush1.msra.mxu0 0.0
    %232 = vmatprep.subr.mxu0 0.0
    %233 = vmatpush1.msra.mxu0 0.0
    %234 = vmatprep.subr.mxu0 0.0
    %235 = vmatpush1.msra.mxu0 0.0
    %236 = vmatprep.subr.mxu0 0.0
    %237 = vmatpush1.msra.mxu0 0.0
    %238 = vmatprep.subr.mxu0 0.0
    %239 = vmatpush1.msra.mxu0 0.0
    %240 = vmatprep.subr.mxu0 0.0
    %241 = vmatpush1.msra.mxu0 0.0
    %242 = vmatprep.subr.mxu0 0.0
    %243 = vmatpush1.msra.mxu0 0.0
    %244 = vmatprep.subr.mxu0 0.0
    %245 = vmatpush1.msra.mxu0 0.0
    %246 = vmatprep.subr.mxu0 0.0
    %247 = vmatpush1.msra.mxu0 0.0
    %248 = vmatprep.subr.mxu0 0.0
    %249 = vmatpush1.msra.mxu0 0.0
    %250 = vmatprep.subr.mxu0 0.0
    %251 = vmatpush1.msra.mxu0 0.0
    %252 = vmatprep.mubr.f32.mxu0 0.0
    %253 = vmatmul.mubr.f32.gmra.mrb[0].mxu0 %v164
    %v254 = vpop.f32.mrb[0].mxu0
    %v255 = vadd.f32 0.0, %v254
    %v256 = vpop.f32.mrb[0].mxu0
    %257 = vmatprep.mubr.f32.mxu0 0.0
    %258 = vmatmul.mubr.f32.gmra.mrb[0].mxu0 %v165
    %v259 = vpop.f32.mrb[0].mxu0
    %v260 = vadd.f32 0.0, %v259
    %v261 = vpop.f32.mrb[0].mxu0
    %262 = vmatprep.mubr.f32.mxu0 0.0
    %263 = vmatmul.mubr.f32.gmra.mrb[0].mxu0 %v166
    %v264 = vpop.f32.mrb[0].mxu0
    %v265 = vadd.f32 0.0, %v264
    %v266 = vpop.f32.mrb[0].mxu0
    %267 = vmatprep.mubr.f32.mxu0 0.0
    %268 = vmatmul.mubr.f32.gmra.mrb[0].mxu0 %v167
    %v269 = vpop.f32.mrb[0].mxu0
    %v270 = vadd.f32 0.0, %v269
    %v271 = vpop.f32.mrb[0].mxu0
    %272 = vmatprep.mubr.f32.mxu0 0.0
    %273 = vmatmul.mubr.f32.gmra.mrb[0].mxu0 %v168
    %v274 = vpop.f32.mrb[0].mxu0
    %v275 = vadd.f32 0.0, %v274
    %v276 = vpop.f32.mrb[0].mxu0
    %277 = vmatprep.mubr.f32.mxu0 0.0
    %278 = vmatmul.mubr.f32.gmra.mrb[0].mxu0 %v169
    %v279 = vpop.f32.mrb[0].mxu0
    %v280 = vadd.f32 0.0, %v279
    %v281 = vpop.f32.mrb[0].mxu0
    %282 = vmatprep.mubr.f32.mxu0 0.0
    %283 = vmatmul.mubr.f32.gmra.mrb[0].mxu0 %v170
    %v284 = vpop.f32.mrb[0].mxu0
    %v285 = vadd.f32 0.0, %v284
    %v286 = vpop.f32.mrb[0].mxu0
    %287 = vmatprep.mubr.f32.mxu0 0.0
    %288 = vmatmul.mubr.f32.gmra.mrb[0].mxu0 %v171
    %v289 = vpop.f32.mrb[0].mxu0
    %v290 = vadd.f32 0.0, %v289
    %v291 = vpop.f32.mrb[0].mxu0
    %292 = vdwg.mxu0
    %293 = vst [vmem:[#allocation2] sm:$0xff] %v255
    %294 = vst [vmem:[#allocation2 + $0x8] sm:$0xff] %v260
    %295 = vst [vmem:[#allocation2 + $0x10] sm:$0xff] %v265
    %296 = vst [vmem:[#allocation2 + $0x18] sm:$0xff] %v270
    %297 = vst [vmem:[#allocation2 + $0x20] sm:$0xff] %v275
    %298 = vst [vmem:[#allocation2 + $0x28] sm:$0xff] %v280
    %299 = vst [vmem:[#allocation2 + $0x30] sm:$0xff] %v285
    %300 = vst [vmem:[#allocation2 + $0x38] sm:$0xff] %v290
    %v301 = vld [vmem:[#allocation13 + $0x3] sm:$0x1]
    %v302 = vlaneseq
    %v303 = vshrl.u32 %v302, 7
    %v304 = vsub.s32 0, %v303
    %v305 = vrot.slane %v301, %v304
    %v306 = vmul.f32 %v112, %v305
    %v307 = vmul.f32 %v113, %v305
    %v308 = vmul.f32 %v114, %v305
    %v309 = vmul.f32 %v115, %v305
    %v310 = vmul.f32 %v116, %v305
    %v311 = vmul.f32 %v117, %v305
    %v312 = vmul.f32 %v118, %v305
    %v313 = vmul.f32 %v119, %v305
    %v314 = vsub.f32 1.0, %v301
    %v315 = vlaneseq
    %v316 = vshrl.u32 %v315, 7
    %v317 = vsub.s32 0, %v316
    %v318 = vrot.slane %v314, %v317
    %v319 = vmul.f32 %v130, %v318
    %v320 = vmul.f32 %v131, %v318
    %v321 = vmul.f32 %v132, %v318
    %v322 = vmul.f32 %v133, %v318
    %v323 = vmul.f32 %v134, %v318
    %v324 = vmul.f32 %v135, %v318
    %v325 = vmul.f32 %v136, %v318
    %v326 = vmul.f32 %v137, %v318
    %v327 = vadd.f32 %v306, %v319
    %v328 = vadd.f32 %v307, %v320
    %v329 = vadd.f32 %v308, %v321
    %v330 = vadd.f32 %v309, %v322
    %v331 = vadd.f32 %v310, %v323
    %v332 = vadd.f32 %v311, %v324
    %v333 = vadd.f32 %v312, %v325
    %v334 = vadd.f32 %v313, %v326
    %v335 = vld [vmem:[#allocation16] sm:$0xff]
    %v336 = vld [vmem:[#allocation16 + $0x8] sm:$0xff]
    %v337 = vld [vmem:[#allocation16 + $0x10] sm:$0xff]
    %v338 = vld [vmem:[#allocation16 + $0x18] sm:$0xff]
    %v339 = vld [vmem:[#allocation16 + $0x20] sm:$0xff]
    %v340 = vld [vmem:[#allocation16 + $0x28] sm:$0xff]
    %v341 = vld [vmem:[#allocation16 + $0x30] sm:$0xff]
    %v342 = vld [vmem:[#allocation16 + $0x38] sm:$0xff]
    %v343 = vld [vmem:[#allocation16 + $0x40] sm:$0xff]
    %v344 = vld [vmem:[#allocation16 + $0x48] sm:$0xff]
    %v345 = vld [vmem:[#allocation16 + $0x50] sm:$0xff]
    %v346 = vld [vmem:[#allocation16 + $0x58] sm:$0xff]
    %v347 = vld [vmem:[#allocation16 + $0x60] sm:$0xff]
    %v348 = vld [vmem:[#allocation16 + $0x68] sm:$0xff]
    %v349 = vld [vmem:[#allocation16 + $0x70] sm:$0xff]
    %v350 = vld [vmem:[#allocation16 + $0x78] sm:$0xff]
    %351 = vmatprep.subr.mxu0 0.0
    %352 = vmatpush1.msra.mxu0 %v335
    %353 = vmatprep.subr.mxu0 0.0
    %354 = vmatpush1.msra.mxu0 %v336
    %355 = vmatprep.subr.mxu0 0.0
    %356 = vmatpush1.msra.mxu0 %v337
    %357 = vmatprep.subr.mxu0 0.0
    %358 = vmatpush1.msra.mxu0 %v338
    %359 = vmatprep.subr.mxu0 0.0
    %360 = vmatpush1.msra.mxu0 %v339
    %361 = vmatprep.subr.mxu0 0.0
    %362 = vmatpush1.msra.mxu0 %v340
    %363 = vmatprep.subr.mxu0 0.0
    %364 = vmatpush1.msra.mxu0 %v341
    %365 = vmatprep.subr.mxu0 0.0
    %366 = vmatpush1.msra.mxu0 %v342
    %367 = vmatprep.subr.mxu0 0.0
    %368 = vmatpush1.msra.mxu0 %v343
    %369 = vmatprep.subr.mxu0 0.0
    %370 = vmatpush1.msra.mxu0 %v344
    %371 = vmatprep.subr.mxu0 0.0
    %372 = vmatpush1.msra.mxu0 %v345
    %373 = vmatprep.subr.mxu0 0.0
    %374 = vmatpush1.msra.mxu0 %v346
    %375 = vmatprep.subr.mxu0 0.0
    %376 = vmatpush1.msra.mxu0 %v347
    %377 = vmatprep.subr.mxu0 0.0
    %378 = vmatpush1.msra.mxu0 %v348
    %379 = vmatprep.subr.mxu0 0.0
    %380 = vmatpush1.msra.mxu0 %v349
    %381 = vmatprep.subr.mxu0 0.0
    %382 = vmatpush1.msra.mxu0 %v350
    %383 = vmatprep.subr.mxu0 0.0
    %384 = vmatpush1.msra.mxu0 0.0
    %385 = vmatprep.subr.mxu0 0.0
    %386 = vmatpush1.msra.mxu0 0.0
    %387 = vmatprep.subr.mxu0 0.0
    %388 = vmatpush1.msra.mxu0 0.0
    %389 = vmatprep.subr.mxu0 0.0
    %390 = vmatpush1.msra.mxu0 0.0
    %391 = vmatprep.subr.mxu0 0.0
    %392 = vmatpush1.msra.mxu0 0.0
    %393 = vmatprep.subr.mxu0 0.0
    %394 = vmatpush1.msra.mxu0 0.0
    %395 = vmatprep.subr.mxu0 0.0
    %396 = vmatpush1.msra.mxu0 0.0
    %397 = vmatprep.subr.mxu0 0.0
    %398 = vmatpush1.msra.mxu0 0.0
    %399 = vmatprep.subr.mxu0 0.0
    %400 = vmatpush1.msra.mxu0 0.0
    %401 = vmatprep.subr.mxu0 0.0
    %402 = vmatpush1.msra.mxu0 0.0
    %403 = vmatprep.subr.mxu0 0.0
    %404 = vmatpush1.msra.mxu0 0.0
    %405 = vmatprep.subr.mxu0 0.0
    %406 = vmatpush1.msra.mxu0 0.0
    %407 = vmatprep.subr.mxu0 0.0
    %408 = vmatpush1.msra.mxu0 0.0
    %409 = vmatprep.subr.mxu0 0.0
    %410 = vmatpush1.msra.mxu0 0.0
    %411 = vmatprep.subr.mxu0 0.0
    %412 = vmatpush1.msra.mxu0 0.0
    %413 = vmatprep.subr.mxu0 0.0
    %414 = vmatpush1.msra.mxu0 0.0
    %415 = vmatprep.mubr.f32.mxu0 0.0
    %416 = vmatmul.mubr.f32.gmra.mrb[0].mxu0 %v327
    %v417 = vpop.f32.mrb[0].mxu0
    %v418 = vadd.f32 0.0, %v417
    %v419 = vpop.f32.mrb[0].mxu0
    %420 = vmatprep.mubr.f32.mxu0 0.0
    %421 = vmatmul.mubr.f32.gmra.mrb[0].mxu0 %v328
    %v422 = vpop.f32.mrb[0].mxu0
    %v423 = vadd.f32 0.0, %v422
    %v424 = vpop.f32.mrb[0].mxu0
    %425 = vmatprep.mubr.f32.mxu0 0.0
    %426 = vmatmul.mubr.f32.gmra.mrb[0].mxu0 %v329
    %v427 = vpop.f32.mrb[0].mxu0
    %v428 = vadd.f32 0.0, %v427
    %v429 = vpop.f32.mrb[0].mxu0
    %430 = vmatprep.mubr.f32.mxu0 0.0
    %431 = vmatmul.mubr.f32.gmra.mrb[0].mxu0 %v330
    %v432 = vpop.f32.mrb[0].mxu0
    %v433 = vadd.f32 0.0, %v432
    %v434 = vpop.f32.mrb[0].mxu0
    %435 = vmatprep.mubr.f32.mxu0 0.0
    %436 = vmatmul.mubr.f32.gmra.mrb[0].mxu0 %v331
    %v437 = vpop.f32.mrb[0].mxu0
    %v438 = vadd.f32 0.0, %v437
    %v439 = vpop.f32.mrb[0].mxu0
    %440 = vmatprep.mubr.f32.mxu0 0.0
    %441 = vmatmul.mubr.f32.gmra.mrb[0].mxu0 %v332
    %v442 = vpop.f32.mrb[0].mxu0
    %v443 = vadd.f32 0.0, %v442
    %v444 = vpop.f32.mrb[0].mxu0
    %445 = vmatprep.mubr.f32.mxu0 0.0
    %446 = vmatmul.mubr.f32.gmra.mrb[0].mxu0 %v333
    %v447 = vpop.f32.mrb[0].mxu0
    %v448 = vadd.f32 0.0, %v447
    %v449 = vpop.f32.mrb[0].mxu0
    %450 = vmatprep.mubr.f32.mxu0 0.0
    %451 = vmatmul.mubr.f32.gmra.mrb[0].mxu0 %v334
    %v452 = vpop.f32.mrb[0].mxu0
    %v453 = vadd.f32 0.0, %v452
    %v454 = vpop.f32.mrb[0].mxu0
    %455 = vdwg.mxu0
    %456 = vst [vmem:[#allocation3] sm:$0xff] %v418
    %457 = vst [vmem:[#allocation3 + $0x8] sm:$0xff] %v423
    %458 = vst [vmem:[#allocation3 + $0x10] sm:$0xff] %v428
    %459 = vst [vmem:[#allocation3 + $0x18] sm:$0xff] %v433
    %460 = vst [vmem:[#allocation3 + $0x20] sm:$0xff] %v438
    %461 = vst [vmem:[#allocation3 + $0x28] sm:$0xff] %v443
    %462 = vst [vmem:[#allocation3 + $0x30] sm:$0xff] %v448
    %463 = vst [vmem:[#allocation3 + $0x38] sm:$0xff] %v453
    %v464 = vld [vmem:[#allocation13 + $0x4] sm:$0x1]
    %v465 = vlaneseq
    %v466 = vshrl.u32 %v465, 7
    %v467 = vsub.s32 0, %v466
    %v468 = vrot.slane %v464, %v467
    %v469 = vmul.f32 %v112, %v468
    %v470 = vmul.f32 %v113, %v468
    %v471 = vmul.f32 %v114, %v468
    %v472 = vmul.f32 %v115, %v468
    %v473 = vmul.f32 %v116, %v468
    %v474 = vmul.f32 %v117, %v468
    %v475 = vmul.f32 %v118, %v468
    %v476 = vmul.f32 %v119, %v468
    %v477 = vsub.f32 1.0, %v464
    %v478 = vlaneseq
    %v479 = vshrl.u32 %v478, 7
    %v480 = vsub.s32 0, %v479
    %v481 = vrot.slane %v477, %v480
    %v482 = vmul.f32 %v130, %v481
    %v483 = vmul.f32 %v131, %v481
    %v484 = vmul.f32 %v132, %v481
    %v485 = vmul.f32 %v133, %v481
    %v486 = vmul.f32 %v134, %v481
    %v487 = vmul.f32 %v135, %v481
    %v488 = vmul.f32 %v136, %v481
    %v489 = vmul.f32 %v137, %v481
    %v490 = vadd.f32 %v469, %v482
    %v491 = vadd.f32 %v470, %v483
    %v492 = vadd.f32 %v471, %v484
    %v493 = vadd.f32 %v472, %v485
    %v494 = vadd.f32 %v473, %v486
    %v495 = vadd.f32 %v474, %v487
    %v496 = vadd.f32 %v475, %v488
    %v497 = vadd.f32 %v476, %v489
    %v498 = vld [vmem:[#allocation18] sm:$0xff]
    %v499 = vld [vmem:[#allocation18 + $0x8] sm:$0xff]
    %v500 = vld [vmem:[#allocation18 + $0x10] sm:$0xff]
    %v501 = vld [vmem:[#allocation18 + $0x18] sm:$0xff]
    %v502 = vld [vmem:[#allocation18 + $0x20] sm:$0xff]
    %v503 = vld [vmem:[#allocation18 + $0x28] sm:$0xff]
    %v504 = vld [vmem:[#allocation18 + $0x30] sm:$0xff]
    %v505 = vld [vmem:[#allocation18 + $0x38] sm:$0xff]
    %v506 = vld [vmem:[#allocation18 + $0x40] sm:$0xff]
    %v507 = vld [vmem:[#allocation18 + $0x48] sm:$0xff]
    %v508 = vld [vmem:[#allocation18 + $0x50] sm:$0xff]
    %v509 = vld [vmem:[#allocation18 + $0x58] sm:$0xff]
    %v510 = vld [vmem:[#allocation18 + $0x60] sm:$0xff]
    %v511 = vld [vmem:[#allocation18 + $0x68] sm:$0xff]
    %v512 = vld [vmem:[#allocation18 + $0x70] sm:$0xff]
    %v513 = vld [vmem:[#allocation18 + $0x78] sm:$0xff]
    %514 = vmatprep.subr.mxu0 0.0
    %515 = vmatpush1.msra.mxu0 %v498
    %516 = vmatprep.subr.mxu0 0.0
    %517 = vmatpush1.msra.mxu0 %v499
    %518 = vmatprep.subr.mxu0 0.0
    %519 = vmatpush1.msra.mxu0 %v500
    %520 = vmatprep.subr.mxu0 0.0
    %521 = vmatpush1.msra.mxu0 %v501
    %522 = vmatprep.subr.mxu0 0.0
    %523 = vmatpush1.msra.mxu0 %v502
    %524 = vmatprep.subr.mxu0 0.0
    %525 = vmatpush1.msra.mxu0 %v503
    %526 = vmatprep.subr.mxu0 0.0
    %527 = vmatpush1.msra.mxu0 %v504
    %528 = vmatprep.subr.mxu0 0.0
    %529 = vmatpush1.msra.mxu0 %v505
    %530 = vmatprep.subr.mxu0 0.0
    %531 = vmatpush1.msra.mxu0 %v506
    %532 = vmatprep.subr.mxu0 0.0
    %533 = vmatpush1.msra.mxu0 %v507
    %534 = vmatprep.subr.mxu0 0.0
    %535 = vmatpush1.msra.mxu0 %v508
    %536 = vmatprep.subr.mxu0 0.0
    %537 = vmatpush1.msra.mxu0 %v509
    %538 = vmatprep.subr.mxu0 0.0
    %539 = vmatpush1.msra.mxu0 %v510
    %540 = vmatprep.subr.mxu0 0.0
    %541 = vmatpush1.msra.mxu0 %v511
    %542 = vmatprep.subr.mxu0 0.0
    %543 = vmatpush1.msra.mxu0 %v512
    %544 = vmatprep.subr.mxu0 0.0
    %545 = vmatpush1.msra.mxu0 %v513
    %546 = vmatprep.subr.mxu0 0.0
    %547 = vmatpush1.msra.mxu0 0.0
    %548 = vmatprep.subr.mxu0 0.0
    %549 = vmatpush1.msra.mxu0 0.0
    %550 = vmatprep.subr.mxu0 0.0
    %551 = vmatpush1.msra.mxu0 0.0
    %552 = vmatprep.subr.mxu0 0.0
    %553 = vmatpush1.msra.mxu0 0.0
    %554 = vmatprep.subr.mxu0 0.0
    %555 = vmatpush1.msra.mxu0 0.0
    %556 = vmatprep.subr.mxu0 0.0
    %557 = vmatpush1.msra.mxu0 0.0
    %558 = vmatprep.subr.mxu0 0.0
    %559 = vmatpush1.msra.mxu0 0.0
    %560 = vmatprep.subr.mxu0 0.0
    %561 = vmatpush1.msra.mxu0 0.0
    %562 = vmatprep.subr.mxu0 0.0
    %563 = vmatpush1.msra.mxu0 0.0
    %564 = vmatprep.subr.mxu0 0.0
    %565 = vmatpush1.msra.mxu0 0.0
    %566 = vmatprep.subr.mxu0 0.0
    %567 = vmatpush1.msra.mxu0 0.0
    %568 = vmatprep.subr.mxu0 0.0
    %569 = vmatpush1.msra.mxu0 0.0
    %570 = vmatprep.subr.mxu0 0.0
    %571 = vmatpush1.msra.mxu0 0.0
    %572 = vmatprep.subr.mxu0 0.0
    %573 = vmatpush1.msra.mxu0 0.0
    %574 = vmatprep.subr.mxu0 0.0
    %575 = vmatpush1.msra.mxu0 0.0
    %576 = vmatprep.subr.mxu0 0.0
    %577 = vmatpush1.msra.mxu0 0.0
    %578 = vmatprep.mubr.f32.mxu0 0.0
    %579 = vmatmul.mubr.f32.gmra.mrb[0].mxu0 %v490
    %v580 = vpop.f32.mrb[0].mxu0
    %v581 = vadd.f32 0.0, %v580
    %v582 = vpop.f32.mrb[0].mxu0
    %583 = vmatprep.mubr.f32.mxu0 0.0
    %584 = vmatmul.mubr.f32.gmra.mrb[0].mxu0 %v491
    %v585 = vpop.f32.mrb[0].mxu0
    %v586 = vadd.f32 0.0, %v585
    %v587 = vpop.f32.mrb[0].mxu0
    %588 = vmatprep.mubr.f32.mxu0 0.0
    %589 = vmatmul.mubr.f32.gmra.mrb[0].mxu0 %v492
    %v590 = vpop.f32.mrb[0].mxu0
    %v591 = vadd.f32 0.0, %v590
    %v592 = vpop.f32.mrb[0].mxu0
    %593 = vmatprep.mubr.f32.mxu0 0.0
    %594 = vmatmul.mubr.f32.gmra.mrb[0].mxu0 %v493
    %v595 = vpop.f32.mrb[0].mxu0
    %v596 = vadd.f32 0.0, %v595
    %v597 = vpop.f32.mrb[0].mxu0
    %598 = vmatprep.mubr.f32.mxu0 0.0
    %599 = vmatmul.mubr.f32.gmra.mrb[0].mxu0 %v494
    %v600 = vpop.f32.mrb[0].mxu0
    %v601 = vadd.f32 0.0, %v600
    %v602 = vpop.f32.mrb[0].mxu0
    %603 = vmatprep.mubr.f32.mxu0 0.0
    %604 = vmatmul.mubr.f32.gmra.mrb[0].mxu0 %v495
    %v605 = vpop.f32.mrb[0].mxu0
    %v606 = vadd.f32 0.0, %v605
    %v607 = vpop.f32.mrb[0].mxu0
    %608 = vmatprep.mubr.f32.mxu0 0.0
    %609 = vmatmul.mubr.f32.gmra.mrb[0].mxu0 %v496
    %v610 = vpop.f32.mrb[0].mxu0
    %v611 = vadd.f32 0.0, %v610
    %v612 = vpop.f32.mrb[0].mxu0
    %613 = vmatprep.mubr.f32.mxu0 0.0
    %614 = vmatmul.mubr.f32.gmra.mrb[0].mxu0 %v497
    %v615 = vpop.f32.mrb[0].mxu0
    %v616 = vadd.f32 0.0, %v615
    %v617 = vpop.f32.mrb[0].mxu0
    %618 = vdwg.mxu0
    %619 = vst [vmem:[#allocation5] sm:$0xff] %v581
    %620 = vst [vmem:[#allocation5 + $0x8] sm:$0xff] %v586
    %621 = vst [vmem:[#allocation5 + $0x10] sm:$0xff] %v591
    %622 = vst [vmem:[#allocation5 + $0x18] sm:$0xff] %v596
    %623 = vst [vmem:[#allocation5 + $0x20] sm:$0xff] %v601
    %624 = vst [vmem:[#allocation5 + $0x28] sm:$0xff] %v606
    %625 = vst [vmem:[#allocation5 + $0x30] sm:$0xff] %v611
    %626 = vst [vmem:[#allocation5 + $0x38] sm:$0xff] %v616
    %v627 = vld [vmem:[#allocation13] sm:$0x1]
    %v628 = vld [vmem:[#allocation13 + $0x1] sm:$0x1]
    %v629 = vld [vmem:[#allocation6] sm:$0xff]
    %v630 = vld [vmem:[#allocation7] sm:$0xff]
    %v631 = vld [vmem:[#allocation8] sm:$0xff]
    %v632 = vld [vmem:[#allocation2] sm:$0xff]
    %v633 = vld [vmem:[#allocation3] sm:$0xff]
    %v634 = vlaneseq
    %v635 = vshrl.u32 %v634, 7
    %v636 = vsub.s32 0, %v635
    %v637 = vrot.slane %v628, %v636
    %v638 = vadd.f32 %v637, %v632
    %v639 = vmax.f32 %v631, %v638
    %v640 = vsub.f32 %v631, %v639
    %v641 = vmul.f32 %v640, 1.442695
    %v642 = vpow.pop %v641
    %v643 = vsub.f32 %v638, %v639
    %v644 = vmul.f32 %v643, 1.442695
    %v645 = vpow.pop %v644
    %v646 = vmul.f32 %v642, %v629
    %v647 = vmul.f32 %v645, %v633
    %v648 = vadd.f32 %v646, %v647
    %v649 = vmul.f32 %v642, %v630
    %v650 = vadd.f32 %v649, %v645
    %v651 = vrcp.pop %v650
    %v652 = vmul.f32 %v648, %v651
    %653 = vst [vmem:[#allocation4] sm:$0xff] %v652
    %v654 = vlaneseq
    %v655 = vshrl.u32 %v654, 7
    %v656 = vsub.s32 0, %v655
    %v657 = vrot.slane %v627, %v656
    %v658 = vadd.f32 %v657, %v631
    %v659 = vmax.f32 %v658, %v632
    %v660 = vsub.f32 %v658, %v659
    %v661 = vmul.f32 %v660, 1.442695
    %v662 = vpow.pop %v661
    %v663 = vsub.f32 %v632, %v659
    %v664 = vmul.f32 %v663, 1.442695
    %v665 = vpow.pop %v664
    %v666 = vmul.f32 %v662, %v629
    %v667 = vmul.f32 %v665, %v633
    %v668 = vadd.f32 %v666, %v667
    %v669 = vmul.f32 %v662, %v630
    %v670 = vadd.f32 %v669, %v665
    %s671 = sadd.s32 0, 8
    %s672 = scalar_lea.vmem [#allocation2], %s671
    %v673 = vld [vmem:[%s672] sm:$0xff]
    %s674 = scalar_lea.vmem [#allocation3], %s671
    %v675 = vld [vmem:[%s674] sm:$0xff]
    %v676 = vadd.f32 %v637, %v673
    %v677 = vmax.f32 %v659, %v676
    %v678 = vsub.f32 %v659, %v677
    %v679 = vmul.f32 %v678, 1.442695
    %v680 = vpow.pop %v679
    %v681 = vsub.f32 %v676, %v677
    %v682 = vmul.f32 %v681, 1.442695
    %v683 = vpow.pop %v682
    %v684 = vmul.f32 %v680, %v668
    %v685 = vmul.f32 %v683, %v675
    %v686 = vadd.f32 %v684, %v685
    %v687 = vmul.f32 %v680, %v670
    %v688 = vadd.f32 %v687, %v683
    %v689 = vrcp.pop %v688
    %v690 = vmul.f32 %v686, %v689
    %s691 = scalar_lea.vmem [#allocation4], %s671
    %692 = vst [vmem:[%s691] sm:$0xff] %v690
    %v693 = vadd.f32 %v657, %v659
    %v694 = vmax.f32 %v693, %v673
    %v695 = vsub.f32 %v693, %v694
    %v696 = vmul.f32 %v695, 1.442695
    %v697 = vpow.pop %v696
    %v698 = vsub.f32 %v673, %v694
    %v699 = vmul.f32 %v698, 1.442695
    %v700 = vpow.pop %v699
    %v701 = vmul.f32 %v697, %v668
    %v702 = vmul.f32 %v700, %v675
    %v703 = vadd.f32 %v701, %v702
    %v704 = vmul.f32 %v697, %v670
    %v705 = vadd.f32 %v704, %v700
    %s706 = sadd.s32 0, 16
    %s707 = scalar_lea.vmem [#allocation2], %s706
    %v708 = vld [vmem:[%s707] sm:$0xff]
    %s709 = scalar_lea.vmem [#allocation3], %s706
    %v710 = vld [vmem:[%s709] sm:$0xff]
    %v711 = vadd.f32 %v637, %v708
    %v712 = vmax.f32 %v694, %v711
    %v713 = vsub.f32 %v694, %v712
    %v714 = vmul.f32 %v713, 1.442695
    %v715 = vpow.pop %v714
    %v716 = vsub.f32 %v711, %v712
    %v717 = vmul.f32 %v716, 1.442695
    %v718 = vpow.pop %v717
    %v719 = vmul.f32 %v715, %v703
    %v720 = vmul.f32 %v718, %v710
    %v721 = vadd.f32 %v719, %v720
    %v722 = vmul.f32 %v715, %v705
    %v723 = vadd.f32 %v722, %v718
    %v724 = vrcp.pop %v723
    %v725 = vmul.f32 %v721, %v724
    %s726 = scalar_lea.vmem [#allocation4], %s706
    %727 = vst [vmem:[%s726] sm:$0xff] %v725
    %v728 = vadd.f32 %v657, %v694
    %v729 = vmax.f32 %v728, %v708
    %v730 = vsub.f32 %v728, %v729
    %v731 = vmul.f32 %v730, 1.442695
    %v732 = vpow.pop %v731
    %v733 = vsub.f32 %v708, %v729
    %v734 = vmul.f32 %v733, 1.442695
    %v735 = vpow.pop %v734
    %v736 = vmul.f32 %v732, %v703
    %v737 = vmul.f32 %v735, %v710
    %v738 = vadd.f32 %v736, %v737
    %v739 = vmul.f32 %v732, %v705
    %v740 = vadd.f32 %v739, %v735
    %s741 = sadd.s32 0, 24
    %s742 = scalar_lea.vmem [#allocation2], %s741
    %v743 = vld [vmem:[%s742] sm:$0xff]
    %s744 = scalar_lea.vmem [#allocation3], %s741
    %v745 = vld [vmem:[%s744] sm:$0xff]
    %v746 = vadd.f32 %v637, %v743
    %v747 = vmax.f32 %v729, %v746
    %v748 = vsub.f32 %v729, %v747
    %v749 = vmul.f32 %v748, 1.442695
    %v750 = vpow.pop %v749
    %v751 = vsub.f32 %v746, %v747
    %v752 = vmul.f32 %v751, 1.442695
    %v753 = vpow.pop %v752
    %v754 = vmul.f32 %v750, %v738
    %v755 = vmul.f32 %v753, %v745
    %v756 = vadd.f32 %v754, %v755
    %v757 = vmul.f32 %v750, %v740
    %v758 = vadd.f32 %v757, %v753
    %v759 = vrcp.pop %v758
    %v760 = vmul.f32 %v756, %v759
    %s761 = scalar_lea.vmem [#allocation4], %s741
    %762 = vst [vmem:[%s761] sm:$0xff] %v760
    %v763 = vadd.f32 %v657, %v729
    %v764 = vmax.f32 %v763, %v743
    %v765 = vsub.f32 %v763, %v764
    %v766 = vmul.f32 %v765, 1.442695
    %v767 = vpow.pop %v766
    %v768 = vsub.f32 %v743, %v764
    %v769 = vmul.f32 %v768, 1.442695
    %v770 = vpow.pop %v769
    %v771 = vmul.f32 %v767, %v738
    %v772 = vmul.f32 %v770, %v745
    %v773 = vadd.f32 %v771, %v772
    %v774 = vmul.f32 %v767, %v740
    %v775 = vadd.f32 %v774, %v770
    %s776 = sadd.s32 0, 32
    %s777 = scalar_lea.vmem [#allocation2], %s776
    %v778 = vld [vmem:[%s777] sm:$0xff]
    %s779 = scalar_lea.vmem [#allocation3], %s776
    %v780 = vld [vmem:[%s779] sm:$0xff]
    %v781 = vadd.f32 %v637, %v778
    %v782 = vmax.f32 %v764, %v781
    %v783 = vsub.f32 %v764, %v782
    %v784 = vmul.f32 %v783, 1.442695
    %v785 = vpow.pop %v784
    %v786 = vsub.f32 %v781, %v782
    %v787 = vmul.f32 %v786, 1.442695
    %v788 = vpow.pop %v787
    %v789 = vmul.f32 %v785, %v773
    %v790 = vmul.f32 %v788, %v780
    %v791 = vadd.f32 %v789, %v790
    %v792 = vmul.f32 %v785, %v775
    %v793 = vadd.f32 %v792, %v788
    %v794 = vrcp.pop %v793
    %v795 = vmul.f32 %v791, %v794
    %s796 = scalar_lea.vmem [#allocation4], %s776
    %797 = vst [vmem:[%s796] sm:$0xff] %v795
    %v798 = vadd.f32 %v657, %v764
    %v799 = vmax.f32 %v798, %v778
    %v800 = vsub.f32 %v798, %v799
    %v801 = vmul.f32 %v800, 1.442695
    %v802 = vpow.pop %v801
    %v803 = vsub.f32 %v778, %v799
    %v804 = vmul.f32 %v803, 1.442695
    %v805 = vpow.pop %v804
    %v806 = vmul.f32 %v802, %v773
    %v807 = vmul.f32 %v805, %v780
    %v808 = vadd.f32 %v806, %v807
    %v809 = vmul.f32 %v802, %v775
    %v810 = vadd.f32 %v809, %v805
    %s811 = sadd.s32 0, 40
    %s812 = scalar_lea.vmem [#allocation2], %s811
    %v813 = vld [vmem:[%s812] sm:$0xff]
    %s814 = scalar_lea.vmem [#allocation3], %s811
    %v815 = vld [vmem:[%s814] sm:$0xff]
    %v816 = vadd.f32 %v637, %v813
    %v817 = vmax.f32 %v799, %v816
    %v818 = vsub.f32 %v799, %v817
    %v819 = vmul.f32 %v818, 1.442695
    %v820 = vpow.pop %v819
    %v821 = vsub.f32 %v816, %v817
    %v822 = vmul.f32 %v821, 1.442695
    %v823 = vpow.pop %v822
    %v824 = vmul.f32 %v820, %v808
    %v825 = vmul.f32 %v823, %v815
    %v826 = vadd.f32 %v824, %v825
    %v827 = vmul.f32 %v820, %v810
    %v828 = vadd.f32 %v827, %v823
    %v829 = vrcp.pop %v828
    %v830 = vmul.f32 %v826, %v829
    %s831 = scalar_lea.vmem [#allocation4], %s811
    %832 = vst [vmem:[%s831] sm:$0xff] %v830
    %v833 = vadd.f32 %v657, %v799
    %v834 = vmax.f32 %v833, %v813
    %v835 = vsub.f32 %v833, %v834
    %v836 = vmul.f32 %v835, 1.442695
    %v837 = vpow.pop %v836
    %v838 = vsub.f32 %v813, %v834
    %v839 = vmul.f32 %v838, 1.442695
    %v840 = vpow.pop %v839
    %v841 = vmul.f32 %v837, %v808
    %v842 = vmul.f32 %v840, %v815
    %v843 = vadd.f32 %v841, %v842
    %v844 = vmul.f32 %v837, %v810
    %v845 = vadd.f32 %v844, %v840
    %s846 = sadd.s32 0, 48
    %s847 = scalar_lea.vmem [#allocation2], %s846
    %v848 = vld [vmem:[%s847] sm:$0xff]
    %s849 = scalar_lea.vmem [#allocation3], %s846
    %v850 = vld [vmem:[%s849] sm:$0xff]
    %v851 = vadd.f32 %v637, %v848
    %v852 = vmax.f32 %v834, %v851
    %v853 = vsub.f32 %v834, %v852
    %v854 = vmul.f32 %v853, 1.442695
    %v855 = vpow.pop %v854
    %v856 = vsub.f32 %v851, %v852
    %v857 = vmul.f32 %v856, 1.442695
    %v858 = vpow.pop %v857
    %v859 = vmul.f32 %v855, %v843
    %v860 = vmul.f32 %v858, %v850
    %v861 = vadd.f32 %v859, %v860
    %v862 = vmul.f32 %v855, %v845
    %v863 = vadd.f32 %v862, %v858
    %v864 = vrcp.pop %v863
    %v865 = vmul.f32 %v861, %v864
    %s866 = scalar_lea.vmem [#allocation4], %s846
    %867 = vst [vmem:[%s866] sm:$0xff] %v865
    %v868 = vadd.f32 %v657, %v834
    %v869 = vmax.f32 %v868, %v848
    %v870 = vsub.f32 %v868, %v869
    %v871 = vmul.f32 %v870, 1.442695
    %v872 = vpow.pop %v871
    %v873 = vsub.f32 %v848, %v869
    %v874 = vmul.f32 %v873, 1.442695
    %v875 = vpow.pop %v874
    %v876 = vmul.f32 %v872, %v843
    %v877 = vmul.f32 %v875, %v850
    %v878 = vadd.f32 %v876, %v877
    %v879 = vmul.f32 %v872, %v845
    %v880 = vadd.f32 %v879, %v875
    %s881 = sadd.s32 0, 56
    %s882 = scalar_lea.vmem [#allocation2], %s881
    %v883 = vld [vmem:[%s882] sm:$0xff]
    %s884 = scalar_lea.vmem [#allocation3], %s881
    %v885 = vld [vmem:[%s884] sm:$0xff]
    %v886 = vadd.f32 %v637, %v883
    %v887 = vmax.f32 %v869, %v886
    %v888 = vsub.f32 %v869, %v887
    %v889 = vmul.f32 %v888, 1.442695
    %v890 = vpow.pop %v889
    %v891 = vsub.f32 %v886, %v887
    %v892 = vmul.f32 %v891, 1.442695
    %v893 = vpow.pop %v892
    %v894 = vmul.f32 %v890, %v878
    %v895 = vmul.f32 %v893, %v885
    %v896 = vadd.f32 %v894, %v895
    %v897 = vmul.f32 %v890, %v880
    %v898 = vadd.f32 %v897, %v893
    %v899 = vrcp.pop %v898
    %v900 = vmul.f32 %v896, %v899
    %s901 = scalar_lea.vmem [#allocation4], %s881
    %902 = vst [vmem:[%s901] sm:$0xff] %v900
    %v903 = vadd.f32 %v657, %v869
    %v904 = vmax.f32 %v903, %v883
    %v905 = vsub.f32 %v903, %v904
    %v906 = vmul.f32 %v905, 1.442695
    %v907 = vpow.pop %v906
    %v908 = vsub.f32 %v883, %v904
    %v909 = vmul.f32 %v908, 1.442695
    %v910 = vpow.pop %v909
    %v911 = vmul.f32 %v907, %v878
    %v912 = vmul.f32 %v910, %v885
    %v913 = vadd.f32 %v911, %v912
    %v914 = vmul.f32 %v907, %v880
    %v915 = vadd.f32 %v914, %v910
    %916 = vst [vmem:[#allocation6] sm:$0xff] %v913
    %917 = vst [vmem:[#allocation7] sm:$0xff] %v915
    %918 = vst [vmem:[#allocation8] sm:$0xff] %v904
    %v919 = vld [vmem:[#allocation5] sm:$0xff]
    %v920 = vld [vmem:[#allocation5 + $0x8] sm:$0xff]
    %v921 = vld [vmem:[#allocation5 + $0x10] sm:$0xff]
    %v922 = vld [vmem:[#allocation5 + $0x18] sm:$0xff]
    %v923 = vld [vmem:[#allocation5 + $0x20] sm:$0xff]
    %v924 = vld [vmem:[#allocation5 + $0x28] sm:$0xff]
    %v925 = vld [vmem:[#allocation5 + $0x30] sm:$0xff]
    %v926 = vld [vmem:[#allocation5 + $0x38] sm:$0xff]
    %v927 = vxor.u32 %v919, 2147483648
    %v928 = vxor.u32 %v920, 2147483648
    %v929 = vxor.u32 %v921, 2147483648
    %v930 = vxor.u32 %v922, 2147483648
    %v931 = vxor.u32 %v923, 2147483648
    %v932 = vxor.u32 %v924, 2147483648
    %v933 = vxor.u32 %v925, 2147483648
    %v934 = vxor.u32 %v926, 2147483648
    %v935 = vmul.f32 %v927, 1.442695
    %v936 = vpow.pop %v935
    %v937 = vmul.f32 %v928, 1.442695
    %v938 = vpow.pop %v937
    %v939 = vmul.f32 %v929, 1.442695
    %v940 = vpow.pop %v939
    %v941 = vmul.f32 %v930, 1.442695
    %v942 = vpow.pop %v941
    %v943 = vmul.f32 %v931, 1.442695
    %v944 = vpow.pop %v943
    %v945 = vmul.f32 %v932, 1.442695
    %v946 = vpow.pop %v945
    %v947 = vmul.f32 %v933, 1.442695
    %v948 = vpow.pop %v947
    %v949 = vmul.f32 %v934, 1.442695
    %v950 = vpow.pop %v949
    %v951 = vadd.f32 %v936, 1.0
    %v952 = vadd.f32 %v938, 1.0
    %v953 = vadd.f32 %v940, 1.0
    %v954 = vadd.f32 %v942, 1.0
    %v955 = vadd.f32 %v944, 1.0
    %v956 = vadd.f32 %v946, 1.0
    %v957 = vadd.f32 %v948, 1.0
    %v958 = vadd.f32 %v950, 1.0
    %v959 = vrcp.pop %v951
    %v960 = vmul.f32 1.0, %v959
    %v961 = vrcp.pop %v952
    %v962 = vmul.f32 1.0, %v961
    %v963 = vrcp.pop %v953
    %v964 = vmul.f32 1.0, %v963
    %v965 = vrcp.pop %v954
    %v966 = vmul.f32 1.0, %v965
    %v967 = vrcp.pop %v955
    %v968 = vmul.f32 1.0, %v967
    %v969 = vrcp.pop %v956
    %v970 = vmul.f32 1.0, %v969
    %v971 = vrcp.pop %v957
    %v972 = vmul.f32 1.0, %v971
    %v973 = vrcp.pop %v958
    %v974 = vmul.f32 1.0, %v973
    %v975 = vld [vmem:[#allocation4] sm:$0xff]
    %v976 = vld [vmem:[#allocation4 + $0x8] sm:$0xff]
    %v977 = vld [vmem:[#allocation4 + $0x10] sm:$0xff]
    %v978 = vld [vmem:[#allocation4 + $0x18] sm:$0xff]
    %v979 = vld [vmem:[#allocation4 + $0x20] sm:$0xff]
    %v980 = vld [vmem:[#allocation4 + $0x28] sm:$0xff]
    %v981 = vld [vmem:[#allocation4 + $0x30] sm:$0xff]
    %v982 = vld [vmem:[#allocation4 + $0x38] sm:$0xff]
    %v983 = vmul.f32 %v960, %v975
    %v984 = vmul.f32 %v962, %v976
    %v985 = vmul.f32 %v964, %v977
    %v986 = vmul.f32 %v966, %v978
    %v987 = vmul.f32 %v968, %v979
    %v988 = vmul.f32 %v970, %v980
    %v989 = vmul.f32 %v972, %v981
    %v990 = vmul.f32 %v974, %v982
    %v991 = vld [vmem:[#allocation19] sm:$0xff]
    %v992 = vld [vmem:[#allocation19 + $0x8] sm:$0xff]
    %v993 = vld [vmem:[#allocation19 + $0x10] sm:$0xff]
    %v994 = vld [vmem:[#allocation19 + $0x18] sm:$0xff]
    %v995 = vld [vmem:[#allocation19 + $0x20] sm:$0xff]
    %v996 = vld [vmem:[#allocation19 + $0x28] sm:$0xff]
    %v997 = vld [vmem:[#allocation19 + $0x30] sm:$0xff]
    %v998 = vld [vmem:[#allocation19 + $0x38] sm:$0xff]
    %v999 = vld [vmem:[#allocation19 + $0x40] sm:$0xff]
    %v1000 = vld [vmem:[#allocation19 + $0x48] sm:$0xff]
    %v1001 = vld [vmem:[#allocation19 + $0x50] sm:$0xff]
    %v1002 = vld [vmem:[#allocation19 + $0x58] sm:$0xff]
    %v1003 = vld [vmem:[#allocation19 + $0x60] sm:$0xff]
    %v1004 = vld [vmem:[#allocation19 + $0x68] sm:$0xff]
    %v1005 = vld [vmem:[#allocation19 + $0x70] sm:$0xff]
    %v1006 = vld [vmem:[#allocation19 + $0x78] sm:$0xff]
    %1007 = vmatprep.subr.mxu0 0.0
    %1008 = vmatpush1.msra.mxu0 %v991
    %1009 = vmatprep.subr.mxu0 0.0
    %1010 = vmatpush1.msra.mxu0 %v992
    %1011 = vmatprep.subr.mxu0 0.0
    %1012 = vmatpush1.msra.mxu0 %v993
    %1013 = vmatprep.subr.mxu0 0.0
    %1014 = vmatpush1.msra.mxu0 %v994
    %1015 = vmatprep.subr.mxu0 0.0
    %1016 = vmatpush1.msra.mxu0 %v995
    %1017 = vmatprep.subr.mxu0 0.0
    %1018 = vmatpush1.msra.mxu0 %v996
    %1019 = vmatprep.subr.mxu0 0.0
    %1020 = vmatpush1.msra.mxu0 %v997
    %1021 = vmatprep.subr.mxu0 0.0
    %1022 = vmatpush1.msra.mxu0 %v998
    %1023 = vmatprep.subr.mxu0 0.0
    %1024 = vmatpush1.msra.mxu0 %v999
    %1025 = vmatprep.subr.mxu0 0.0
    %1026 = vmatpush1.msra.mxu0 %v1000
    %1027 = vmatprep.subr.mxu0 0.0
    %1028 = vmatpush1.msra.mxu0 %v1001
    %1029 = vmatprep.subr.mxu0 0.0
    %1030 = vmatpush1.msra.mxu0 %v1002
    %1031 = vmatprep.subr.mxu0 0.0
    %1032 = vmatpush1.msra.mxu0 %v1003
    %1033 = vmatprep.subr.mxu0 0.0
    %1034 = vmatpush1.msra.mxu0 %v1004
    %1035 = vmatprep.subr.mxu0 0.0
    %1036 = vmatpush1.msra.mxu0 %v1005
    %1037 = vmatprep.subr.mxu0 0.0
    %1038 = vmatpush1.msra.mxu0 %v1006
    %1039 = vmatprep.subr.mxu0 0.0
    %1040 = vmatpush1.msra.mxu0 0.0
    %1041 = vmatprep.subr.mxu0 0.0
    %1042 = vmatpush1.msra.mxu0 0.0
    %1043 = vmatprep.subr.mxu0 0.0
    %1044 = vmatpush1.msra.mxu0 0.0
    %1045 = vmatprep.subr.mxu0 0.0
    %1046 = vmatpush1.msra.mxu0 0.0
    %1047 = vmatprep.subr.mxu0 0.0
    %1048 = vmatpush1.msra.mxu0 0.0
    %1049 = vmatprep.subr.mxu0 0.0
    %1050 = vmatpush1.msra.mxu0 0.0
    %1051 = vmatprep.subr.mxu0 0.0
    %1052 = vmatpush1.msra.mxu0 0.0
    %1053 = vmatprep.subr.mxu0 0.0
    %1054 = vmatpush1.msra.mxu0 0.0
    %1055 = vmatprep.subr.mxu0 0.0
    %1056 = vmatpush1.msra.mxu0 0.0
    %1057 = vmatprep.subr.mxu0 0.0
    %1058 = vmatpush1.msra.mxu0 0.0
    %1059 = vmatprep.subr.mxu0 0.0
    %1060 = vmatpush1.msra.mxu0 0.0
    %1061 = vmatprep.subr.mxu0 0.0
    %1062 = vmatpush1.msra.mxu0 0.0
    %1063 = vmatprep.subr.mxu0 0.0
    %1064 = vmatpush1.msra.mxu0 0.0
    %1065 = vmatprep.subr.mxu0 0.0
    %1066 = vmatpush1.msra.mxu0 0.0
    %1067 = vmatprep.subr.mxu0 0.0
    %1068 = vmatpush1.msra.mxu0 0.0
    %1069 = vmatprep.subr.mxu0 0.0
    %1070 = vmatpush1.msra.mxu0 0.0
    %1071 = vmatprep.mubr.f32.mxu0 0.0
    %1072 = vmatmul.mubr.f32.gmra.mrb[0].mxu0 %v983
    %v1073 = vpop.f32.mrb[0].mxu0
    %v1074 = vadd.f32 0.0, %v1073
    %v1075 = vpop.f32.mrb[0].mxu0
    %1076 = vmatprep.mubr.f32.mxu0 0.0
    %1077 = vmatmul.mubr.f32.gmra.mrb[0].mxu0 %v984
    %v1078 = vpop.f32.mrb[0].mxu0
    %v1079 = vadd.f32 0.0, %v1078
    %v1080 = vpop.f32.mrb[0].mxu0
    %1081 = vmatprep.mubr.f32.mxu0 0.0
    %1082 = vmatmul.mubr.f32.gmra.mrb[0].mxu0 %v985
    %v1083 = vpop.f32.mrb[0].mxu0
    %v1084 = vadd.f32 0.0, %v1083
    %v1085 = vpop.f32.mrb[0].mxu0
    %1086 = vmatprep.mubr.f32.mxu0 0.0
    %1087 = vmatmul.mubr.f32.gmra.mrb[0].mxu0 %v986
    %v1088 = vpop.f32.mrb[0].mxu0
    %v1089 = vadd.f32 0.0, %v1088
    %v1090 = vpop.f32.mrb[0].mxu0
    %1091 = vmatprep.mubr.f32.mxu0 0.0
    %1092 = vmatmul.mubr.f32.gmra.mrb[0].mxu0 %v987
    %v1093 = vpop.f32.mrb[0].mxu0
    %v1094 = vadd.f32 0.0, %v1093
    %v1095 = vpop.f32.mrb[0].mxu0
    %1096 = vmatprep.mubr.f32.mxu0 0.0
    %1097 = vmatmul.mubr.f32.gmra.mrb[0].mxu0 %v988
    %v1098 = vpop.f32.mrb[0].mxu0
    %v1099 = vadd.f32 0.0, %v1098
    %v1100 = vpop.f32.mrb[0].mxu0
    %1101 = vmatprep.mubr.f32.mxu0 0.0
    %1102 = vmatmul.mubr.f32.gmra.mrb[0].mxu0 %v989
    %v1103 = vpop.f32.mrb[0].mxu0
    %v1104 = vadd.f32 0.0, %v1103
    %v1105 = vpop.f32.mrb[0].mxu0
    %1106 = vmatprep.mubr.f32.mxu0 0.0
    %1107 = vmatmul.mubr.f32.gmra.mrb[0].mxu0 %v990
    %v1108 = vpop.f32.mrb[0].mxu0
    %v1109 = vadd.f32 0.0, %v1108
    %v1110 = vpop.f32.mrb[0].mxu0
    %1111 = vdwg.mxu0
    %1112 = vst [vmem:[#allocation21] sm:$0xff] %v1074
    %1113 = vst [vmem:[#allocation21 + $0x8] sm:$0xff] %v1079
    %1114 = vst [vmem:[#allocation21 + $0x10] sm:$0xff] %v1084
    %1115 = vst [vmem:[#allocation21 + $0x18] sm:$0xff] %v1089
    %1116 = vst [vmem:[#allocation21 + $0x20] sm:$0xff] %v1094
    %1117 = vst [vmem:[#allocation21 + $0x28] sm:$0xff] %v1099
    %1118 = vst [vmem:[#allocation21 + $0x30] sm:$0xff] %v1104
    %1119 = vst [vmem:[#allocation21 + $0x38] sm:$0xff] %v1109
    // Predicated region
    $region54: #{tpu_custom_call.1} parent=1 // pred_check
      _
    $region55: #{tpu_custom_call.1} parent=1 // pred_check_branch
      %1121 = sbr.rel (0) target = $region57
    $region56: #{tpu_custom_call.1} parent=1 // pred_region
      %s1123 = ssub.s32 1024, 1024
      %1124 = vsyncadd [#allocation12], %s1123
      %s1125 = sshll.u32 [#allocation21], 4
      %s1126 = int_to_ptr.vmem [resolvable:$true] %s1125
      %1131 = dma.vmem_to_hbm [thread:$0]  %s1126, 1024, %s6, [#allocation12], 128, 128, 8
    $region57: #{tpu_custom_call.1} parent=1 // pred_fallthru
      _
    // Predicated region
    $region58: #{tpu_custom_call.1} parent=1 // pred_check
      _
    $region59: #{tpu_custom_call.1} parent=1 // pred_check_branch
      %1133 = sbr.rel (0) target = $region61
    $region60: #{tpu_custom_call.1} parent=1 // pred_region
      %1134 = dma.done [#allocation12], 1024
    $region61: #{tpu_custom_call.1} parent=1 // pred_fallthru
      _
    %1135 = vsyncpa [#allocation11], 1
    %1136 = vsyncpa [#allocation14], 1
    %1137 = vsyncpa [#allocation17], 1
    %1138 = vsyncpa [#allocation20], 1
    %1139 = vsyncpa [#allocation12], 1

// kernel: tpu_custom_call.1
$region0: #{tpu_custom_call.1}
  #allocation0 [shape = 'u32[]', space=smem, size = 0x4, offset = 0x4, fixed_abs, tag = 'smem constant byte address 0x4 - core index']
  #allocation1 [shape = 'u32[144,128]{1,0:T(1,128)}', space=vmem, size = 0x12000, scoped, tag = 'internal scratch']
  #allocation2 [shape = 'f32[64,128]{1,0:T(8,128)}', space=vmem, size = 0x8000, scoped, tag = 'scratch operand']
  #allocation3 [shape = 'f32[64,128]{1,0:T(8,128)}', space=vmem, size = 0x8000, scoped, tag = 'scratch operand']
  #allocation4 [shape = 'f32[64,128]{1,0:T(8,128)}', space=vmem, size = 0x8000, scoped, tag = 'scratch operand']
  #allocation5 [shape = 'f32[64,128]{1,0:T(8,128)}', space=vmem, size = 0x8000, scoped, tag = 'scratch operand']
  #allocation6 [shape = 'f32[8,128]{1,0:T(8,128)}', space=vmem, size = 0x1000, scoped, tag = 'scratch operand']
  #allocation7 [shape = 'f32[8,128]{1,0:T(8,128)}', space=vmem, size = 0x1000, scoped, tag = 'scratch operand']
  #allocation8 [shape = 'f32[8,128]{1,0:T(8,128)}', space=vmem, size = 0x1000, scoped, tag = 'scratch operand']
  #allocation9 [shape = 'f32[8,128]{1,0:T(8,128)}', space=vmem, size = 0x1000, scoped, tag = 'scratch operand']
  %s0 = inlined_call_operand.hbm [shape: f32[64,128], index: 0, kind: input, shape index: {}]
  %s1 = inlined_call_operand.hbm [shape: f32[8,128], index: 1, kind: input, shape index: {}]
  %s2 = inlined_call_operand.hbm [shape: f32[128,128], index: 2, kind: input, shape index: {}]
  %s3 = inlined_call_operand.hbm [shape: f32[128,128], index: 3, kind: input, shape index: {}]
  %s4 = inlined_call_operand.hbm [shape: f32[128,128], index: 4, kind: input, shape index: {}]
  %s5 = inlined_call_operand.hbm [shape: f32[128,128], index: 5, kind: input, shape index: {}]
  %s6 = inlined_call_operand.hbm [shape: f32[64,128], index: 6, kind: output, shape index: {}]
  %s7 = sld [smem:[#allocation0]]
  $region62: #{tpu_custom_call.1} parent=0
    _
  %s9 = ssub.s32 1, %s7
  %s10 = scalar_select 0, %s9, %s7
  $region1: #{tpu_custom_call.1} parent=0
    #allocation10 [shape = 'u8[32768]{0}', space=vmem, size = 0x8000, scoped, tag = 'input window, operand 0, single buffered']
    #allocation11 [shape = 's32[1]{0}', space=sflag, size = 0x4, scoped, tag = 'scoped memory for tpu_custom_call.1']
    #allocation12 [shape = 's32[1]{0}', space=sflag, size = 0x4, scoped, tag = 'scoped memory for tpu_custom_call.1']
    #allocation13 [shape = 'u8[4096]{0}', space=vmem, size = 0x1000, scoped, tag = 'input window, operand 1, single buffered']
    #allocation14 [shape = 's32[1]{0}', space=sflag, size = 0x4, scoped, tag = 'scoped memory for tpu_custom_call.1']
    #allocation15 [shape = 'u8[65536]{0}', space=vmem, size = 0x10000, scoped, tag = 'input window, operand 2, single buffered']
    #allocation16 [shape = 'u8[65536]{0}', space=vmem, size = 0x10000, scoped, tag = 'input window, operand 3, single buffered']
    #allocation17 [shape = 's32[1]{0}', space=sflag, size = 0x4, scoped, tag = 'scoped memory for tpu_custom_call.1']
    #allocation18 [shape = 'u8[65536]{0}', space=vmem, size = 0x10000, scoped, tag = 'input window, operand 4, single buffered']
    #allocation19 [shape = 'u8[65536]{0}', space=vmem, size = 0x10000, scoped, tag = 'input window, operand 5, single buffered']
    #allocation20 [shape = 's32[1]{0}', space=sflag, size = 0x4, scoped, tag = 'scoped memory for tpu_custom_call.1']
    #allocation21 [shape = 'u8[32768]{0}', space=vmem, size = 0x8000, scoped, tag = 'output window, operand 0, single buffered']
    %11 = vsyncpa [#allocation11], 0
    %12 = vsyncpa [#allocation14], 0
    %13 = vsyncpa [#allocation17], 0
    %14 = vsyncpa [#allocation20], 0
    %15 = vsyncpa [#allocation12], 0
    // Predicated region
    $region2: #{tpu_custom_call.1} parent=1 // pred_check
      _
    $region3: #{tpu_custom_call.1} parent=1 // pred_check_branch
      %17 = sbr.rel (0) target = $region5
    $region4: #{tpu_custom_call.1} parent=1 // pred_region
      %s19 = ssub.s32 1024, 1024
      %20 = vsyncadd [#allocation11], %s19
      %s21 = sshll.u32 [#allocation10], 4
      %s22 = int_to_ptr.vmem [resolvable:$true] %s21
      %27 = dma.hbm_to_vmem [thread:$0]  %s0, 1024, %s22, [#allocation11], 128, 128, 8
    $region5: #{tpu_custom_call.1} parent=1 // pred_fallthru
      _
    // Predicated region
    $region6: #{tpu_custom_call.1} parent=1 // pred_check
      _
    $region7: #{tpu_custom_call.1} parent=1 // pred_check_branch
      %29 = sbr.rel (0) target = $region9
    $region8: #{tpu_custom_call.1} parent=1 // pred_region
      %s31 = ssub.s32 128, 128
      %32 = vsyncadd [#allocation14], %s31
      %s34 = sshll.u32 [#allocation13], 4
      %s35 = int_to_ptr.vmem [resolvable:$true] %s34
      %37 = dma.hbm_to_vmem [thread:$0]  %s1, 128, %s35, [#allocation14]
    $region9: #{tpu_custom_call.1} parent=1 // pred_fallthru
      _
    // Predicated region
    $region10: #{tpu_custom_call.1} parent=1 // pred_check
      _
    $region11: #{tpu_custom_call.1} parent=1 // pred_check_branch
      %39 = sbr.rel (0) target = $region13
    $region12: #{tpu_custom_call.1} parent=1 // pred_region
      %s41 = ssub.s32 2048, 2048
      %42 = vsyncadd [#allocation14], %s41
      %s43 = sshll.u32 [#allocation15], 4
      %s44 = int_to_ptr.vmem [resolvable:$true] %s43
      %49 = dma.hbm_to_vmem [thread:$0]  %s2, 2048, %s44, [#allocation14], 128, 128, 8
    $region13: #{tpu_custom_call.1} parent=1 // pred_fallthru
      _
    // Predicated region
    $region14: #{tpu_custom_call.1} parent=1 // pred_check
      _
    $region15: #{tpu_custom_call.1} parent=1 // pred_check_branch
      %51 = sbr.rel (0) target = $region17
    $region16: #{tpu_custom_call.1} parent=1 // pred_region
      %s53 = ssub.s32 2048, 2048
      %54 = vsyncadd [#allocation17], %s53
      %s55 = sshll.u32 [#allocation16], 4
      %s56 = int_to_ptr.vmem [resolvable:$true] %s55
      %61 = dma.hbm_to_vmem [thread:$0]  %s3, 2048, %s56, [#allocation17], 128, 128, 8
    $region17: #{tpu_custom_call.1} parent=1 // pred_fallthru
      _
    // Predicated region
    $region18: #{tpu_custom_call.1} parent=1 // pred_check
      _
    $region19: #{tpu_custom_call.1} parent=1 // pred_check_branch
      %63 = sbr.rel (0) target = $region21
    $region20: #{tpu_custom_call.1} parent=1 // pred_region
      %s65 = ssub.s32 2048, 2048
      %66 = vsyncadd [#allocation17], %s65
      %s67 = sshll.u32 [#allocation18], 4
      %s68 = int_to_ptr.vmem [resolvable:$true] %s67
      %73 = dma.hbm_to_vmem [thread:$0]  %s4, 2048, %s68, [#allocation17], 128, 128, 8
    $region21: #{tpu_custom_call.1} parent=1 // pred_fallthru
      _
    // Predicated region
    $region22: #{tpu_custom_call.1} parent=1 // pred_check
      _
    $region23: #{tpu_custom_call.1} parent=1 // pred_check_branch
      %75 = sbr.rel (0) target = $region25
    $region24: #{tpu_custom_call.1} parent=1 // pred_region
      %s77 = ssub.s32 2048, 2048
      %78 = vsyncadd [#allocation20], %s77
      %s79 = sshll.u32 [#allocation19], 4
      %s80 = int_to_ptr.vmem [resolvable:$true] %s79
      %85 = dma.hbm_to_vmem [thread:$0]  %s5, 2048, %s80, [#allocation20], 128, 128, 8
    $region25: #{tpu_custom_call.1} parent=1 // pred_fallthru
      _
    // Predicated region
    $region26: #{tpu_custom_call.1} parent=1 // pred_check
      _
    $region27: #{tpu_custom_call.1} parent=1 // pred_check_branch
      %87 = sbr.rel (0) target = $region29
    $region28: #{tpu_custom_call.1} parent=1 // pred_region
      %88 = dma.done [#allocation11], 1024
    $region29: #{tpu_custom_call.1} parent=1 // pred_fallthru
      _
    // Predicated region
    $region30: #{tpu_custom_call.1} parent=1 // pred_check
      _
    $region31: #{tpu_custom_call.1} parent=1 // pred_check_branch
      %90 = sbr.rel (0) target = $region33
    $region32: #{tpu_custom_call.1} parent=1 // pred_region
      %91 = dma.done [#allocation14], 128
    $region33: #{tpu_custom_call.1} parent=1 // pred_fallthru
      _
    // Predicated region
    $region34: #{tpu_custom_call.1} parent=1 // pred_check
      _
    $region35: #{tpu_custom_call.1} parent=1 // pred_check_branch
      %93 = sbr.rel (0) target = $region37
    $region36: #{tpu_custom_call.1} parent=1 // pred_region
      %94 = dma.done [#allocation14], 2048
    $region37: #{tpu_custom_call.1} parent=1 // pred_fallthru
      _
    // Predicated region
    $region38: #{tpu_custom_call.1} parent=1 // pred_check
      _
    $region39: #{tpu_custom_call.1} parent=1 // pred_check_branch
      %96 = sbr.rel (0) target = $region41
    $region40: #{tpu_custom_call.1} parent=1 // pred_region
      %97 = dma.done [#allocation17], 2048
    $region41: #{tpu_custom_call.1} parent=1 // pred_fallthru
      _
    // Predicated region
    $region42: #{tpu_custom_call.1} parent=1 // pred_check
      _
    $region43: #{tpu_custom_call.1} parent=1 // pred_check_branch
      %99 = sbr.rel (0) target = $region45
    $region44: #{tpu_custom_call.1} parent=1 // pred_region
      %100 = dma.done [#allocation17], 2048
    $region45: #{tpu_custom_call.1} parent=1 // pred_fallthru
      _
    // Predicated region
    $region46: #{tpu_custom_call.1} parent=1 // pred_check
      _
    $region47: #{tpu_custom_call.1} parent=1 // pred_check_branch
      %102 = sbr.rel (0) target = $region49
    $region48: #{tpu_custom_call.1} parent=1 // pred_region
      %103 = dma.done [#allocation20], 2048
    $region49: #{tpu_custom_call.1} parent=1 // pred_fallthru
      _
    %p104 = scmp.eq.s32.totalorder 0, 0
    // Predicated region
    $region50: #{tpu_custom_call.1} parent=1 // pred_check
      %p105 = pneg %p104
    $region51: #{tpu_custom_call.1} parent=1 // pred_check_branch
      %107 = sbr.rel (%p105) target = $region53
    $region52: #{tpu_custom_call.1} parent=1 // pred_region
      %108 = vst [vmem:[#allocation6] sm:$0xff] 0.0
      %109 = vst [vmem:[#allocation7] sm:$0xff] 0.0
      %110 = vst [vmem:[#allocation8] sm:$0xff] -1e+38
      %111 = vst [vmem:[#allocation9] sm:$0xff] 0.0
    $region53: #{tpu_custom_call.1} parent=1 // pred_fallthru
      _
    %v112 = vld [vmem:[#allocation10] sm:$0xff]
    %v113 = vld [vmem:[#allocation10 + $0x8] sm:$0xff]
    %v114 = vld [vmem:[#allocation10 + $0x10] sm:$0xff]
    %v115 = vld [vmem:[#allocation10 + $0x18] sm:$0xff]
    %v116 = vld [vmem:[#allocation10 + $0x20] sm:$0xff]
    %v117 = vld [vmem:[#allocation10 + $0x28] sm:$0xff]
    %v118 = vld [vmem:[#allocation10 + $0x30] sm:$0xff]
    %v119 = vld [vmem:[#allocation10 + $0x38] sm:$0xff]
    %v120 = vld [vmem:[#allocation9] sm:$0xff]
    %121 = vst [vmem:[#allocation4] sm:$0xff] %v120
    %122 = vst [vmem:[#allocation4 + $0x8] sm:$0xff] %v112
    %123 = vst [vmem:[#allocation4 + $0x10] sm:$0xff] %v113
    %124 = vst [vmem:[#allocation4 + $0x18] sm:$0xff] %v114
    %125 = vst [vmem:[#allocation4 + $0x20] sm:$0xff] %v115
    %126 = vst [vmem:[#allocation4 + $0x28] sm:$0xff] %v116
    %127 = vst [vmem:[#allocation4 + $0x30] sm:$0xff] %v117
    %128 = vst [vmem:[#allocation4 + $0x38] sm:$0xff] %v118
    %129 = vst [vmem:[#allocation9] sm:$0xff] %v119
    %v130 = vld [vmem:[#allocation4] sm:$0xff]
    %v131 = vld [vmem:[#allocation4 + $0x8] sm:$0xff]
    %v132 = vld [vmem:[#allocation4 + $0x10] sm:$0xff]
    %v133 = vld [vmem:[#allocation4 + $0x18] sm:$0xff]
    %v134 = vld [vmem:[#allocation4 + $0x20] sm:$0xff]
    %v135 = vld [vmem:[#allocation4 + $0x28] sm:$0xff]
    %v136 = vld [vmem:[#allocation4 + $0x30] sm:$0xff]
    %v137 = vld [vmem:[#allocation4 + $0x38] sm:$0xff]
    %v138 = vld [vmem:[#allocation13 + $0x2] sm:$0x1]
    %v139 = vlaneseq
    %v140 = vshrl.u32 %v139, 7
    %v141 = vsub.s32 0, %v140
    %v142 = vrot.slane %v138, %v141
    %v143 = vmul.f32 %v112, %v142
    %v144 = vmul.f32 %v113, %v142
    %v145 = vmul.f32 %v114, %v142
    %v146 = vmul.f32 %v115, %v142
    %v147 = vmul.f32 %v116, %v142
    %v148 = vmul.f32 %v117, %v142
    %v149 = vmul.f32 %v118, %v142
    %v150 = vmul.f32 %v119, %v142
    %v151 = vsub.f32 1.0, %v138
    %v152 = vlaneseq
    %v153 = vshrl.u32 %v152, 7
    %v154 = vsub.s32 0, %v153
    %v155 = vrot.slane %v151, %v154
    %v156 = vmul.f32 %v130, %v155
    %v157 = vmul.f32 %v131, %v155
    %v158 = vmul.f32 %v132, %v155
    %v159 = vmul.f32 %v133, %v155
    %v160 = vmul.f32 %v134, %v155
    %v161 = vmul.f32 %v135, %v155
    %v162 = vmul.f32 %v136, %v155
    %v163 = vmul.f32 %v137, %v155
    %v164 = vadd.f32 %v143, %v156
    %v165 = vadd.f32 %v144, %v157
    %v166 = vadd.f32 %v145, %v158
    %v167 = vadd.f32 %v146, %v159
    %v168 = vadd.f32 %v147, %v160
    %v169 = vadd.f32 %v148, %v161
    %v170 = vadd.f32 %v149, %v162
    %v171 = vadd.f32 %v150, %v163
    %v172 = vld [vmem:[#allocation15] sm:$0xff]
    %v173 = vld [vmem:[#allocation15 + $0x8] sm:$0xff]
    %v174 = vld [vmem:[#allocation15 + $0x10] sm:$0xff]
    %v175 = vld [vmem:[#allocation15 + $0x18] sm:$0xff]
    %v176 = vld [vmem:[#allocation15 + $0x20] sm:$0xff]
    %v177 = vld [vmem:[#allocation15 + $0x28] sm:$0xff]
    %v178 = vld [vmem:[#allocation15 + $0x30] sm:$0xff]
    %v179 = vld [vmem:[#allocation15 + $0x38] sm:$0xff]
    %v180 = vld [vmem:[#allocation15 + $0x40] sm:$0xff]
    %v181 = vld [vmem:[#allocation15 + $0x48] sm:$0xff]
    %v182 = vld [vmem:[#allocation15 + $0x50] sm:$0xff]
    %v183 = vld [vmem:[#allocation15 + $0x58] sm:$0xff]
    %v184 = vld [vmem:[#allocation15 + $0x60] sm:$0xff]
    %v185 = vld [vmem:[#allocation15 + $0x68] sm:$0xff]
    %v186 = vld [vmem:[#allocation15 + $0x70] sm:$0xff]
    %v187 = vld [vmem:[#allocation15 + $0x78] sm:$0xff]
    %188 = vmatprep.subr.mxu0 0.0
    %189 = vmatpush1.msra.mxu0 %v172
    %190 = vmatprep.subr.mxu0 0.0
    %191 = vmatpush1.msra.mxu0 %v173
    %192 = vmatprep.subr.mxu0 0.0
    %193 = vmatpush1.msra.mxu0 %v174
    %194 = vmatprep.subr.mxu0 0.0
    %195 = vmatpush1.msra.mxu0 %v175
    %196 = vmatprep.subr.mxu0 0.0
    %197 = vmatpush1.msra.mxu0 %v176
    %198 = vmatprep.subr.mxu0 0.0
    %199 = vmatpush1.msra.mxu0 %v177
    %200 = vmatprep.subr.mxu0 0.0
    %201 = vmatpush1.msra.mxu0 %v178
    %202 = vmatprep.subr.mxu0 0.0
    %203 = vmatpush1.msra.mxu0 %v179
    %204 = vmatprep.subr.mxu0 0.0
    %205 = vmatpush1.msra.mxu0 %v180
    %206 = vmatprep.subr.mxu0 0.0
    %207 = vmatpush1.msra.mxu0 %v181
    %208 = vmatprep.subr.mxu0 0.0
    %209 = vmatpush1.msra.mxu0 %v182
    %210 = vmatprep.subr.mxu0 0.0
    %211 = vmatpush1.msra.mxu0 %v183
    %212 = vmatprep.subr.mxu0 0.0
    %213 = vmatpush1.msra.mxu0 %v184
    %214 = vmatprep.subr.mxu0 0.0
    %215 = vmatpush1.msra.mxu0 %v185
    %216 = vmatprep.subr.mxu0 0.0
    %217 = vmatpush1.msra.mxu0 %v186
    %218 = vmatprep.subr.mxu0 0.0
    %219 = vmatpush1.msra.mxu0 %v187
    %220 = vmatprep.subr.mxu0 0.0
    %221 = vmatpush1.msra.mxu0 0.0
    %222 = vmatprep.subr.mxu0 0.0
    %223 = vmatpush1.msra.mxu0 0.0
    %224 = vmatprep.subr.mxu0 0.0
    %225 = vmatpush1.msra.mxu0 0.0
    %226 = vmatprep.subr.mxu0 0.0
    %227 = vmatpush1.msra.mxu0 0.0
    %228 = vmatprep.subr.mxu0 0.0
    %229 = vmatpush1.msra.mxu0 0.0
    %230 = vmatprep.subr.mxu0 0.0
    %231 = vmatpush1.msra.mxu0 0.0
    %232 = vmatprep.subr.mxu0 0.0
    %233 = vmatpush1.msra.mxu0 0.0
    %234 = vmatprep.subr.mxu0 0.0
    %235 = vmatpush1.msra.mxu0 0.0
    %236 = vmatprep.subr.mxu0 0.0
    %237 = vmatpush1.msra.mxu0 0.0
    %238 = vmatprep.subr.mxu0 0.0
    %239 = vmatpush1.msra.mxu0 0.0
    %240 = vmatprep.subr.mxu0 0.0
    %241 = vmatpush1.msra.mxu0 0.0
    %242 = vmatprep.subr.mxu0 0.0
    %243 = vmatpush1.msra.mxu0 0.0
    %244 = vmatprep.subr.mxu0 0.0
    %245 = vmatpush1.msra.mxu0 0.0
    %246 = vmatprep.subr.mxu0 0.0
    %247 = vmatpush1.msra.mxu0 0.0
    %248 = vmatprep.subr.mxu0 0.0
    %249 = vmatpush1.msra.mxu0 0.0
    %250 = vmatprep.subr.mxu0 0.0
    %251 = vmatpush1.msra.mxu0 0.0
    %252 = vmatprep.mubr.f32.mxu0 0.0
    %253 = vmatmul.mubr.f32.gmra.mrb[0].mxu0 %v164
    %v254 = vpop.f32.mrb[0].mxu0
    %v255 = vadd.f32 0.0, %v254
    %v256 = vpop.f32.mrb[0].mxu0
    %257 = vmatprep.mubr.f32.mxu0 0.0
    %258 = vmatmul.mubr.f32.gmra.mrb[0].mxu0 %v165
    %v259 = vpop.f32.mrb[0].mxu0
    %v260 = vadd.f32 0.0, %v259
    %v261 = vpop.f32.mrb[0].mxu0
    %262 = vmatprep.mubr.f32.mxu0 0.0
    %263 = vmatmul.mubr.f32.gmra.mrb[0].mxu0 %v166
    %v264 = vpop.f32.mrb[0].mxu0
    %v265 = vadd.f32 0.0, %v264
    %v266 = vpop.f32.mrb[0].mxu0
    %267 = vmatprep.mubr.f32.mxu0 0.0
    %268 = vmatmul.mubr.f32.gmra.mrb[0].mxu0 %v167
    %v269 = vpop.f32.mrb[0].mxu0
    %v270 = vadd.f32 0.0, %v269
    %v271 = vpop.f32.mrb[0].mxu0
    %272 = vmatprep.mubr.f32.mxu0 0.0
    %273 = vmatmul.mubr.f32.gmra.mrb[0].mxu0 %v168
    %v274 = vpop.f32.mrb[0].mxu0
    %v275 = vadd.f32 0.0, %v274
    %v276 = vpop.f32.mrb[0].mxu0
    %277 = vmatprep.mubr.f32.mxu0 0.0
    %278 = vmatmul.mubr.f32.gmra.mrb[0].mxu0 %v169
    %v279 = vpop.f32.mrb[0].mxu0
    %v280 = vadd.f32 0.0, %v279
    %v281 = vpop.f32.mrb[0].mxu0
    %282 = vmatprep.mubr.f32.mxu0 0.0
    %283 = vmatmul.mubr.f32.gmra.mrb[0].mxu0 %v170
    %v284 = vpop.f32.mrb[0].mxu0
    %v285 = vadd.f32 0.0, %v284
    %v286 = vpop.f32.mrb[0].mxu0
    %287 = vmatprep.mubr.f32.mxu0 0.0
    %288 = vmatmul.mubr.f32.gmra.mrb[0].mxu0 %v171
    %v289 = vpop.f32.mrb[0].mxu0
    %v290 = vadd.f32 0.0, %v289
    %v291 = vpop.f32.mrb[0].mxu0
    %292 = vdwg.mxu0
    %293 = vst [vmem:[#allocation2] sm:$0xff] %v255
    %294 = vst [vmem:[#allocation2 + $0x8] sm:$0xff] %v260
    %295 = vst [vmem:[#allocation2 + $0x10] sm:$0xff] %v265
    %296 = vst [vmem:[#allocation2 + $0x18] sm:$0xff] %v270
    %297 = vst [vmem:[#allocation2 + $0x20] sm:$0xff] %v275
    %298 = vst [vmem:[#allocation2 + $0x28] sm:$0xff] %v280
    %299 = vst [vmem:[#allocation2 + $0x30] sm:$0xff] %v285
    %300 = vst [vmem:[#allocation2 + $0x38] sm:$0xff] %v290
    %v301 = vld [vmem:[#allocation13 + $0x3] sm:$0x1]
    %v302 = vlaneseq
    %v303 = vshrl.u32 %v302, 7
    %v304 = vsub.s32 0, %v303
    %v305 = vrot.slane %v301, %v304
    %v306 = vmul.f32 %v112, %v305
    %v307 = vmul.f32 %v113, %v305
    %v308 = vmul.f32 %v114, %v305
    %v309 = vmul.f32 %v115, %v305
    %v310 = vmul.f32 %v116, %v305
    %v311 = vmul.f32 %v117, %v305
    %v312 = vmul.f32 %v118, %v305
    %v313 = vmul.f32 %v119, %v305
    %v314 = vsub.f32 1.0, %v301
    %v315 = vlaneseq
    %v316 = vshrl.u32 %v315, 7
    %v317 = vsub.s32 0, %v316
    %v318 = vrot.slane %v314, %v317
    %v319 = vmul.f32 %v130, %v318
    %v320 = vmul.f32 %v131, %v318
    %v321 = vmul.f32 %v132, %v318
    %v322 = vmul.f32 %v133, %v318
    %v323 = vmul.f32 %v134, %v318
    %v324 = vmul.f32 %v135, %v318
    %v325 = vmul.f32 %v136, %v318
    %v326 = vmul.f32 %v137, %v318
    %v327 = vadd.f32 %v306, %v319
    %v328 = vadd.f32 %v307, %v320
    %v329 = vadd.f32 %v308, %v321
    %v330 = vadd.f32 %v309, %v322
    %v331 = vadd.f32 %v310, %v323
    %v332 = vadd.f32 %v311, %v324
    %v333 = vadd.f32 %v312, %v325
    %v334 = vadd.f32 %v313, %v326
    %v335 = vld [vmem:[#allocation16] sm:$0xff]
    %v336 = vld [vmem:[#allocation16 + $0x8] sm:$0xff]
    %v337 = vld [vmem:[#allocation16 + $0x10] sm:$0xff]
    %v338 = vld [vmem:[#allocation16 + $0x18] sm:$0xff]
    %v339 = vld [vmem:[#allocation16 + $0x20] sm:$0xff]
    %v340 = vld [vmem:[#allocation16 + $0x28] sm:$0xff]
    %v341 = vld [vmem:[#allocation16 + $0x30] sm:$0xff]
    %v342 = vld [vmem:[#allocation16 + $0x38] sm:$0xff]
    %v343 = vld [vmem:[#allocation16 + $0x40] sm:$0xff]
    %v344 = vld [vmem:[#allocation16 + $0x48] sm:$0xff]
    %v345 = vld [vmem:[#allocation16 + $0x50] sm:$0xff]
    %v346 = vld [vmem:[#allocation16 + $0x58] sm:$0xff]
    %v347 = vld [vmem:[#allocation16 + $0x60] sm:$0xff]
    %v348 = vld [vmem:[#allocation16 + $0x68] sm:$0xff]
    %v349 = vld [vmem:[#allocation16 + $0x70] sm:$0xff]
    %v350 = vld [vmem:[#allocation16 + $0x78] sm:$0xff]
    %351 = vmatprep.subr.mxu0 0.0
    %352 = vmatpush1.msra.mxu0 %v335
    %353 = vmatprep.subr.mxu0 0.0
    %354 = vmatpush1.msra.mxu0 %v336
    %355 = vmatprep.subr.mxu0 0.0
    %356 = vmatpush1.msra.mxu0 %v337
    %357 = vmatprep.subr.mxu0 0.0
    %358 = vmatpush1.msra.mxu0 %v338
    %359 = vmatprep.subr.mxu0 0.0
    %360 = vmatpush1.msra.mxu0 %v339
    %361 = vmatprep.subr.mxu0 0.0
    %362 = vmatpush1.msra.mxu0 %v340
    %363 = vmatprep.subr.mxu0 0.0
    %364 = vmatpush1.msra.mxu0 %v341
    %365 = vmatprep.subr.mxu0 0.0
    %366 = vmatpush1.msra.mxu0 %v342
    %367 = vmatprep.subr.mxu0 0.0
    %368 = vmatpush1.msra.mxu0 %v343
    %369 = vmatprep.subr.mxu0 0.0
    %370 = vmatpush1.msra.mxu0 %v344
    %371 = vmatprep.subr.mxu0 0.0
    %372 = vmatpush1.msra.mxu0 %v345
    %373 = vmatprep.subr.mxu0 0.0
    %374 = vmatpush1.msra.mxu0 %v346
    %375 = vmatprep.subr.mxu0 0.0
    %376 = vmatpush1.msra.mxu0 %v347
    %377 = vmatprep.subr.mxu0 0.0
    %378 = vmatpush1.msra.mxu0 %v348
    %379 = vmatprep.subr.mxu0 0.0
    %380 = vmatpush1.msra.mxu0 %v349
    %381 = vmatprep.subr.mxu0 0.0
    %382 = vmatpush1.msra.mxu0 %v350
    %383 = vmatprep.subr.mxu0 0.0
    %384 = vmatpush1.msra.mxu0 0.0
    %385 = vmatprep.subr.mxu0 0.0
    %386 = vmatpush1.msra.mxu0 0.0
    %387 = vmatprep.subr.mxu0 0.0
    %388 = vmatpush1.msra.mxu0 0.0
    %389 = vmatprep.subr.mxu0 0.0
    %390 = vmatpush1.msra.mxu0 0.0
    %391 = vmatprep.subr.mxu0 0.0
    %392 = vmatpush1.msra.mxu0 0.0
    %393 = vmatprep.subr.mxu0 0.0
    %394 = vmatpush1.msra.mxu0 0.0
    %395 = vmatprep.subr.mxu0 0.0
    %396 = vmatpush1.msra.mxu0 0.0
    %397 = vmatprep.subr.mxu0 0.0
    %398 = vmatpush1.msra.mxu0 0.0
    %399 = vmatprep.subr.mxu0 0.0
    %400 = vmatpush1.msra.mxu0 0.0
    %401 = vmatprep.subr.mxu0 0.0
    %402 = vmatpush1.msra.mxu0 0.0
    %403 = vmatprep.subr.mxu0 0.0
    %404 = vmatpush1.msra.mxu0 0.0
    %405 = vmatprep.subr.mxu0 0.0
    %406 = vmatpush1.msra.mxu0 0.0
    %407 = vmatprep.subr.mxu0 0.0
    %408 = vmatpush1.msra.mxu0 0.0
    %409 = vmatprep.subr.mxu0 0.0
    %410 = vmatpush1.msra.mxu0 0.0
    %411 = vmatprep.subr.mxu0 0.0
    %412 = vmatpush1.msra.mxu0 0.0
    %413 = vmatprep.subr.mxu0 0.0
    %414 = vmatpush1.msra.mxu0 0.0
    %415 = vmatprep.mubr.f32.mxu0 0.0
    %416 = vmatmul.mubr.f32.gmra.mrb[0].mxu0 %v327
    %v417 = vpop.f32.mrb[0].mxu0
    %v418 = vadd.f32 0.0, %v417
    %v419 = vpop.f32.mrb[0].mxu0
    %420 = vmatprep.mubr.f32.mxu0 0.0
    %421 = vmatmul.mubr.f32.gmra.mrb[0].mxu0 %v328
    %v422 = vpop.f32.mrb[0].mxu0
    %v423 = vadd.f32 0.0, %v422
    %v424 = vpop.f32.mrb[0].mxu0
    %425 = vmatprep.mubr.f32.mxu0 0.0
    %426 = vmatmul.mubr.f32.gmra.mrb[0].mxu0 %v329
    %v427 = vpop.f32.mrb[0].mxu0
    %v428 = vadd.f32 0.0, %v427
    %v429 = vpop.f32.mrb[0].mxu0
    %430 = vmatprep.mubr.f32.mxu0 0.0
    %431 = vmatmul.mubr.f32.gmra.mrb[0].mxu0 %v330
    %v432 = vpop.f32.mrb[0].mxu0
    %v433 = vadd.f32 0.0, %v432
    %v434 = vpop.f32.mrb[0].mxu0
    %435 = vmatprep.mubr.f32.mxu0 0.0
    %436 = vmatmul.mubr.f32.gmra.mrb[0].mxu0 %v331
    %v437 = vpop.f32.mrb[0].mxu0
    %v438 = vadd.f32 0.0, %v437
    %v439 = vpop.f32.mrb[0].mxu0
    %440 = vmatprep.mubr.f32.mxu0 0.0
    %441 = vmatmul.mubr.f32.gmra.mrb[0].mxu0 %v332
    %v442 = vpop.f32.mrb[0].mxu0
    %v443 = vadd.f32 0.0, %v442
    %v444 = vpop.f32.mrb[0].mxu0
    %445 = vmatprep.mubr.f32.mxu0 0.0
    %446 = vmatmul.mubr.f32.gmra.mrb[0].mxu0 %v333
    %v447 = vpop.f32.mrb[0].mxu0
    %v448 = vadd.f32 0.0, %v447
    %v449 = vpop.f32.mrb[0].mxu0
    %450 = vmatprep.mubr.f32.mxu0 0.0
    %451 = vmatmul.mubr.f32.gmra.mrb[0].mxu0 %v334
    %v452 = vpop.f32.mrb[0].mxu0
    %v453 = vadd.f32 0.0, %v452
    %v454 = vpop.f32.mrb[0].mxu0
    %455 = vdwg.mxu0
    %456 = vst [vmem:[#allocation3] sm:$0xff] %v418
    %457 = vst [vmem:[#allocation3 + $0x8] sm:$0xff] %v423
    %458 = vst [vmem:[#allocation3 + $0x10] sm:$0xff] %v428
    %459 = vst [vmem:[#allocation3 + $0x18] sm:$0xff] %v433
    %460 = vst [vmem:[#allocation3 + $0x20] sm:$0xff] %v438
    %461 = vst [vmem:[#allocation3 + $0x28] sm:$0xff] %v443
    %462 = vst [vmem:[#allocation3 + $0x30] sm:$0xff] %v448
    %463 = vst [vmem:[#allocation3 + $0x38] sm:$0xff] %v453
    %v464 = vld [vmem:[#allocation13 + $0x4] sm:$0x1]
    %v465 = vlaneseq
    %v466 = vshrl.u32 %v465, 7
    %v467 = vsub.s32 0, %v466
    %v468 = vrot.slane %v464, %v467
    %v469 = vmul.f32 %v112, %v468
    %v470 = vmul.f32 %v113, %v468
    %v471 = vmul.f32 %v114, %v468
    %v472 = vmul.f32 %v115, %v468
    %v473 = vmul.f32 %v116, %v468
    %v474 = vmul.f32 %v117, %v468
    %v475 = vmul.f32 %v118, %v468
    %v476 = vmul.f32 %v119, %v468
    %v477 = vsub.f32 1.0, %v464
    %v478 = vlaneseq
    %v479 = vshrl.u32 %v478, 7
    %v480 = vsub.s32 0, %v479
    %v481 = vrot.slane %v477, %v480
    %v482 = vmul.f32 %v130, %v481
    %v483 = vmul.f32 %v131, %v481
    %v484 = vmul.f32 %v132, %v481
    %v485 = vmul.f32 %v133, %v481
    %v486 = vmul.f32 %v134, %v481
    %v487 = vmul.f32 %v135, %v481
    %v488 = vmul.f32 %v136, %v481
    %v489 = vmul.f32 %v137, %v481
    %v490 = vadd.f32 %v469, %v482
    %v491 = vadd.f32 %v470, %v483
    %v492 = vadd.f32 %v471, %v484
    %v493 = vadd.f32 %v472, %v485
    %v494 = vadd.f32 %v473, %v486
    %v495 = vadd.f32 %v474, %v487
    %v496 = vadd.f32 %v475, %v488
    %v497 = vadd.f32 %v476, %v489
    %v498 = vld [vmem:[#allocation18] sm:$0xff]
    %v499 = vld [vmem:[#allocation18 + $0x8] sm:$0xff]
    %v500 = vld [vmem:[#allocation18 + $0x10] sm:$0xff]
    %v501 = vld [vmem:[#allocation18 + $0x18] sm:$0xff]
    %v502 = vld [vmem:[#allocation18 + $0x20] sm:$0xff]
    %v503 = vld [vmem:[#allocation18 + $0x28] sm:$0xff]
    %v504 = vld [vmem:[#allocation18 + $0x30] sm:$0xff]
    %v505 = vld [vmem:[#allocation18 + $0x38] sm:$0xff]
    %v506 = vld [vmem:[#allocation18 + $0x40] sm:$0xff]
    %v507 = vld [vmem:[#allocation18 + $0x48] sm:$0xff]
    %v508 = vld [vmem:[#allocation18 + $0x50] sm:$0xff]
    %v509 = vld [vmem:[#allocation18 + $0x58] sm:$0xff]
    %v510 = vld [vmem:[#allocation18 + $0x60] sm:$0xff]
    %v511 = vld [vmem:[#allocation18 + $0x68] sm:$0xff]
    %v512 = vld [vmem:[#allocation18 + $0x70] sm:$0xff]
    %v513 = vld [vmem:[#allocation18 + $0x78] sm:$0xff]
    %514 = vmatprep.subr.mxu0 0.0
    %515 = vmatpush1.msra.mxu0 %v498
    %516 = vmatprep.subr.mxu0 0.0
    %517 = vmatpush1.msra.mxu0 %v499
    %518 = vmatprep.subr.mxu0 0.0
    %519 = vmatpush1.msra.mxu0 %v500
    %520 = vmatprep.subr.mxu0 0.0
    %521 = vmatpush1.msra.mxu0 %v501
    %522 = vmatprep.subr.mxu0 0.0
    %523 = vmatpush1.msra.mxu0 %v502
    %524 = vmatprep.subr.mxu0 0.0
    %525 = vmatpush1.msra.mxu0 %v503
    %526 = vmatprep.subr.mxu0 0.0
    %527 = vmatpush1.msra.mxu0 %v504
    %528 = vmatprep.subr.mxu0 0.0
    %529 = vmatpush1.msra.mxu0 %v505
    %530 = vmatprep.subr.mxu0 0.0
    %531 = vmatpush1.msra.mxu0 %v506
    %532 = vmatprep.subr.mxu0 0.0
    %533 = vmatpush1.msra.mxu0 %v507
    %534 = vmatprep.subr.mxu0 0.0
    %535 = vmatpush1.msra.mxu0 %v508
    %536 = vmatprep.subr.mxu0 0.0
    %537 = vmatpush1.msra.mxu0 %v509
    %538 = vmatprep.subr.mxu0 0.0
    %539 = vmatpush1.msra.mxu0 %v510
    %540 = vmatprep.subr.mxu0 0.0
    %541 = vmatpush1.msra.mxu0 %v511
    %542 = vmatprep.subr.mxu0 0.0
    %543 = vmatpush1.msra.mxu0 %v512
    %544 = vmatprep.subr.mxu0 0.0
    %545 = vmatpush1.msra.mxu0 %v513
    %546 = vmatprep.subr.mxu0 0.0
    %547 = vmatpush1.msra.mxu0 0.0
    %548 = vmatprep.subr.mxu0 0.0
    %549 = vmatpush1.msra.mxu0 0.0
    %550 = vmatprep.subr.mxu0 0.0
    %551 = vmatpush1.msra.mxu0 0.0
    %552 = vmatprep.subr.mxu0 0.0
    %553 = vmatpush1.msra.mxu0 0.0
    %554 = vmatprep.subr.mxu0 0.0
    %555 = vmatpush1.msra.mxu0 0.0
    %556 = vmatprep.subr.mxu0 0.0
    %557 = vmatpush1.msra.mxu0 0.0
    %558 = vmatprep.subr.mxu0 0.0
    %559 = vmatpush1.msra.mxu0 0.0
    %560 = vmatprep.subr.mxu0 0.0
    %561 = vmatpush1.msra.mxu0 0.0
    %562 = vmatprep.subr.mxu0 0.0
    %563 = vmatpush1.msra.mxu0 0.0
    %564 = vmatprep.subr.mxu0 0.0
    %565 = vmatpush1.msra.mxu0 0.0
    %566 = vmatprep.subr.mxu0 0.0
    %567 = vmatpush1.msra.mxu0 0.0
    %568 = vmatprep.subr.mxu0 0.0
    %569 = vmatpush1.msra.mxu0 0.0
    %570 = vmatprep.subr.mxu0 0.0
    %571 = vmatpush1.msra.mxu0 0.0
    %572 = vmatprep.subr.mxu0 0.0
    %573 = vmatpush1.msra.mxu0 0.0
    %574 = vmatprep.subr.mxu0 0.0
    %575 = vmatpush1.msra.mxu0 0.0
    %576 = vmatprep.subr.mxu0 0.0
    %577 = vmatpush1.msra.mxu0 0.0
    %578 = vmatprep.mubr.f32.mxu0 0.0
    %579 = vmatmul.mubr.f32.gmra.mrb[0].mxu0 %v490
    %v580 = vpop.f32.mrb[0].mxu0
    %v581 = vadd.f32 0.0, %v580
    %v582 = vpop.f32.mrb[0].mxu0
    %583 = vmatprep.mubr.f32.mxu0 0.0
    %584 = vmatmul.mubr.f32.gmra.mrb[0].mxu0 %v491
    %v585 = vpop.f32.mrb[0].mxu0
    %v586 = vadd.f32 0.0, %v585
    %v587 = vpop.f32.mrb[0].mxu0
    %588 = vmatprep.mubr.f32.mxu0 0.0
    %589 = vmatmul.mubr.f32.gmra.mrb[0].mxu0 %v492
    %v590 = vpop.f32.mrb[0].mxu0
    %v591 = vadd.f32 0.0, %v590
    %v592 = vpop.f32.mrb[0].mxu0
    %593 = vmatprep.mubr.f32.mxu0 0.0
    %594 = vmatmul.mubr.f32.gmra.mrb[0].mxu0 %v493
    %v595 = vpop.f32.mrb[0].mxu0
    %v596 = vadd.f32 0.0, %v595
    %v597 = vpop.f32.mrb[0].mxu0
    %598 = vmatprep.mubr.f32.mxu0 0.0
    %599 = vmatmul.mubr.f32.gmra.mrb[0].mxu0 %v494
    %v600 = vpop.f32.mrb[0].mxu0
    %v601 = vadd.f32 0.0, %v600
    %v602 = vpop.f32.mrb[0].mxu0
    %603 = vmatprep.mubr.f32.mxu0 0.0
    %604 = vmatmul.mubr.f32.gmra.mrb[0].mxu0 %v495
    %v605 = vpop.f32.mrb[0].mxu0
    %v606 = vadd.f32 0.0, %v605
    %v607 = vpop.f32.mrb[0].mxu0
    %608 = vmatprep.mubr.f32.mxu0 0.0
    %609 = vmatmul.mubr.f32.gmra.mrb[0].mxu0 %v496
    %v610 = vpop.f32.mrb[0].mxu0
    %v611 = vadd.f32 0.0, %v610
    %v612 = vpop.f32.mrb[0].mxu0
    %613 = vmatprep.mubr.f32.mxu0 0.0
    %614 = vmatmul.mubr.f32.gmra.mrb[0].mxu0 %v497
    %v615 = vpop.f32.mrb[0].mxu0
    %v616 = vadd.f32 0.0, %v615
    %v617 = vpop.f32.mrb[0].mxu0
    %618 = vdwg.mxu0
    %619 = vst [vmem:[#allocation5] sm:$0xff] %v581
    %620 = vst [vmem:[#allocation5 + $0x8] sm:$0xff] %v586
    %621 = vst [vmem:[#allocation5 + $0x10] sm:$0xff] %v591
    %622 = vst [vmem:[#allocation5 + $0x18] sm:$0xff] %v596
    %623 = vst [vmem:[#allocation5 + $0x20] sm:$0xff] %v601
    %624 = vst [vmem:[#allocation5 + $0x28] sm:$0xff] %v606
    %625 = vst [vmem:[#allocation5 + $0x30] sm:$0xff] %v611
    %626 = vst [vmem:[#allocation5 + $0x38] sm:$0xff] %v616
    %v627 = vld [vmem:[#allocation13] sm:$0x1]
    %v628 = vld [vmem:[#allocation13 + $0x1] sm:$0x1]
    %v629 = vld [vmem:[#allocation6] sm:$0xff]
    %v630 = vld [vmem:[#allocation7] sm:$0xff]
    %v631 = vld [vmem:[#allocation8] sm:$0xff]
    %v632 = vld [vmem:[#allocation2] sm:$0xff]
    %v633 = vld [vmem:[#allocation3] sm:$0xff]
    %v634 = vlaneseq
    %v635 = vshrl.u32 %v634, 7
    %v636 = vsub.s32 0, %v635
    %v637 = vrot.slane %v628, %v636
    %v638 = vadd.f32 %v637, %v632
    %v639 = vmax.f32 %v631, %v638
    %v640 = vsub.f32 %v631, %v639
    %v641 = vmul.f32 %v640, 1.442695
    %v642 = vpow.pop %v641
    %v643 = vsub.f32 %v638, %v639
    %v644 = vmul.f32 %v643, 1.442695
    %v645 = vpow.pop %v644
    %v646 = vmul.f32 %v642, %v629
    %v647 = vmul.f32 %v645, %v633
    %v648 = vadd.f32 %v646, %v647
    %v649 = vmul.f32 %v642, %v630
    %v650 = vadd.f32 %v649, %v645
    %v651 = vrcp.pop %v650
    %v652 = vmul.f32 %v648, %v651
    %653 = vst [vmem:[#allocation4] sm:$0xff] %v652
    %v654 = vlaneseq
    %v655 = vshrl.u32 %v654, 7
    %v656 = vsub.s32 0, %v655
    %v657 = vrot.slane %v627, %v656
    %v658 = vadd.f32 %v657, %v631
    %v659 = vmax.f32 %v658, %v632
    %v660 = vsub.f32 %v658, %v659
    %v661 = vmul.f32 %v660, 1.442695
    %v662 = vpow.pop %v661
    %v663 = vsub.f32 %v632, %v659
    %v664 = vmul.f32 %v663, 1.442695
    %v665 = vpow.pop %v664
    %v666 = vmul.f32 %v662, %v629
    %v667 = vmul.f32 %v665, %v633
    %v668 = vadd.f32 %v666, %v667
    %v669 = vmul.f32 %v662, %v630
    %v670 = vadd.f32 %v669, %v665
    %s671 = sadd.s32 0, 8
    %s672 = scalar_lea.vmem [#allocation2], %s671
    %v673 = vld [vmem:[%s672] sm:$0xff]
    %s674 = scalar_lea.vmem [#allocation3], %s671
    %v675 = vld [vmem:[%s674] sm:$0xff]
    %v676 = vadd.f32 %v637, %v673
    %v677 = vmax.f32 %v659, %v676
    %v678 = vsub.f32 %v659, %v677
    %v679 = vmul.f32 %v678, 1.442695
    %v680 = vpow.pop %v679
    %v681 = vsub.f32 %v676, %v677
    %v682 = vmul.f32 %v681, 1.442695
    %v683 = vpow.pop %v682
    %v684 = vmul.f32 %v680, %v668
    %v685 = vmul.f32 %v683, %v675
    %v686 = vadd.f32 %v684, %v685
    %v687 = vmul.f32 %v680, %v670
    %v688 = vadd.f32 %v687, %v683
    %v689 = vrcp.pop %v688
    %v690 = vmul.f32 %v686, %v689
    %s691 = scalar_lea.vmem [#allocation4], %s671
    %692 = vst [vmem:[%s691] sm:$0xff] %v690
    %v693 = vadd.f32 %v657, %v659
    %v694 = vmax.f32 %v693, %v673
    %v695 = vsub.f32 %v693, %v694
    %v696 = vmul.f32 %v695, 1.442695
    %v697 = vpow.pop %v696
    %v698 = vsub.f32 %v673, %v694
    %v699 = vmul.f32 %v698, 1.442695
    %v700 = vpow.pop %v699
    %v701 = vmul.f32 %v697, %v668
    %v702 = vmul.f32 %v700, %v675
    %v703 = vadd.f32 %v701, %v702
    %v704 = vmul.f32 %v697, %v670
    %v705 = vadd.f32 %v704, %v700
    %s706 = sadd.s32 0, 16
    %s707 = scalar_lea.vmem [#allocation2], %s706
    %v708 = vld [vmem:[%s707] sm:$0xff]
    %s709 = scalar_lea.vmem [#allocation3], %s706
    %v710 = vld [vmem:[%s709] sm:$0xff]
    %v711 = vadd.f32 %v637, %v708
    %v712 = vmax.f32 %v694, %v711
    %v713 = vsub.f32 %v694, %v712
    %v714 = vmul.f32 %v713, 1.442695
    %v715 = vpow.pop %v714
    %v716 = vsub.f32 %v711, %v712
    %v717 = vmul.f32 %v716, 1.442695
    %v718 = vpow.pop %v717
    %v719 = vmul.f32 %v715, %v703
    %v720 = vmul.f32 %v718, %v710
    %v721 = vadd.f32 %v719, %v720
    %v722 = vmul.f32 %v715, %v705
    %v723 = vadd.f32 %v722, %v718
    %v724 = vrcp.pop %v723
    %v725 = vmul.f32 %v721, %v724
    %s726 = scalar_lea.vmem [#allocation4], %s706
    %727 = vst [vmem:[%s726] sm:$0xff] %v725
    %v728 = vadd.f32 %v657, %v694
    %v729 = vmax.f32 %v728, %v708
    %v730 = vsub.f32 %v728, %v729
    %v731 = vmul.f32 %v730, 1.442695
    %v732 = vpow.pop %v731
    %v733 = vsub.f32 %v708, %v729
    %v734 = vmul.f32 %v733, 1.442695
    %v735 = vpow.pop %v734
    %v736 = vmul.f32 %v732, %v703
    %v737 = vmul.f32 %v735, %v710
    %v738 = vadd.f32 %v736, %v737
    %v739 = vmul.f32 %v732, %v705
    %v740 = vadd.f32 %v739, %v735
    %s741 = sadd.s32 0, 24
    %s742 = scalar_lea.vmem [#allocation2], %s741
    %v743 = vld [vmem:[%s742] sm:$0xff]
    %s744 = scalar_lea.vmem [#allocation3], %s741
    %v745 = vld [vmem:[%s744] sm:$0xff]
    %v746 = vadd.f32 %v637, %v743
    %v747 = vmax.f32 %v729, %v746
    %v748 = vsub.f32 %v729, %v747
    %v749 = vmul.f32 %v748, 1.442695
    %v750 = vpow.pop %v749
    %v751 = vsub.f32 %v746, %v747
    %v752 = vmul.f32 %v751, 1.442695
    %v753 = vpow.pop %v752
    %v754 = vmul.f32 %v750, %v738
    %v755 = vmul.f32 %v753, %v745
    %v756 = vadd.f32 %v754, %v755
    %v757 = vmul.f32 %v750, %v740
    %v758 = vadd.f32 %v757, %v753
    %v759 = vrcp.pop %v758
    %v760 = vmul.f32 %v756, %v759
    %s761 = scalar_lea.vmem [#allocation4], %s741
    %762 = vst [vmem:[%s761] sm:$0xff] %v760
    %v763 = vadd.f32 %v657, %v729
    %v764 = vmax.f32 %v763, %v743
    %v765 = vsub.f32 %v763, %v764
    %v766 = vmul.f32 %v765, 1.442695
    %v767 = vpow.pop %v766
    %v768 = vsub.f32 %v743, %v764
    %v769 = vmul.f32 %v768, 1.442695
    %v770 = vpow.pop %v769
    %v771 = vmul.f32 %v767, %v738
    %v772 = vmul.f32 %v770, %v745
    %v773 = vadd.f32 %v771, %v772
    %v774 = vmul.f32 %v767, %v740
    %v775 = vadd.f32 %v774, %v770
    %s776 = sadd.s32 0, 32
    %s777 = scalar_lea.vmem [#allocation2], %s776
    %v778 = vld [vmem:[%s777] sm:$0xff]
    %s779 = scalar_lea.vmem [#allocation3], %s776
    %v780 = vld [vmem:[%s779] sm:$0xff]
    %v781 = vadd.f32 %v637, %v778
    %v782 = vmax.f32 %v764, %v781
    %v783 = vsub.f32 %v764, %v782
    %v784 = vmul.f32 %v783, 1.442695
    %v785 = vpow.pop %v784
    %v786 = vsub.f32 %v781, %v782
    %v787 = vmul.f32 %v786, 1.442695
    %v788 = vpow.pop %v787
    %v789 = vmul.f32 %v785, %v773
    %v790 = vmul.f32 %v788, %v780
    %v791 = vadd.f32 %v789, %v790
    %v792 = vmul.f32 %v785, %v775
    %v793 = vadd.f32 %v792, %v788
    %v794 = vrcp.pop %v793
    %v795 = vmul.f32 %v791, %v794
    %s796 = scalar_lea.vmem [#allocation4], %s776
    %797 = vst [vmem:[%s796] sm:$0xff] %v795
    %v798 = vadd.f32 %v657, %v764
    %v799 = vmax.f32 %v798, %v778
    %v800 = vsub.f32 %v798, %v799
    %v801 = vmul.f32 %v800, 1.442695
    %v802 = vpow.pop %v801
    %v803 = vsub.f32 %v778, %v799
    %v804 = vmul.f32 %v803, 1.442695
    %v805 = vpow.pop %v804
    %v806 = vmul.f32 %v802, %v773
    %v807 = vmul.f32 %v805, %v780
    %v808 = vadd.f32 %v806, %v807
    %v809 = vmul.f32 %v802, %v775
    %v810 = vadd.f32 %v809, %v805
    %s811 = sadd.s32 0, 40
    %s812 = scalar_lea.vmem [#allocation2], %s811
    %v813 = vld [vmem:[%s812] sm:$0xff]
    %s814 = scalar_lea.vmem [#allocation3], %s811
    %v815 = vld [vmem:[%s814] sm:$0xff]
    %v816 = vadd.f32 %v637, %v813
    %v817 = vmax.f32 %v799, %v816
    %v818 = vsub.f32 %v799, %v817
    %v819 = vmul.f32 %v818, 1.442695
    %v820 = vpow.pop %v819
    %v821 = vsub.f32 %v816, %v817
    %v822 = vmul.f32 %v821, 1.442695
    %v823 = vpow.pop %v822
    %v824 = vmul.f32 %v820, %v808
    %v825 = vmul.f32 %v823, %v815
    %v826 = vadd.f32 %v824, %v825
    %v827 = vmul.f32 %v820, %v810
    %v828 = vadd.f32 %v827, %v823
    %v829 = vrcp.pop %v828
    %v830 = vmul.f32 %v826, %v829
    %s831 = scalar_lea.vmem [#allocation4], %s811
    %832 = vst [vmem:[%s831] sm:$0xff] %v830
    %v833 = vadd.f32 %v657, %v799
    %v834 = vmax.f32 %v833, %v813
    %v835 = vsub.f32 %v833, %v834
    %v836 = vmul.f32 %v835, 1.442695
    %v837 = vpow.pop %v836
    %v838 = vsub.f32 %v813, %v834
    %v839 = vmul.f32 %v838, 1.442695
    %v840 = vpow.pop %v839
    %v841 = vmul.f32 %v837, %v808
    %v842 = vmul.f32 %v840, %v815
    %v843 = vadd.f32 %v841, %v842
    %v844 = vmul.f32 %v837, %v810
    %v845 = vadd.f32 %v844, %v840
    %s846 = sadd.s32 0, 48
    %s847 = scalar_lea.vmem [#allocation2], %s846
    %v848 = vld [vmem:[%s847] sm:$0xff]
    %s849 = scalar_lea.vmem [#allocation3], %s846
    %v850 = vld [vmem:[%s849] sm:$0xff]
    %v851 = vadd.f32 %v637, %v848
    %v852 = vmax.f32 %v834, %v851
    %v853 = vsub.f32 %v834, %v852
    %v854 = vmul.f32 %v853, 1.442695
    %v855 = vpow.pop %v854
    %v856 = vsub.f32 %v851, %v852
    %v857 = vmul.f32 %v856, 1.442695
    %v858 = vpow.pop %v857
    %v859 = vmul.f32 %v855, %v843
    %v860 = vmul.f32 %v858, %v850
    %v861 = vadd.f32 %v859, %v860
    %v862 = vmul.f32 %v855, %v845
    %v863 = vadd.f32 %v862, %v858
    %v864 = vrcp.pop %v863
    %v865 = vmul.f32 %v861, %v864
    %s866 = scalar_lea.vmem [#allocation4], %s846
    %867 = vst [vmem:[%s866] sm:$0xff] %v865
    %v868 = vadd.f32 %v657, %v834
    %v869 = vmax.f32 %v868, %v848
    %v870 = vsub.f32 %v868, %v869
    %v871 = vmul.f32 %v870, 1.442695
    %v872 = vpow.pop %v871
    %v873 = vsub.f32 %v848, %v869
    %v874 = vmul.f32 %v873, 1.442695
    %v875 = vpow.pop %v874
    %v876 = vmul.f32 %v872, %v843
    %v877 = vmul.f32 %v875, %v850
    %v878 = vadd.f32 %v876, %v877
    %v879 = vmul.f32 %v872, %v845
    %v880 = vadd.f32 %v879, %v875
    %s881 = sadd.s32 0, 56
    %s882 = scalar_lea.vmem [#allocation2], %s881
    %v883 = vld [vmem:[%s882] sm:$0xff]
    %s884 = scalar_lea.vmem [#allocation3], %s881
    %v885 = vld [vmem:[%s884] sm:$0xff]
    %v886 = vadd.f32 %v637, %v883
    %v887 = vmax.f32 %v869, %v886
    %v888 = vsub.f32 %v869, %v887
    %v889 = vmul.f32 %v888, 1.442695
    %v890 = vpow.pop %v889
    %v891 = vsub.f32 %v886, %v887
    %v892 = vmul.f32 %v891, 1.442695
    %v893 = vpow.pop %v892
    %v894 = vmul.f32 %v890, %v878
    %v895 = vmul.f32 %v893, %v885
    %v896 = vadd.f32 %v894, %v895
    %v897 = vmul.f32 %v890, %v880
    %v898 = vadd.f32 %v897, %v893
    %v899 = vrcp.pop %v898
    %v900 = vmul.f32 %v896, %v899
    %s901 = scalar_lea.vmem [#allocation4], %s881
    %902 = vst [vmem:[%s901] sm:$0xff] %v900
    %v903 = vadd.f32 %v657, %v869
    %v904 = vmax.f32 %v903, %v883
    %v905 = vsub.f32 %v903, %v904
    %v906 = vmul.f32 %v905, 1.442695
    %v907 = vpow.pop %v906
    %v908 = vsub.f32 %v883, %v904
    %v909 = vmul.f32 %v908, 1.442695
    %v910 = vpow.pop %v909
    %v911 = vmul.f32 %v907, %v878
    %v912 = vmul.f32 %v910, %v885
    %v913 = vadd.f32 %v911, %v912
    %v914 = vmul.f32 %v907, %v880
    %v915 = vadd.f32 %v914, %v910
    %916 = vst [vmem:[#allocation6] sm:$0xff] %v913
    %917 = vst [vmem:[#allocation7] sm:$0xff] %v915
    %918 = vst [vmem:[#allocation8] sm:$0xff] %v904
    %v919 = vld [vmem:[#allocation5] sm:$0xff]
    %v920 = vld [vmem:[#allocation5 + $0x8] sm:$0xff]
    %v921 = vld [vmem:[#allocation5 + $0x10] sm:$0xff]
    %v922 = vld [vmem:[#allocation5 + $0x18] sm:$0xff]
    %v923 = vld [vmem:[#allocation5 + $0x20] sm:$0xff]
    %v924 = vld [vmem:[#allocation5 + $0x28] sm:$0xff]
    %v925 = vld [vmem:[#allocation5 + $0x30] sm:$0xff]
    %v926 = vld [vmem:[#allocation5 + $0x38] sm:$0xff]
    %v927 = vxor.u32 %v919, 2147483648
    %v928 = vxor.u32 %v920, 2147483648
    %v929 = vxor.u32 %v921, 2147483648
    %v930 = vxor.u32 %v922, 2147483648
    %v931 = vxor.u32 %v923, 2147483648
    %v932 = vxor.u32 %v924, 2147483648
    %v933 = vxor.u32 %v925, 2147483648
    %v934 = vxor.u32 %v926, 2147483648
    %v935 = vmul.f32 %v927, 1.442695
    %v936 = vpow.pop %v935
    %v937 = vmul.f32 %v928, 1.442695
    %v938 = vpow.pop %v937
    %v939 = vmul.f32 %v929, 1.442695
    %v940 = vpow.pop %v939
    %v941 = vmul.f32 %v930, 1.442695
    %v942 = vpow.pop %v941
    %v943 = vmul.f32 %v931, 1.442695
    %v944 = vpow.pop %v943
    %v945 = vmul.f32 %v932, 1.442695
    %v946 = vpow.pop %v945
    %v947 = vmul.f32 %v933, 1.442695
    %v948 = vpow.pop %v947
    %v949 = vmul.f32 %v934, 1.442695
    %v950 = vpow.pop %v949
    %v951 = vadd.f32 %v936, 1.0
    %v952 = vadd.f32 %v938, 1.0
    %v953 = vadd.f32 %v940, 1.0
    %v954 = vadd.f32 %v942, 1.0
    %v955 = vadd.f32 %v944, 1.0
    %v956 = vadd.f32 %v946, 1.0
    %v957 = vadd.f32 %v948, 1.0
    %v958 = vadd.f32 %v950, 1.0
    %v959 = vrcp.pop %v951
    %v960 = vmul.f32 1.0, %v959
    %v961 = vrcp.pop %v952
    %v962 = vmul.f32 1.0, %v961
    %v963 = vrcp.pop %v953
    %v964 = vmul.f32 1.0, %v963
    %v965 = vrcp.pop %v954
    %v966 = vmul.f32 1.0, %v965
    %v967 = vrcp.pop %v955
    %v968 = vmul.f32 1.0, %v967
    %v969 = vrcp.pop %v956
    %v970 = vmul.f32 1.0, %v969
    %v971 = vrcp.pop %v957
    %v972 = vmul.f32 1.0, %v971
    %v973 = vrcp.pop %v958
    %v974 = vmul.f32 1.0, %v973
    %v975 = vld [vmem:[#allocation4] sm:$0xff]
    %v976 = vld [vmem:[#allocation4 + $0x8] sm:$0xff]
    %v977 = vld [vmem:[#allocation4 + $0x10] sm:$0xff]
    %v978 = vld [vmem:[#allocation4 + $0x18] sm:$0xff]
    %v979 = vld [vmem:[#allocation4 + $0x20] sm:$0xff]
    %v980 = vld [vmem:[#allocation4 + $0x28] sm:$0xff]
    %v981 = vld [vmem:[#allocation4 + $0x30] sm:$0xff]
    %v982 = vld [vmem:[#allocation4 + $0x38] sm:$0xff]
    %v983 = vmul.f32 %v960, %v975
    %v984 = vmul.f32 %v962, %v976
    %v985 = vmul.f32 %v964, %v977
    %v986 = vmul.f32 %v966, %v978
    %v987 = vmul.f32 %v968, %v979
    %v988 = vmul.f32 %v970, %v980
    %v989 = vmul.f32 %v972, %v981
    %v990 = vmul.f32 %v974, %v982
    %v991 = vld [vmem:[#allocation19] sm:$0xff]
    %v992 = vld [vmem:[#allocation19 + $0x8] sm:$0xff]
    %v993 = vld [vmem:[#allocation19 + $0x10] sm:$0xff]
    %v994 = vld [vmem:[#allocation19 + $0x18] sm:$0xff]
    %v995 = vld [vmem:[#allocation19 + $0x20] sm:$0xff]
    %v996 = vld [vmem:[#allocation19 + $0x28] sm:$0xff]
    %v997 = vld [vmem:[#allocation19 + $0x30] sm:$0xff]
    %v998 = vld [vmem:[#allocation19 + $0x38] sm:$0xff]
    %v999 = vld [vmem:[#allocation19 + $0x40] sm:$0xff]
    %v1000 = vld [vmem:[#allocation19 + $0x48] sm:$0xff]
    %v1001 = vld [vmem:[#allocation19 + $0x50] sm:$0xff]
    %v1002 = vld [vmem:[#allocation19 + $0x58] sm:$0xff]
    %v1003 = vld [vmem:[#allocation19 + $0x60] sm:$0xff]
    %v1004 = vld [vmem:[#allocation19 + $0x68] sm:$0xff]
    %v1005 = vld [vmem:[#allocation19 + $0x70] sm:$0xff]
    %v1006 = vld [vmem:[#allocation19 + $0x78] sm:$0xff]
    %1007 = vmatprep.subr.mxu0 0.0
    %1008 = vmatpush1.msra.mxu0 %v991
    %1009 = vmatprep.subr.mxu0 0.0
    %1010 = vmatpush1.msra.mxu0 %v992
    %1011 = vmatprep.subr.mxu0 0.0
    %1012 = vmatpush1.msra.mxu0 %v993
    %1013 = vmatprep.subr.mxu0 0.0
    %1014 = vmatpush1.msra.mxu0 %v994
    %1015 = vmatprep.subr.mxu0 0.0
    %1016 = vmatpush1.msra.mxu0 %v995
    %1017 = vmatprep.subr.mxu0 0.0
    %1018 = vmatpush1.msra.mxu0 %v996
    %1019 = vmatprep.subr.mxu0 0.0
    %1020 = vmatpush1.msra.mxu0 %v997
    %1021 = vmatprep.subr.mxu0 0.0
    %1022 = vmatpush1.msra.mxu0 %v998
    %1023 = vmatprep.subr.mxu0 0.0
    %1024 = vmatpush1.msra.mxu0 %v999
    %1025 = vmatprep.subr.mxu0 0.0
    %1026 = vmatpush1.msra.mxu0 %v1000
    %1027 = vmatprep.subr.mxu0 0.0
    %1028 = vmatpush1.msra.mxu0 %v1001
    %1029 = vmatprep.subr.mxu0 0.0
    %1030 = vmatpush1.msra.mxu0 %v1002
    %1031 = vmatprep.subr.mxu0 0.0
    %1032 = vmatpush1.msra.mxu0 %v1003
    %1033 = vmatprep.subr.mxu0 0.0
    %1034 = vmatpush1.msra.mxu0 %v1004
    %1035 = vmatprep.subr.mxu0 0.0
    %1036 = vmatpush1.msra.mxu0 %v1005
    %1037 = vmatprep.subr.mxu0 0.0
    %1038 = vmatpush1.msra.mxu0 %v1006
    %1039 = vmatprep.subr.mxu0 0.0
    %1040 = vmatpush1.msra.mxu0 0.0
    %1041 = vmatprep.subr.mxu0 0.0
    %1042 = vmatpush1.msra.mxu0 0.0
    %1043 = vmatprep.subr.mxu0 0.0
    %1044 = vmatpush1.msra.mxu0 0.0
    %1045 = vmatprep.subr.mxu0 0.0
    %1046 = vmatpush1.msra.mxu0 0.0
    %1047 = vmatprep.subr.mxu0 0.0
    %1048 = vmatpush1.msra.mxu0 0.0
    %1049 = vmatprep.subr.mxu0 0.0
    %1050 = vmatpush1.msra.mxu0 0.0
    %1051 = vmatprep.subr.mxu0 0.0
    %1052 = vmatpush1.msra.mxu0 0.0
    %1053 = vmatprep.subr.mxu0 0.0
    %1054 = vmatpush1.msra.mxu0 0.0
    %1055 = vmatprep.subr.mxu0 0.0
    %1056 = vmatpush1.msra.mxu0 0.0
    %1057 = vmatprep.subr.mxu0 0.0
    %1058 = vmatpush1.msra.mxu0 0.0
    %1059 = vmatprep.subr.mxu0 0.0
    %1060 = vmatpush1.msra.mxu0 0.0
    %1061 = vmatprep.subr.mxu0 0.0
    %1062 = vmatpush1.msra.mxu0 0.0
    %1063 = vmatprep.subr.mxu0 0.0
    %1064 = vmatpush1.msra.mxu0 0.0
    %1065 = vmatprep.subr.mxu0 0.0
    %1066 = vmatpush1.msra.mxu0 0.0
    %1067 = vmatprep.subr.mxu0 0.0
    %1068 = vmatpush1.msra.mxu0 0.0
    %1069 = vmatprep.subr.mxu0 0.0
    %1070 = vmatpush1.msra.mxu0 0.0
    %1071 = vmatprep.mubr.f32.mxu0 0.0
    %1072 = vmatmul.mubr.f32.gmra.mrb[0].mxu0 %v983
    %v1073 = vpop.f32.mrb[0].mxu0
    %v1074 = vadd.f32 0.0, %v1073
    %v1075 = vpop.f32.mrb[0].mxu0
    %1076 = vmatprep.mubr.f32.mxu0 0.0
    %1077 = vmatmul.mubr.f32.gmra.mrb[0].mxu0 %v984
    %v1078 = vpop.f32.mrb[0].mxu0
    %v1079 = vadd.f32 0.0, %v1078
    %v1080 = vpop.f32.mrb[0].mxu0
    %1081 = vmatprep.mubr.f32.mxu0 0.0
    %1082 = vmatmul.mubr.f32.gmra.mrb[0].mxu0 %v985
    %v1083 = vpop.f32.mrb[0].mxu0
    %v1084 = vadd.f32 0.0, %v1083
    %v1085 = vpop.f32.mrb[0].mxu0
    %1086 = vmatprep.mubr.f32.mxu0 0.0
    %1087 = vmatmul.mubr.f32.gmra.mrb[0].mxu0 %v986
    %v1088 = vpop.f32.mrb[0].mxu0
    %v1089 = vadd.f32 0.0, %v1088
    %v1090 = vpop.f32.mrb[0].mxu0
    %1091 = vmatprep.mubr.f32.mxu0 0.0
    %1092 = vmatmul.mubr.f32.gmra.mrb[0].mxu0 %v987
    %v1093 = vpop.f32.mrb[0].mxu0
    %v1094 = vadd.f32 0.0, %v1093
    %v1095 = vpop.f32.mrb[0].mxu0
    %1096 = vmatprep.mubr.f32.mxu0 0.0
    %1097 = vmatmul.mubr.f32.gmra.mrb[0].mxu0 %v988
    %v1098 = vpop.f32.mrb[0].mxu0
    %v1099 = vadd.f32 0.0, %v1098
    %v1100 = vpop.f32.mrb[0].mxu0
    %1101 = vmatprep.mubr.f32.mxu0 0.0
    %1102 = vmatmul.mubr.f32.gmra.mrb[0].mxu0 %v989
    %v1103 = vpop.f32.mrb[0].mxu0
    %v1104 = vadd.f32 0.0, %v1103
    %v1105 = vpop.f32.mrb[0].mxu0
    %1106 = vmatprep.mubr.f32.mxu0 0.0
    %1107 = vmatmul.mubr.f32.gmra.mrb[0].mxu0 %v990
    %v1108 = vpop.f32.mrb[0].mxu0
    %v1109 = vadd.f32 0.0, %v1108
    %v1110 = vpop.f32.mrb[0].mxu0
    %1111 = vdwg.mxu0
    %1112 = vst [vmem:[#allocation21] sm:$0xff] %v1074
    %1113 = vst [vmem:[#allocation21 + $0x8] sm:$0xff] %v1079
    %1114 = vst [vmem:[#allocation21 + $0x10] sm:$0xff] %v1084
    %1115 = vst [vmem:[#allocation21 + $0x18] sm:$0xff] %v1089
    %1116 = vst [vmem:[#allocation21 + $0x20] sm:$0xff] %v1094
    %1117 = vst [vmem:[#allocation21 + $0x28] sm:$0xff] %v1099
    %1118 = vst [vmem:[#allocation21 + $0x30] sm:$0xff] %v1104
    %1119 = vst [vmem:[#allocation21 + $0x38] sm:$0xff] %v1109
    // Predicated region
    $region54: #{tpu_custom_call.1} parent=1 // pred_check
      _
    $region55: #{tpu_custom_call.1} parent=1 // pred_check_branch
      %1121 = sbr.rel (0) target = $region57
    $region56: #{tpu_custom_call.1} parent=1 // pred_region
      %s1123 = ssub.s32 1024, 1024
      %1124 = vsyncadd [#allocation12], %s1123
      %s1125 = sshll.u32 [#allocation21], 4
      %s1126 = int_to_ptr.vmem [resolvable:$true] %s1125
      %1131 = dma.vmem_to_hbm [thread:$0]  %s1126, 1024, %s6, [#allocation12], 128, 128, 8
    $region57: #{tpu_custom_call.1} parent=1 // pred_fallthru
      _
    // Predicated region
    $region58: #{tpu_custom_call.1} parent=1 // pred_check
      _
    $region59: #{tpu_custom_call.1} parent=1 // pred_check_branch
      %1133 = sbr.rel (0) target = $region61
    $region60: #{tpu_custom_call.1} parent=1 // pred_region
      %1134 = dma.done [#allocation12], 1024
    $region61: #{tpu_custom_call.1} parent=1 // pred_fallthru
      _
    %1135 = vsyncpa [#allocation11], 1
    %1136 = vsyncpa [#allocation14], 1
    %1137 = vsyncpa [#allocation17], 1
    %1138 = vsyncpa [#allocation20], 1
    %1139 = vsyncpa [#allocation12], 1

</llo_original>
